<compile_context>
chip_gen: v7x
topology: tpu7x:2x2x1
jax: 0.10.0
libtpu: 0.0.40
codegen_flags: <defaults>
</compile_context>

<pallas_src>
import functools

import jax
import jax.numpy as jnp
from jax import lax
from jax.experimental import pallas as pl
from jax.experimental.pallas import tpu as pltpu


def _round_up(x, m):
    return (x + m - 1) // m * m


# ---------------------------------------------------------------------------
# Fused kernel: all LSTM layers (both directions) + final FC
# ---------------------------------------------------------------------------
def fused_lstm_fc_kernel(x_hbm, w_ih0_hbm, w_ihr_hbm, w_hh_hbm, b_ref,
                         fc_w_hbm, fc_b_ref, out_ref,
                         x_v, w_ih0_v, w_ihr_v, w_hh_v, fc_w_v,
                         act_sc, gix_sc, sems,
                         *, seq, num_layers, num_dir, Bp, H):
    """Padded sizes: Bp (batch->8), F0p (input->128), C4 = round_up(4H, 128),
       Kr = num_dir*H, Op (output->128).  L = num_layers, D = num_dir.

       HBM inputs (memory_space=pl.ANY, staged once into VMEM scratch):
         x_hbm     : (seq*Bp, F0p)            bf16   time-major, batch-flattened
         w_ih0_hbm : (D, F0p, C4)             bf16   layer-0 input->gates
         w_ihr_hbm : (max(L-1,1), D, Kr, C4)  bf16   layer>0 input->gates
         w_hh_hbm  : (L, D, H, C4)            bf16   hidden->gates
         fc_w_hbm  : (D, H, Op)               bf16   final linear per concat half
       VMEM inputs:
         b_ref     : (L, D, 1, C4)            f32    b_ih + b_hh
         fc_b_ref  : (1, Op)                  f32
       Output:
         out_ref   : (Bp, Op)                 f32
       Scratch:
         act_sc    : (seq*Bp, Kr)             bf16   inter-layer activations
         gix_sc    : (D, seq*Bp, C4)          f32    hoisted x-projection (+bias)
    """
    f32 = jnp.float32
    bf16 = jnp.bfloat16

    # ---- stage inputs once into single-buffered VMEM (overlapped DMAs) ----
    copies = [
        pltpu.make_async_copy(x_hbm, x_v, sems.at[0]),
        pltpu.make_async_copy(w_ih0_hbm, w_ih0_v, sems.at[1]),
        pltpu.make_async_copy(w_hh_hbm, w_hh_v, sems.at[2]),
        pltpu.make_async_copy(fc_w_hbm, fc_w_v, sems.at[3]),
    ]
    if num_layers > 1:
        copies.append(pltpu.make_async_copy(w_ihr_hbm, w_ihr_v, sems.at[4]))
    for c in copies:
        c.start()
    for c in copies:
        c.wait()

    final_hs = None
    for l in range(num_layers):
        # ---- hoisted input projection: one large MXU matmul per direction ----
        src = x_v[...] if l == 0 else act_sc[...]          # both already bf16
        for d in range(num_dir):
            w = w_ih0_v[d] if l == 0 else w_ihr_v[l - 1, d]
            gix_sc[d] = (jnp.dot(src, w, preferred_element_type=f32)
                         + b_ref[l, d])

        write_act = l < num_layers - 1

        def step(t, carry, l=l, write_act=write_act):
            hs, cs = carry
            new_hs, new_cs = [], []
            for d in range(num_dir):
                tt = t if d == 0 else seq - 1 - t          # reverse dir walks backwards
                row = tt * Bp
                if not isinstance(row, int):
                    row = pl.multiple_of(row, Bp)          # aligned sublane start
                # w_hh streamed from VMEM each step (not pinned across the loop).
                gates = gix_sc[d, pl.ds(row, Bp)] + jnp.dot(
                    hs[d].astype(bf16), w_hh_v[l, d],
                    preferred_element_type=f32)
                # PyTorch gate order (i, f, g, o), packed contiguously in 4H lanes.
                i_g = jax.nn.sigmoid(gates[:, 0 * H:1 * H])
                f_g = jax.nn.sigmoid(gates[:, 1 * H:2 * H])
                g_g = jnp.tanh(gates[:, 2 * H:3 * H])
                o_g = jax.nn.sigmoid(gates[:, 3 * H:4 * H])
                c_new = f_g * cs[d] + i_g * g_g
                h_new = o_g * jnp.tanh(c_new)
                if write_act:
                    act_sc[pl.ds(row, Bp), d * H:(d + 1) * H] = h_new.astype(bf16)
                new_hs.append(h_new)
                new_cs.append(c_new)
            return tuple(new_hs), tuple(new_cs)

        zero = jnp.zeros((Bp, H), f32)
        carry = (tuple(zero for _ in range(num_dir)),
                 tuple(zero for _ in range(num_dir)))
        if seq <= 32:
            for t in range(seq):                 # fully unrolled, static indices
                carry = step(t, carry)
        else:
            carry = lax.fori_loop(0, seq, step, carry, unroll=2)
        final_hs = carry[0]

    # ---- final FC.  torch.cat((h[-1], h[-2]), dim=1) = (reverse_h, forward_h). ----
    if num_dir == 2:
        cat_parts = (final_hs[1], final_hs[0])
    else:
        cat_parts = (final_hs[0],)
    out = jnp.dot(cat_parts[0].astype(bf16), fc_w_v[0],
                  preferred_element_type=f32)
    for k in range(1, num_dir):
        out = out + jnp.dot(cat_parts[k].astype(bf16), fc_w_v[k],
                            preferred_element_type=f32)
    out_ref[...] = out + fc_b_ref[...]


# ---------------------------------------------------------------------------
# Forward wrapper
# ---------------------------------------------------------------------------
@functools.partial(jax.jit, static_argnames=("hidden_size", "num_layers",
                                             "bidirectional", "output_size"))
def lstm_model_forward(x, params, *, hidden_size, num_layers,
                       bidirectional, output_size):
    seq, batch, input_size = x.shape
    num_dir = 2 if bidirectional else 1
    H = hidden_size
    Bp = _round_up(batch, 8)
    F0p = _round_up(input_size, 128)
    C4 = _round_up(4 * H, 128)
    Kr = num_dir * H
    Lr = max(num_layers - 1, 1)
    Op = _round_up(output_size, 128)

    # zero-pad batch -> Bp (sublanes), features -> F0p (lanes); flatten time-major.
    x_p = jnp.zeros((seq, Bp, F0p), jnp.float32).at[:, :batch, :input_size].set(x)
    x_p = x_p.reshape(seq * Bp, F0p).astype(jnp.bfloat16)

    # --- static VMEM budget (single-buffered scratch + tiny pipelined b/fc_b/out) ---
    vmem_bytes = (
        seq * Bp * F0p * 2                      # x_v
        + num_dir * F0p * C4 * 2                # w_ih0_v
        + Lr * num_dir * Kr * C4 * 2            # w_ihr_v
        + num_layers * num_dir * H * C4 * 2     # w_hh_v
        + num_dir * H * Op * 2                  # fc_w_v
        + seq * Bp * Kr * 2                     # act_sc (bf16)
        + num_dir * seq * Bp * C4 * 4           # gix_sc (f32)
        + 2 * (num_layers * num_dir * C4 * 4)   # b (pipelined BlockSpec)
        + 2 * (Op * 4) + 2 * (Bp * Op * 4)      # fc_b, out
    )
    vmem_limit = int(min(100 * 1024 * 1024,
                         max(2 * vmem_bytes + (8 << 20), 24 << 20)))

    kernel = functools.partial(fused_lstm_fc_kernel, seq=seq,
                               num_layers=num_layers, num_dir=num_dir,
                               Bp=Bp, H=H)

    out_p = pl.pallas_call(
        kernel,
        out_shape=jax.ShapeDtypeStruct((Bp, Op), jnp.float32),
        grid_spec=pltpu.PrefetchScalarGridSpec(
            num_scalar_prefetch=0,
            grid=(1,),
            in_specs=[
                pl.BlockSpec(memory_space=pl.ANY),                       # x
                pl.BlockSpec(memory_space=pl.ANY),                       # w_ih0
                pl.BlockSpec(memory_space=pl.ANY),                       # w_ihr
                pl.BlockSpec(memory_space=pl.ANY),                       # w_hh
                pl.BlockSpec((num_layers, num_dir, 1, C4),
                             lambda i: (0, 0, 0, 0)),                    # b
                pl.BlockSpec(memory_space=pl.ANY),                       # fc_w
                pl.BlockSpec((1, Op), lambda i: (0, 0)),                 # fc_b
            ],
            out_specs=pl.BlockSpec((Bp, Op), lambda i: (0, 0)),
            scratch_shapes=[
                pltpu.VMEM((seq * Bp, F0p), jnp.bfloat16),               # x_v
                pltpu.VMEM((num_dir, F0p, C4), jnp.bfloat16),            # w_ih0_v
                pltpu.VMEM((Lr, num_dir, Kr, C4), jnp.bfloat16),         # w_ihr_v
                pltpu.VMEM((num_layers, num_dir, H, C4), jnp.bfloat16),  # w_hh_v
                pltpu.VMEM((num_dir, H, Op), jnp.bfloat16),              # fc_w_v
                pltpu.VMEM((seq * Bp, Kr), jnp.bfloat16),                # act_sc
                pltpu.VMEM((num_dir, seq * Bp, C4), jnp.float32),        # gix_sc
                pltpu.SemaphoreType.DMA((5,)),                           # staging sems
            ],
        ),
        compiler_params=pltpu.CompilerParams(
            dimension_semantics=("arbitrary",),
            vmem_limit_bytes=vmem_limit),
    )(x_p, params["w_ih0"], params["w_ihr"], params["w_hh"], params["b"],
      params["fc_w"], params["fc_b"])

    return out_p[:batch, :output_size].reshape(-1, output_size)


# ---------------------------------------------------------------------------
# Parameter construction (mimics PyTorch uniform(-1/sqrt(H), 1/sqrt(H))),
# pre-packed into the padded / stacked / right-multiply kernel layout.
# ---------------------------------------------------------------------------
def make_params(key, input_size, hidden_size, num_layers, output_size,
                bidirectional):
    num_dir = 2 if bidirectional else 1
    H = hidden_size
    C4 = _round_up(4 * H, 128)
    F0p = _round_up(input_size, 128)
    Kr = num_dir * H
    Lr = max(num_layers - 1, 1)
    Op = _round_up(output_size, 128)
    bound = 1.0 / float(H) ** 0.5

    def uni(k, shape, b):
        return jax.random.uniform(k, shape, jnp.float32, -b, b)

    w_ih0_dirs = []
    w_ihr_layers, w_hh_layers, b_layers = [], [], []
    kidx = 0
    for l in range(num_layers):
        in_dim = input_size if l == 0 else Kr
        wi_dirs, wh_dirs, b_dirs = [], [], []
        for _d in range(num_dir):
            k1, k2, k3, k4 = (jax.random.fold_in(key, kidx + i) for i in range(4))
            kidx += 4
            w_ih = uni(k1, (in_dim, 4 * H), bound)     # right-multiply layout
            w_hh = uni(k2, (H, 4 * H), bound)
            bias = uni(k3, (4 * H,), bound) + uni(k4, (4 * H,), bound)  # b_ih + b_hh

            K_pad = F0p if l == 0 else Kr
            wi_p = jnp.zeros((K_pad, C4), jnp.float32).at[:in_dim, :4 * H].set(w_ih)
            wh_p = jnp.zeros((H, C4), jnp.float32).at[:, :4 * H].set(w_hh)
            b_p = jnp.zeros((1, C4), jnp.float32).at[0, :4 * H].set(bias)

            wi_dirs.append(wi_p)
            wh_dirs.append(wh_p)
            b_dirs.append(b_p)
        if l == 0:
            w_ih0_dirs = wi_dirs
        else:
            w_ihr_layers.append(jnp.stack(wi_dirs))
        w_hh_layers.append(jnp.stack(wh_dirs))
        b_layers.append(jnp.stack(b_dirs))

    if w_ihr_layers:
        w_ihr = jnp.stack(w_ihr_layers)                 # (L-1, D, Kr, C4)
    else:                                               # num_layers == 1: unused dummy
        w_ihr = jnp.zeros((Lr, num_dir, Kr, C4), jnp.float32)

    fc_in = num_dir * H
    fc_bound = 1.0 / float(fc_in) ** 0.5
    k_w = jax.random.fold_in(key, kidx)
    k_b = jax.random.fold_in(key, kidx + 1)
    fc_w = uni(k_w, (fc_in, output_size), fc_bound)
    fc_b = uni(k_b, (output_size,), fc_bound)
    # cat order is (h[-1]=reverse, h[-2]=forward): fc_w rows [0:H] multiply the
    # first concat half, which the kernel feeds with the reverse-direction state.
    fc_w_p = jnp.zeros((num_dir, H, Op), jnp.float32)
    for blk in range(num_dir):
        fc_w_p = fc_w_p.at[blk, :, :output_size].set(fc_w[blk * H:(blk + 1) * H])
    fc_b_p = jnp.zeros((1, Op), jnp.float32).at[0, :output_size].set(fc_b)

    return {
        "w_ih0": jnp.stack(w_ih0_dirs).astype(jnp.bfloat16),   # (D, F0p, C4)
        "w_ihr": w_ihr.astype(jnp.bfloat16),                   # (Lr, D, Kr, C4)
        "w_hh": jnp.stack(w_hh_layers).astype(jnp.bfloat16),   # (L, D, H, C4)
        "b": jnp.stack(b_layers),                              # (L, D, 1, C4) f32
        "fc_w": fc_w_p.astype(jnp.bfloat16),                   # (D, H, Op)
        "fc_b": fc_b_p,                                        # (1, Op) f32
    }


# ---------------------------------------------------------------------------
if __name__ == "__main__":
    # x: (seq_len, batch, input_size), PyTorch nn.LSTM default (batch_first=False)
    seq_len, batch = 8, 4
    input_size, hidden_size, num_layers, output_size = 16, 32, 2, 8
    bidirectional = True

    key = jax.random.PRNGKey(0)
    x = jax.random.normal(jax.random.fold_in(key, 1000),
                          (seq_len, batch, input_size), dtype=jnp.float32)
    params = make_params(key, input_size, hidden_size, num_layers,
                         output_size, bidirectional)

    out = lstm_model_forward(x, params,
                             hidden_size=hidden_size,
                             num_layers=num_layers,
                             bidirectional=bidirectional,
                             output_size=output_size)
    out = jax.block_until_ready(out)
    assert out.shape == (batch, output_size), out.shape
    print("KERNEL_OK")
</pallas_src>

<mosaic_0001>
module attributes {stable_mosaic.version = 11 : i64} {
  func.func @fused_lstm_fc_kernel(%arg0: i32, %arg1: memref<64x128xbf16, #tpu.memory_space<any>>, %arg2: memref<2x128x128xbf16, #tpu.memory_space<any>>, %arg3: memref<1x2x64x128xbf16, #tpu.memory_space<any>>, %arg4: memref<2x2x32x128xbf16, #tpu.memory_space<any>>, %arg5: memref<2x2x1x128xf32, #tpu.memory_space<vmem>>, %arg6: memref<2x32x128xbf16, #tpu.memory_space<any>>, %arg7: memref<1x128xf32, #tpu.memory_space<vmem>>, %arg8: memref<8x128xf32, #tpu.memory_space<vmem>>, %arg9: memref<64x128xbf16, #tpu.memory_space<vmem>>, %arg10: memref<2x128x128xbf16, #tpu.memory_space<vmem>>, %arg11: memref<1x2x64x128xbf16, #tpu.memory_space<vmem>>, %arg12: memref<2x2x32x128xbf16, #tpu.memory_space<vmem>>, %arg13: memref<2x32x128xbf16, #tpu.memory_space<vmem>>, %arg14: memref<64x64xbf16, #tpu.memory_space<vmem>>, %arg15: memref<2x64x128xf32, #tpu.memory_space<vmem>>, %arg16: memref<5x!tpu.dma_semaphore, #tpu.memory_space<semaphore_mem>>) attributes {dimension_semantics = [#tpu.dimension_semantics<arbitrary>], iteration_bounds = array<i64: 1>, scalar_prefetch = 0 : i64, scratch_operands = 8 : i64, tpu.core_type = #tpu.core_type<tc>, window_params = [{}, {}, {}, {}, {pipeline_mode = #tpu.pipeline_mode<synchronous>, transform_indices = @transform_4, window_bounds = array<i64: 2, 2, 1, 128>}, {}, {pipeline_mode = #tpu.pipeline_mode<synchronous>, transform_indices = @transform_6, window_bounds = array<i64: 1, 128>}, {pipeline_mode = #tpu.pipeline_mode<synchronous>, transform_indices = @transform_7, window_bounds = array<i64: 8, 128>}]} {
    %c0_i32 = arith.constant 0 : i32
    %0 = tpu.memref_slice %arg16[%c0_i32] : memref<5x!tpu.dma_semaphore, #tpu.memory_space<semaphore_mem>> -> memref<1x!tpu.dma_semaphore, #tpu.memory_space<semaphore_mem>>
    %1 = tpu.memref_squeeze %0 : memref<1x!tpu.dma_semaphore, #tpu.memory_space<semaphore_mem>> -> memref<!tpu.dma_semaphore, #tpu.memory_space<semaphore_mem>>
    tpu.enqueue_dma source(%arg1 : memref<64x128xbf16, #tpu.memory_space<any>>) target(%arg9 : memref<64x128xbf16, #tpu.memory_space<vmem>>) target_semaphore(%1 : memref<!tpu.dma_semaphore, #tpu.memory_space<semaphore_mem>>)
    %c1_i32 = arith.constant 1 : i32
    %2 = tpu.memref_slice %arg16[%c1_i32] : memref<5x!tpu.dma_semaphore, #tpu.memory_space<semaphore_mem>> -> memref<1x!tpu.dma_semaphore, #tpu.memory_space<semaphore_mem>>
    %3 = tpu.memref_squeeze %2 : memref<1x!tpu.dma_semaphore, #tpu.memory_space<semaphore_mem>> -> memref<!tpu.dma_semaphore, #tpu.memory_space<semaphore_mem>>
    tpu.enqueue_dma source(%arg2 : memref<2x128x128xbf16, #tpu.memory_space<any>>) target(%arg10 : memref<2x128x128xbf16, #tpu.memory_space<vmem>>) target_semaphore(%3 : memref<!tpu.dma_semaphore, #tpu.memory_space<semaphore_mem>>)
    %c2_i32 = arith.constant 2 : i32
    %4 = tpu.memref_slice %arg16[%c2_i32] : memref<5x!tpu.dma_semaphore, #tpu.memory_space<semaphore_mem>> -> memref<1x!tpu.dma_semaphore, #tpu.memory_space<semaphore_mem>>
    %5 = tpu.memref_squeeze %4 : memref<1x!tpu.dma_semaphore, #tpu.memory_space<semaphore_mem>> -> memref<!tpu.dma_semaphore, #tpu.memory_space<semaphore_mem>>
    tpu.enqueue_dma source(%arg4 : memref<2x2x32x128xbf16, #tpu.memory_space<any>>) target(%arg12 : memref<2x2x32x128xbf16, #tpu.memory_space<vmem>>) target_semaphore(%5 : memref<!tpu.dma_semaphore, #tpu.memory_space<semaphore_mem>>)
    %c3_i32 = arith.constant 3 : i32
    %6 = tpu.memref_slice %arg16[%c3_i32] : memref<5x!tpu.dma_semaphore, #tpu.memory_space<semaphore_mem>> -> memref<1x!tpu.dma_semaphore, #tpu.memory_space<semaphore_mem>>
    %7 = tpu.memref_squeeze %6 : memref<1x!tpu.dma_semaphore, #tpu.memory_space<semaphore_mem>> -> memref<!tpu.dma_semaphore, #tpu.memory_space<semaphore_mem>>
    tpu.enqueue_dma source(%arg6 : memref<2x32x128xbf16, #tpu.memory_space<any>>) target(%arg13 : memref<2x32x128xbf16, #tpu.memory_space<vmem>>) target_semaphore(%7 : memref<!tpu.dma_semaphore, #tpu.memory_space<semaphore_mem>>)
    %c4_i32 = arith.constant 4 : i32
    %8 = tpu.memref_slice %arg16[%c4_i32] : memref<5x!tpu.dma_semaphore, #tpu.memory_space<semaphore_mem>> -> memref<1x!tpu.dma_semaphore, #tpu.memory_space<semaphore_mem>>
    %9 = tpu.memref_squeeze %8 : memref<1x!tpu.dma_semaphore, #tpu.memory_space<semaphore_mem>> -> memref<!tpu.dma_semaphore, #tpu.memory_space<semaphore_mem>>
    tpu.enqueue_dma source(%arg3 : memref<1x2x64x128xbf16, #tpu.memory_space<any>>) target(%arg11 : memref<1x2x64x128xbf16, #tpu.memory_space<vmem>>) target_semaphore(%9 : memref<!tpu.dma_semaphore, #tpu.memory_space<semaphore_mem>>)
    %c0_i32_0 = arith.constant 0 : i32
    %10 = tpu.memref_slice %arg16[%c0_i32_0] : memref<5x!tpu.dma_semaphore, #tpu.memory_space<semaphore_mem>> -> memref<1x!tpu.dma_semaphore, #tpu.memory_space<semaphore_mem>>
    %11 = tpu.memref_squeeze %10 : memref<1x!tpu.dma_semaphore, #tpu.memory_space<semaphore_mem>> -> memref<!tpu.dma_semaphore, #tpu.memory_space<semaphore_mem>>
    tpu.wait_dma2 semaphore(%11 : memref<!tpu.dma_semaphore, #tpu.memory_space<semaphore_mem>>) src(%arg1 : memref<64x128xbf16, #tpu.memory_space<any>>) dst(%arg9 : memref<64x128xbf16, #tpu.memory_space<vmem>>)
    %c1_i32_1 = arith.constant 1 : i32
    %12 = tpu.memref_slice %arg16[%c1_i32_1] : memref<5x!tpu.dma_semaphore, #tpu.memory_space<semaphore_mem>> -> memref<1x!tpu.dma_semaphore, #tpu.memory_space<semaphore_mem>>
    %13 = tpu.memref_squeeze %12 : memref<1x!tpu.dma_semaphore, #tpu.memory_space<semaphore_mem>> -> memref<!tpu.dma_semaphore, #tpu.memory_space<semaphore_mem>>
    tpu.wait_dma2 semaphore(%13 : memref<!tpu.dma_semaphore, #tpu.memory_space<semaphore_mem>>) src(%arg2 : memref<2x128x128xbf16, #tpu.memory_space<any>>) dst(%arg10 : memref<2x128x128xbf16, #tpu.memory_space<vmem>>)
    %c2_i32_2 = arith.constant 2 : i32
    %14 = tpu.memref_slice %arg16[%c2_i32_2] : memref<5x!tpu.dma_semaphore, #tpu.memory_space<semaphore_mem>> -> memref<1x!tpu.dma_semaphore, #tpu.memory_space<semaphore_mem>>
    %15 = tpu.memref_squeeze %14 : memref<1x!tpu.dma_semaphore, #tpu.memory_space<semaphore_mem>> -> memref<!tpu.dma_semaphore, #tpu.memory_space<semaphore_mem>>
    tpu.wait_dma2 semaphore(%15 : memref<!tpu.dma_semaphore, #tpu.memory_space<semaphore_mem>>) src(%arg4 : memref<2x2x32x128xbf16, #tpu.memory_space<any>>) dst(%arg12 : memref<2x2x32x128xbf16, #tpu.memory_space<vmem>>)
    %c3_i32_3 = arith.constant 3 : i32
    %16 = tpu.memref_slice %arg16[%c3_i32_3] : memref<5x!tpu.dma_semaphore, #tpu.memory_space<semaphore_mem>> -> memref<1x!tpu.dma_semaphore, #tpu.memory_space<semaphore_mem>>
    %17 = tpu.memref_squeeze %16 : memref<1x!tpu.dma_semaphore, #tpu.memory_space<semaphore_mem>> -> memref<!tpu.dma_semaphore, #tpu.memory_space<semaphore_mem>>
    tpu.wait_dma2 semaphore(%17 : memref<!tpu.dma_semaphore, #tpu.memory_space<semaphore_mem>>) src(%arg6 : memref<2x32x128xbf16, #tpu.memory_space<any>>) dst(%arg13 : memref<2x32x128xbf16, #tpu.memory_space<vmem>>)
    %c4_i32_4 = arith.constant 4 : i32
    %18 = tpu.memref_slice %arg16[%c4_i32_4] : memref<5x!tpu.dma_semaphore, #tpu.memory_space<semaphore_mem>> -> memref<1x!tpu.dma_semaphore, #tpu.memory_space<semaphore_mem>>
    %19 = tpu.memref_squeeze %18 : memref<1x!tpu.dma_semaphore, #tpu.memory_space<semaphore_mem>> -> memref<!tpu.dma_semaphore, #tpu.memory_space<semaphore_mem>>
    tpu.wait_dma2 semaphore(%19 : memref<!tpu.dma_semaphore, #tpu.memory_space<semaphore_mem>>) src(%arg3 : memref<1x2x64x128xbf16, #tpu.memory_space<any>>) dst(%arg11 : memref<1x2x64x128xbf16, #tpu.memory_space<vmem>>)
    %c0 = arith.constant 0 : index
    %c0_5 = arith.constant 0 : index
    %20 = vector.load %arg9[%c0, %c0_5] : memref<64x128xbf16, #tpu.memory_space<vmem>>, vector<64x128xbf16>
    %c0_6 = arith.constant 0 : index
    %c0_7 = arith.constant 0 : index
    %c0_8 = arith.constant 0 : index
    %21 = vector.load %arg10[%c0_6, %c0_7, %c0_8] : memref<2x128x128xbf16, #tpu.memory_space<vmem>>, vector<1x128x128xbf16>
    %22 = vector.shape_cast %21 : vector<1x128x128xbf16> to vector<128x128xbf16>
    %cst = arith.constant dense<0.000000e+00> : vector<64x128xf32>
    %23 = tpu.matmul %20, %22, %cst {dimension_numbers = #tpu.dot_dimension_numbers<[1], [0], [0], [1], [0, 0, 1, 1], [], []>} : vector<64x128xbf16>, vector<128x128xbf16>, vector<64x128xf32> -> vector<64x128xf32>
    %c0_9 = arith.constant 0 : index
    %c0_10 = arith.constant 0 : index
    %c0_11 = arith.constant 0 : index
    %c0_12 = arith.constant 0 : index
    %24 = vector.load %arg5[%c0_9, %c0_10, %c0_11, %c0_12] : memref<2x2x1x128xf32, #tpu.memory_space<vmem>>, vector<1x1x1x128xf32>
    %25 = vector.shape_cast %24 : vector<1x1x1x128xf32> to vector<1x128xf32>
    %26 = vector.broadcast %25 : vector<1x128xf32> to vector<64x128xf32>
    %27 = arith.addf %23, %26 : vector<64x128xf32>
    %c0_13 = arith.constant 0 : index
    %c0_14 = arith.constant 0 : index
    %c0_15 = arith.constant 0 : index
    %28 = vector.load %arg15[%c0_13, %c0_14, %c0_15] : memref<2x64x128xf32, #tpu.memory_space<vmem>>, vector<1x64x128xf32>
    %29 = vector.shape_cast %28 : vector<1x64x128xf32> to vector<64x128xf32>
    %30 = vector.shape_cast %27 : vector<64x128xf32> to vector<1x64x128xf32>
    tpu.vector_store %arg15[%c0_13, %c0_14, %c0_15], %30 {strides = array<i32>} : memref<2x64x128xf32, #tpu.memory_space<vmem>>, vector<1x64x128xf32>,
    %c1 = arith.constant 1 : index
    %c0_16 = arith.constant 0 : index
    %c0_17 = arith.constant 0 : index
    %31 = vector.load %arg10[%c1, %c0_16, %c0_17] : memref<2x128x128xbf16, #tpu.memory_space<vmem>>, vector<1x128x128xbf16>
    %32 = vector.shape_cast %31 : vector<1x128x128xbf16> to vector<128x128xbf16>
    %cst_18 = arith.constant dense<0.000000e+00> : vector<64x128xf32>
    %33 = tpu.matmul %20, %32, %cst_18 {dimension_numbers = #tpu.dot_dimension_numbers<[1], [0], [0], [1], [0, 0, 1, 1], [], []>} : vector<64x128xbf16>, vector<128x128xbf16>, vector<64x128xf32> -> vector<64x128xf32>
    %c0_19 = arith.constant 0 : index
    %c1_20 = arith.constant 1 : index
    %c0_21 = arith.constant 0 : index
    %c0_22 = arith.constant 0 : index
    %34 = vector.load %arg5[%c0_19, %c1_20, %c0_21, %c0_22] : memref<2x2x1x128xf32, #tpu.memory_space<vmem>>, vector<1x1x1x128xf32>
    %35 = vector.shape_cast %34 : vector<1x1x1x128xf32> to vector<1x128xf32>
    %36 = vector.broadcast %35 : vector<1x128xf32> to vector<64x128xf32>
    %37 = arith.addf %33, %36 : vector<64x128xf32>
    %c1_23 = arith.constant 1 : index
    %c0_24 = arith.constant 0 : index
    %c0_25 = arith.constant 0 : index
    %38 = vector.load %arg15[%c1_23, %c0_24, %c0_25] : memref<2x64x128xf32, #tpu.memory_space<vmem>>, vector<1x64x128xf32>
    %39 = vector.shape_cast %38 : vector<1x64x128xf32> to vector<64x128xf32>
    %40 = vector.shape_cast %37 : vector<64x128xf32> to vector<1x64x128xf32>
    tpu.vector_store %arg15[%c1_23, %c0_24, %c0_25], %40 {strides = array<i32>} : memref<2x64x128xf32, #tpu.memory_space<vmem>>, vector<1x64x128xf32>,
    %cst_26 = arith.constant 0.000000e+00 : f32
    %41 = vector.broadcast %cst_26 : f32 to vector<8x32xf32>
    %c0_27 = arith.constant 0 : index
    %c0_28 = arith.constant 0 : index
    %c0_29 = arith.constant 0 : index
    %42 = vector.load %arg15[%c0_27, %c0_28, %c0_29] : memref<2x64x128xf32, #tpu.memory_space<vmem>>, vector<1x8x128xf32>
    %43 = vector.shape_cast %42 : vector<1x8x128xf32> to vector<8x128xf32>
    %44 = arith.truncf %41 : vector<8x32xf32> to vector<8x32xbf16>
    %c0_30 = arith.constant 0 : index
    %c0_31 = arith.constant 0 : index
    %c0_32 = arith.constant 0 : index
    %c0_33 = arith.constant 0 : index
    %45 = vector.load %arg12[%c0_30, %c0_31, %c0_32, %c0_33] : memref<2x2x32x128xbf16, #tpu.memory_space<vmem>>, vector<1x1x32x128xbf16>
    %46 = vector.shape_cast %45 : vector<1x1x32x128xbf16> to vector<32x128xbf16>
    %cst_34 = arith.constant dense<0.000000e+00> : vector<8x128xf32>
    %47 = tpu.matmul %44, %46, %cst_34 {dimension_numbers = #tpu.dot_dimension_numbers<[1], [0], [0], [1], [0, 0, 1, 1], [], []>} : vector<8x32xbf16>, vector<32x128xbf16>, vector<8x128xf32> -> vector<8x128xf32>
    %48 = arith.addf %43, %47 : vector<8x128xf32>
    %49 = vector.extract_strided_slice %48 {offsets = [0, 0], sizes = [8, 32], strides = [1, 1]} : vector<8x128xf32> to vector<8x32xf32>
    %50 = arith.negf %49 : vector<8x32xf32>
    %51 = math.exp %50 : vector<8x32xf32>
    %cst_35 = arith.constant 1.000000e+00 : f32
    %52 = vector.broadcast %cst_35 : f32 to vector<8x32xf32>
    %53 = arith.addf %52, %51 : vector<8x32xf32>
    %54 = arith.divf %52, %53 : vector<8x32xf32>
    %55 = vector.extract_strided_slice %48 {offsets = [0, 32], sizes = [8, 32], strides = [1, 1]} : vector<8x128xf32> to vector<8x32xf32>
    %56 = arith.negf %55 : vector<8x32xf32>
    %57 = math.exp %56 : vector<8x32xf32>
    %cst_36 = arith.constant 1.000000e+00 : f32
    %58 = vector.broadcast %cst_36 : f32 to vector<8x32xf32>
    %59 = arith.addf %58, %57 : vector<8x32xf32>
    %60 = arith.divf %58, %59 : vector<8x32xf32>
    %61 = vector.extract_strided_slice %48 {offsets = [0, 64], sizes = [8, 32], strides = [1, 1]} : vector<8x128xf32> to vector<8x32xf32>
    %62 = math.tanh %61 : vector<8x32xf32>
    %63 = vector.extract_strided_slice %48 {offsets = [0, 96], sizes = [8, 32], strides = [1, 1]} : vector<8x128xf32> to vector<8x32xf32>
    %64 = arith.negf %63 : vector<8x32xf32>
    %65 = math.exp %64 : vector<8x32xf32>
    %cst_37 = arith.constant 1.000000e+00 : f32
    %66 = vector.broadcast %cst_37 : f32 to vector<8x32xf32>
    %67 = arith.addf %66, %65 : vector<8x32xf32>
    %68 = arith.divf %66, %67 : vector<8x32xf32>
    %69 = arith.mulf %60, %41 : vector<8x32xf32>
    %70 = arith.mulf %54, %62 : vector<8x32xf32>
    %71 = arith.addf %69, %70 : vector<8x32xf32>
    %72 = math.tanh %71 : vector<8x32xf32>
    %73 = arith.mulf %68, %72 : vector<8x32xf32>
    %74 = arith.truncf %73 : vector<8x32xf32> to vector<8x32xbf16>
    %c0_38 = arith.constant 0 : index
    %c0_39 = arith.constant 0 : index
    %75 = vector.load %arg14[%c0_38, %c0_39] : memref<64x64xbf16, #tpu.memory_space<vmem>>, vector<8x32xbf16>
    tpu.vector_store %arg14[%c0_38, %c0_39], %74 {strides = array<i32>} : memref<64x64xbf16, #tpu.memory_space<vmem>>, vector<8x32xbf16>,
    %c1_40 = arith.constant 1 : index
    %c56 = arith.constant 56 : index
    %c0_41 = arith.constant 0 : index
    %76 = vector.load %arg15[%c1_40, %c56, %c0_41] : memref<2x64x128xf32, #tpu.memory_space<vmem>>, vector<1x8x128xf32>
    %77 = vector.shape_cast %76 : vector<1x8x128xf32> to vector<8x128xf32>
    %78 = arith.truncf %41 : vector<8x32xf32> to vector<8x32xbf16>
    %c0_42 = arith.constant 0 : index
    %c1_43 = arith.constant 1 : index
    %c0_44 = arith.constant 0 : index
    %c0_45 = arith.constant 0 : index
    %79 = vector.load %arg12[%c0_42, %c1_43, %c0_44, %c0_45] : memref<2x2x32x128xbf16, #tpu.memory_space<vmem>>, vector<1x1x32x128xbf16>
    %80 = vector.shape_cast %79 : vector<1x1x32x128xbf16> to vector<32x128xbf16>
    %cst_46 = arith.constant dense<0.000000e+00> : vector<8x128xf32>
    %81 = tpu.matmul %78, %80, %cst_46 {dimension_numbers = #tpu.dot_dimension_numbers<[1], [0], [0], [1], [0, 0, 1, 1], [], []>} : vector<8x32xbf16>, vector<32x128xbf16>, vector<8x128xf32> -> vector<8x128xf32>
    %82 = arith.addf %77, %81 : vector<8x128xf32>
    %83 = vector.extract_strided_slice %82 {offsets = [0, 0], sizes = [8, 32], strides = [1, 1]} : vector<8x128xf32> to vector<8x32xf32>
    %84 = arith.negf %83 : vector<8x32xf32>
    %85 = math.exp %84 : vector<8x32xf32>
    %cst_47 = arith.constant 1.000000e+00 : f32
    %86 = vector.broadcast %cst_47 : f32 to vector<8x32xf32>
    %87 = arith.addf %86, %85 : vector<8x32xf32>
    %88 = arith.divf %86, %87 : vector<8x32xf32>
    %89 = vector.extract_strided_slice %82 {offsets = [0, 32], sizes = [8, 32], strides = [1, 1]} : vector<8x128xf32> to vector<8x32xf32>
    %90 = arith.negf %89 : vector<8x32xf32>
    %91 = math.exp %90 : vector<8x32xf32>
    %cst_48 = arith.constant 1.000000e+00 : f32
    %92 = vector.broadcast %cst_48 : f32 to vector<8x32xf32>
    %93 = arith.addf %92, %91 : vector<8x32xf32>
    %94 = arith.divf %92, %93 : vector<8x32xf32>
    %95 = vector.extract_strided_slice %82 {offsets = [0, 64], sizes = [8, 32], strides = [1, 1]} : vector<8x128xf32> to vector<8x32xf32>
    %96 = math.tanh %95 : vector<8x32xf32>
    %97 = vector.extract_strided_slice %82 {offsets = [0, 96], sizes = [8, 32], strides = [1, 1]} : vector<8x128xf32> to vector<8x32xf32>
    %98 = arith.negf %97 : vector<8x32xf32>
    %99 = math.exp %98 : vector<8x32xf32>
    %cst_49 = arith.constant 1.000000e+00 : f32
    %100 = vector.broadcast %cst_49 : f32 to vector<8x32xf32>
    %101 = arith.addf %100, %99 : vector<8x32xf32>
    %102 = arith.divf %100, %101 : vector<8x32xf32>
    %103 = arith.mulf %94, %41 : vector<8x32xf32>
    %104 = arith.mulf %88, %96 : vector<8x32xf32>
    %105 = arith.addf %103, %104 : vector<8x32xf32>
    %106 = math.tanh %105 : vector<8x32xf32>
    %107 = arith.mulf %102, %106 : vector<8x32xf32>
    %108 = arith.truncf %107 : vector<8x32xf32> to vector<8x32xbf16>
    %c56_50 = arith.constant 56 : index
    %c32 = arith.constant 32 : index
    %109 = vector.load %arg14[%c56_50, %c32] : memref<64x64xbf16, #tpu.memory_space<vmem>>, vector<8x32xbf16>
    tpu.vector_store %arg14[%c56_50, %c32], %108 {strides = array<i32>} : memref<64x64xbf16, #tpu.memory_space<vmem>>, vector<8x32xbf16>,
    %c0_51 = arith.constant 0 : index
    %c8 = arith.constant 8 : index
    %c0_52 = arith.constant 0 : index
    %110 = vector.load %arg15[%c0_51, %c8, %c0_52] : memref<2x64x128xf32, #tpu.memory_space<vmem>>, vector<1x8x128xf32>
    %111 = vector.shape_cast %110 : vector<1x8x128xf32> to vector<8x128xf32>
    %112 = arith.truncf %73 : vector<8x32xf32> to vector<8x32xbf16>
    %c0_53 = arith.constant 0 : index
    %c0_54 = arith.constant 0 : index
    %c0_55 = arith.constant 0 : index
    %c0_56 = arith.constant 0 : index
    %113 = vector.load %arg12[%c0_53, %c0_54, %c0_55, %c0_56] : memref<2x2x32x128xbf16, #tpu.memory_space<vmem>>, vector<1x1x32x128xbf16>
    %114 = vector.shape_cast %113 : vector<1x1x32x128xbf16> to vector<32x128xbf16>
    %cst_57 = arith.constant dense<0.000000e+00> : vector<8x128xf32>
    %115 = tpu.matmul %112, %114, %cst_57 {dimension_numbers = #tpu.dot_dimension_numbers<[1], [0], [0], [1], [0, 0, 1, 1], [], []>} : vector<8x32xbf16>, vector<32x128xbf16>, vector<8x128xf32> -> vector<8x128xf32>
    %116 = arith.addf %111, %115 : vector<8x128xf32>
    %117 = vector.extract_strided_slice %116 {offsets = [0, 0], sizes = [8, 32], strides = [1, 1]} : vector<8x128xf32> to vector<8x32xf32>
    %118 = arith.negf %117 : vector<8x32xf32>
    %119 = math.exp %118 : vector<8x32xf32>
    %cst_58 = arith.constant 1.000000e+00 : f32
    %120 = vector.broadcast %cst_58 : f32 to vector<8x32xf32>
    %121 = arith.addf %120, %119 : vector<8x32xf32>
    %122 = arith.divf %120, %121 : vector<8x32xf32>
    %123 = vector.extract_strided_slice %116 {offsets = [0, 32], sizes = [8, 32], strides = [1, 1]} : vector<8x128xf32> to vector<8x32xf32>
    %124 = arith.negf %123 : vector<8x32xf32>
    %125 = math.exp %124 : vector<8x32xf32>
    %cst_59 = arith.constant 1.000000e+00 : f32
    %126 = vector.broadcast %cst_59 : f32 to vector<8x32xf32>
    %127 = arith.addf %126, %125 : vector<8x32xf32>
    %128 = arith.divf %126, %127 : vector<8x32xf32>
    %129 = vector.extract_strided_slice %116 {offsets = [0, 64], sizes = [8, 32], strides = [1, 1]} : vector<8x128xf32> to vector<8x32xf32>
    %130 = math.tanh %129 : vector<8x32xf32>
    %131 = vector.extract_strided_slice %116 {offsets = [0, 96], sizes = [8, 32], strides = [1, 1]} : vector<8x128xf32> to vector<8x32xf32>
    %132 = arith.negf %131 : vector<8x32xf32>
    %133 = math.exp %132 : vector<8x32xf32>
    %cst_60 = arith.constant 1.000000e+00 : f32
    %134 = vector.broadcast %cst_60 : f32 to vector<8x32xf32>
    %135 = arith.addf %134, %133 : vector<8x32xf32>
    %136 = arith.divf %134, %135 : vector<8x32xf32>
    %137 = arith.mulf %128, %71 : vector<8x32xf32>
    %138 = arith.mulf %122, %130 : vector<8x32xf32>
    %139 = arith.addf %137, %138 : vector<8x32xf32>
    %140 = math.tanh %139 : vector<8x32xf32>
    %141 = arith.mulf %136, %140 : vector<8x32xf32>
    %142 = arith.truncf %141 : vector<8x32xf32> to vector<8x32xbf16>
    %c8_61 = arith.constant 8 : index
    %c0_62 = arith.constant 0 : index
    %143 = vector.load %arg14[%c8_61, %c0_62] : memref<64x64xbf16, #tpu.memory_space<vmem>>, vector<8x32xbf16>
    tpu.vector_store %arg14[%c8_61, %c0_62], %142 {strides = array<i32>} : memref<64x64xbf16, #tpu.memory_space<vmem>>, vector<8x32xbf16>,
    %c1_63 = arith.constant 1 : index
    %c48 = arith.constant 48 : index
    %c0_64 = arith.constant 0 : index
    %144 = vector.load %arg15[%c1_63, %c48, %c0_64] : memref<2x64x128xf32, #tpu.memory_space<vmem>>, vector<1x8x128xf32>
    %145 = vector.shape_cast %144 : vector<1x8x128xf32> to vector<8x128xf32>
    %146 = arith.truncf %107 : vector<8x32xf32> to vector<8x32xbf16>
    %c0_65 = arith.constant 0 : index
    %c1_66 = arith.constant 1 : index
    %c0_67 = arith.constant 0 : index
    %c0_68 = arith.constant 0 : index
    %147 = vector.load %arg12[%c0_65, %c1_66, %c0_67, %c0_68] : memref<2x2x32x128xbf16, #tpu.memory_space<vmem>>, vector<1x1x32x128xbf16>
    %148 = vector.shape_cast %147 : vector<1x1x32x128xbf16> to vector<32x128xbf16>
    %cst_69 = arith.constant dense<0.000000e+00> : vector<8x128xf32>
    %149 = tpu.matmul %146, %148, %cst_69 {dimension_numbers = #tpu.dot_dimension_numbers<[1], [0], [0], [1], [0, 0, 1, 1], [], []>} : vector<8x32xbf16>, vector<32x128xbf16>, vector<8x128xf32> -> vector<8x128xf32>
    %150 = arith.addf %145, %149 : vector<8x128xf32>
    %151 = vector.extract_strided_slice %150 {offsets = [0, 0], sizes = [8, 32], strides = [1, 1]} : vector<8x128xf32> to vector<8x32xf32>
    %152 = arith.negf %151 : vector<8x32xf32>
    %153 = math.exp %152 : vector<8x32xf32>
    %cst_70 = arith.constant 1.000000e+00 : f32
    %154 = vector.broadcast %cst_70 : f32 to vector<8x32xf32>
    %155 = arith.addf %154, %153 : vector<8x32xf32>
    %156 = arith.divf %154, %155 : vector<8x32xf32>
    %157 = vector.extract_strided_slice %150 {offsets = [0, 32], sizes = [8, 32], strides = [1, 1]} : vector<8x128xf32> to vector<8x32xf32>
    %158 = arith.negf %157 : vector<8x32xf32>
    %159 = math.exp %158 : vector<8x32xf32>
    %cst_71 = arith.constant 1.000000e+00 : f32
    %160 = vector.broadcast %cst_71 : f32 to vector<8x32xf32>
    %161 = arith.addf %160, %159 : vector<8x32xf32>
    %162 = arith.divf %160, %161 : vector<8x32xf32>
    %163 = vector.extract_strided_slice %150 {offsets = [0, 64], sizes = [8, 32], strides = [1, 1]} : vector<8x128xf32> to vector<8x32xf32>
    %164 = math.tanh %163 : vector<8x32xf32>
    %165 = vector.extract_strided_slice %150 {offsets = [0, 96], sizes = [8, 32], strides = [1, 1]} : vector<8x128xf32> to vector<8x32xf32>
    %166 = arith.negf %165 : vector<8x32xf32>
    %167 = math.exp %166 : vector<8x32xf32>
    %cst_72 = arith.constant 1.000000e+00 : f32
    %168 = vector.broadcast %cst_72 : f32 to vector<8x32xf32>
    %169 = arith.addf %168, %167 : vector<8x32xf32>
    %170 = arith.divf %168, %169 : vector<8x32xf32>
    %171 = arith.mulf %162, %105 : vector<8x32xf32>
    %172 = arith.mulf %156, %164 : vector<8x32xf32>
    %173 = arith.addf %171, %172 : vector<8x32xf32>
    %174 = math.tanh %173 : vector<8x32xf32>
    %175 = arith.mulf %170, %174 : vector<8x32xf32>
    %176 = arith.truncf %175 : vector<8x32xf32> to vector<8x32xbf16>
    %c48_73 = arith.constant 48 : index
    %c32_74 = arith.constant 32 : index
    %177 = vector.load %arg14[%c48_73, %c32_74] : memref<64x64xbf16, #tpu.memory_space<vmem>>, vector<8x32xbf16>
    tpu.vector_store %arg14[%c48_73, %c32_74], %176 {strides = array<i32>} : memref<64x64xbf16, #tpu.memory_space<vmem>>, vector<8x32xbf16>,
    %c0_75 = arith.constant 0 : index
    %c16 = arith.constant 16 : index
    %c0_76 = arith.constant 0 : index
    %178 = vector.load %arg15[%c0_75, %c16, %c0_76] : memref<2x64x128xf32, #tpu.memory_space<vmem>>, vector<1x8x128xf32>
    %179 = vector.shape_cast %178 : vector<1x8x128xf32> to vector<8x128xf32>
    %180 = arith.truncf %141 : vector<8x32xf32> to vector<8x32xbf16>
    %c0_77 = arith.constant 0 : index
    %c0_78 = arith.constant 0 : index
    %c0_79 = arith.constant 0 : index
    %c0_80 = arith.constant 0 : index
    %181 = vector.load %arg12[%c0_77, %c0_78, %c0_79, %c0_80] : memref<2x2x32x128xbf16, #tpu.memory_space<vmem>>, vector<1x1x32x128xbf16>
    %182 = vector.shape_cast %181 : vector<1x1x32x128xbf16> to vector<32x128xbf16>
    %cst_81 = arith.constant dense<0.000000e+00> : vector<8x128xf32>
    %183 = tpu.matmul %180, %182, %cst_81 {dimension_numbers = #tpu.dot_dimension_numbers<[1], [0], [0], [1], [0, 0, 1, 1], [], []>} : vector<8x32xbf16>, vector<32x128xbf16>, vector<8x128xf32> -> vector<8x128xf32>
    %184 = arith.addf %179, %183 : vector<8x128xf32>
    %185 = vector.extract_strided_slice %184 {offsets = [0, 0], sizes = [8, 32], strides = [1, 1]} : vector<8x128xf32> to vector<8x32xf32>
    %186 = arith.negf %185 : vector<8x32xf32>
    %187 = math.exp %186 : vector<8x32xf32>
    %cst_82 = arith.constant 1.000000e+00 : f32
    %188 = vector.broadcast %cst_82 : f32 to vector<8x32xf32>
    %189 = arith.addf %188, %187 : vector<8x32xf32>
    %190 = arith.divf %188, %189 : vector<8x32xf32>
    %191 = vector.extract_strided_slice %184 {offsets = [0, 32], sizes = [8, 32], strides = [1, 1]} : vector<8x128xf32> to vector<8x32xf32>
    %192 = arith.negf %191 : vector<8x32xf32>
    %193 = math.exp %192 : vector<8x32xf32>
    %cst_83 = arith.constant 1.000000e+00 : f32
    %194 = vector.broadcast %cst_83 : f32 to vector<8x32xf32>
    %195 = arith.addf %194, %193 : vector<8x32xf32>
    %196 = arith.divf %194, %195 : vector<8x32xf32>
    %197 = vector.extract_strided_slice %184 {offsets = [0, 64], sizes = [8, 32], strides = [1, 1]} : vector<8x128xf32> to vector<8x32xf32>
    %198 = math.tanh %197 : vector<8x32xf32>
    %199 = vector.extract_strided_slice %184 {offsets = [0, 96], sizes = [8, 32], strides = [1, 1]} : vector<8x128xf32> to vector<8x32xf32>
    %200 = arith.negf %199 : vector<8x32xf32>
    %201 = math.exp %200 : vector<8x32xf32>
    %cst_84 = arith.constant 1.000000e+00 : f32
    %202 = vector.broadcast %cst_84 : f32 to vector<8x32xf32>
    %203 = arith.addf %202, %201 : vector<8x32xf32>
    %204 = arith.divf %202, %203 : vector<8x32xf32>
    %205 = arith.mulf %196, %139 : vector<8x32xf32>
    %206 = arith.mulf %190, %198 : vector<8x32xf32>
    %207 = arith.addf %205, %206 : vector<8x32xf32>
    %208 = math.tanh %207 : vector<8x32xf32>
    %209 = arith.mulf %204, %208 : vector<8x32xf32>
    %210 = arith.truncf %209 : vector<8x32xf32> to vector<8x32xbf16>
    %c16_85 = arith.constant 16 : index
    %c0_86 = arith.constant 0 : index
    %211 = vector.load %arg14[%c16_85, %c0_86] : memref<64x64xbf16, #tpu.memory_space<vmem>>, vector<8x32xbf16>
    tpu.vector_store %arg14[%c16_85, %c0_86], %210 {strides = array<i32>} : memref<64x64xbf16, #tpu.memory_space<vmem>>, vector<8x32xbf16>,
    %c1_87 = arith.constant 1 : index
    %c40 = arith.constant 40 : index
    %c0_88 = arith.constant 0 : index
    %212 = vector.load %arg15[%c1_87, %c40, %c0_88] : memref<2x64x128xf32, #tpu.memory_space<vmem>>, vector<1x8x128xf32>
    %213 = vector.shape_cast %212 : vector<1x8x128xf32> to vector<8x128xf32>
    %214 = arith.truncf %175 : vector<8x32xf32> to vector<8x32xbf16>
    %c0_89 = arith.constant 0 : index
    %c1_90 = arith.constant 1 : index
    %c0_91 = arith.constant 0 : index
    %c0_92 = arith.constant 0 : index
    %215 = vector.load %arg12[%c0_89, %c1_90, %c0_91, %c0_92] : memref<2x2x32x128xbf16, #tpu.memory_space<vmem>>, vector<1x1x32x128xbf16>
    %216 = vector.shape_cast %215 : vector<1x1x32x128xbf16> to vector<32x128xbf16>
    %cst_93 = arith.constant dense<0.000000e+00> : vector<8x128xf32>
    %217 = tpu.matmul %214, %216, %cst_93 {dimension_numbers = #tpu.dot_dimension_numbers<[1], [0], [0], [1], [0, 0, 1, 1], [], []>} : vector<8x32xbf16>, vector<32x128xbf16>, vector<8x128xf32> -> vector<8x128xf32>
    %218 = arith.addf %213, %217 : vector<8x128xf32>
    %219 = vector.extract_strided_slice %218 {offsets = [0, 0], sizes = [8, 32], strides = [1, 1]} : vector<8x128xf32> to vector<8x32xf32>
    %220 = arith.negf %219 : vector<8x32xf32>
    %221 = math.exp %220 : vector<8x32xf32>
    %cst_94 = arith.constant 1.000000e+00 : f32
    %222 = vector.broadcast %cst_94 : f32 to vector<8x32xf32>
    %223 = arith.addf %222, %221 : vector<8x32xf32>
    %224 = arith.divf %222, %223 : vector<8x32xf32>
    %225 = vector.extract_strided_slice %218 {offsets = [0, 32], sizes = [8, 32], strides = [1, 1]} : vector<8x128xf32> to vector<8x32xf32>
    %226 = arith.negf %225 : vector<8x32xf32>
    %227 = math.exp %226 : vector<8x32xf32>
    %cst_95 = arith.constant 1.000000e+00 : f32
    %228 = vector.broadcast %cst_95 : f32 to vector<8x32xf32>
    %229 = arith.addf %228, %227 : vector<8x32xf32>
    %230 = arith.divf %228, %229 : vector<8x32xf32>
    %231 = vector.extract_strided_slice %218 {offsets = [0, 64], sizes = [8, 32], strides = [1, 1]} : vector<8x128xf32> to vector<8x32xf32>
    %232 = math.tanh %231 : vector<8x32xf32>
    %233 = vector.extract_strided_slice %218 {offsets = [0, 96], sizes = [8, 32], strides = [1, 1]} : vector<8x128xf32> to vector<8x32xf32>
    %234 = arith.negf %233 : vector<8x32xf32>
    %235 = math.exp %234 : vector<8x32xf32>
    %cst_96 = arith.constant 1.000000e+00 : f32
    %236 = vector.broadcast %cst_96 : f32 to vector<8x32xf32>
    %237 = arith.addf %236, %235 : vector<8x32xf32>
    %238 = arith.divf %236, %237 : vector<8x32xf32>
    %239 = arith.mulf %230, %173 : vector<8x32xf32>
    %240 = arith.mulf %224, %232 : vector<8x32xf32>
    %241 = arith.addf %239, %240 : vector<8x32xf32>
    %242 = math.tanh %241 : vector<8x32xf32>
    %243 = arith.mulf %238, %242 : vector<8x32xf32>
    %244 = arith.truncf %243 : vector<8x32xf32> to vector<8x32xbf16>
    %c40_97 = arith.constant 40 : index
    %c32_98 = arith.constant 32 : index
    %245 = vector.load %arg14[%c40_97, %c32_98] : memref<64x64xbf16, #tpu.memory_space<vmem>>, vector<8x32xbf16>
    tpu.vector_store %arg14[%c40_97, %c32_98], %244 {strides = array<i32>} : memref<64x64xbf16, #tpu.memory_space<vmem>>, vector<8x32xbf16>,
    %c0_99 = arith.constant 0 : index
    %c24 = arith.constant 24 : index
    %c0_100 = arith.constant 0 : index
    %246 = vector.load %arg15[%c0_99, %c24, %c0_100] : memref<2x64x128xf32, #tpu.memory_space<vmem>>, vector<1x8x128xf32>
    %247 = vector.shape_cast %246 : vector<1x8x128xf32> to vector<8x128xf32>
    %248 = arith.truncf %209 : vector<8x32xf32> to vector<8x32xbf16>
    %c0_101 = arith.constant 0 : index
    %c0_102 = arith.constant 0 : index
    %c0_103 = arith.constant 0 : index
    %c0_104 = arith.constant 0 : index
    %249 = vector.load %arg12[%c0_101, %c0_102, %c0_103, %c0_104] : memref<2x2x32x128xbf16, #tpu.memory_space<vmem>>, vector<1x1x32x128xbf16>
    %250 = vector.shape_cast %249 : vector<1x1x32x128xbf16> to vector<32x128xbf16>
    %cst_105 = arith.constant dense<0.000000e+00> : vector<8x128xf32>
    %251 = tpu.matmul %248, %250, %cst_105 {dimension_numbers = #tpu.dot_dimension_numbers<[1], [0], [0], [1], [0, 0, 1, 1], [], []>} : vector<8x32xbf16>, vector<32x128xbf16>, vector<8x128xf32> -> vector<8x128xf32>
    %252 = arith.addf %247, %251 : vector<8x128xf32>
    %253 = vector.extract_strided_slice %252 {offsets = [0, 0], sizes = [8, 32], strides = [1, 1]} : vector<8x128xf32> to vector<8x32xf32>
    %254 = arith.negf %253 : vector<8x32xf32>
    %255 = math.exp %254 : vector<8x32xf32>
    %cst_106 = arith.constant 1.000000e+00 : f32
    %256 = vector.broadcast %cst_106 : f32 to vector<8x32xf32>
    %257 = arith.addf %256, %255 : vector<8x32xf32>
    %258 = arith.divf %256, %257 : vector<8x32xf32>
    %259 = vector.extract_strided_slice %252 {offsets = [0, 32], sizes = [8, 32], strides = [1, 1]} : vector<8x128xf32> to vector<8x32xf32>
    %260 = arith.negf %259 : vector<8x32xf32>
    %261 = math.exp %260 : vector<8x32xf32>
    %cst_107 = arith.constant 1.000000e+00 : f32
    %262 = vector.broadcast %cst_107 : f32 to vector<8x32xf32>
    %263 = arith.addf %262, %261 : vector<8x32xf32>
    %264 = arith.divf %262, %263 : vector<8x32xf32>
    %265 = vector.extract_strided_slice %252 {offsets = [0, 64], sizes = [8, 32], strides = [1, 1]} : vector<8x128xf32> to vector<8x32xf32>
    %266 = math.tanh %265 : vector<8x32xf32>
    %267 = vector.extract_strided_slice %252 {offsets = [0, 96], sizes = [8, 32], strides = [1, 1]} : vector<8x128xf32> to vector<8x32xf32>
    %268 = arith.negf %267 : vector<8x32xf32>
    %269 = math.exp %268 : vector<8x32xf32>
    %cst_108 = arith.constant 1.000000e+00 : f32
    %270 = vector.broadcast %cst_108 : f32 to vector<8x32xf32>
    %271 = arith.addf %270, %269 : vector<8x32xf32>
    %272 = arith.divf %270, %271 : vector<8x32xf32>
    %273 = arith.mulf %264, %207 : vector<8x32xf32>
    %274 = arith.mulf %258, %266 : vector<8x32xf32>
    %275 = arith.addf %273, %274 : vector<8x32xf32>
    %276 = math.tanh %275 : vector<8x32xf32>
    %277 = arith.mulf %272, %276 : vector<8x32xf32>
    %278 = arith.truncf %277 : vector<8x32xf32> to vector<8x32xbf16>
    %c24_109 = arith.constant 24 : index
    %c0_110 = arith.constant 0 : index
    %279 = vector.load %arg14[%c24_109, %c0_110] : memref<64x64xbf16, #tpu.memory_space<vmem>>, vector<8x32xbf16>
    tpu.vector_store %arg14[%c24_109, %c0_110], %278 {strides = array<i32>} : memref<64x64xbf16, #tpu.memory_space<vmem>>, vector<8x32xbf16>,
    %c1_111 = arith.constant 1 : index
    %c32_112 = arith.constant 32 : index
    %c0_113 = arith.constant 0 : index
    %280 = vector.load %arg15[%c1_111, %c32_112, %c0_113] : memref<2x64x128xf32, #tpu.memory_space<vmem>>, vector<1x8x128xf32>
    %281 = vector.shape_cast %280 : vector<1x8x128xf32> to vector<8x128xf32>
    %282 = arith.truncf %243 : vector<8x32xf32> to vector<8x32xbf16>
    %c0_114 = arith.constant 0 : index
    %c1_115 = arith.constant 1 : index
    %c0_116 = arith.constant 0 : index
    %c0_117 = arith.constant 0 : index
    %283 = vector.load %arg12[%c0_114, %c1_115, %c0_116, %c0_117] : memref<2x2x32x128xbf16, #tpu.memory_space<vmem>>, vector<1x1x32x128xbf16>
    %284 = vector.shape_cast %283 : vector<1x1x32x128xbf16> to vector<32x128xbf16>
    %cst_118 = arith.constant dense<0.000000e+00> : vector<8x128xf32>
    %285 = tpu.matmul %282, %284, %cst_118 {dimension_numbers = #tpu.dot_dimension_numbers<[1], [0], [0], [1], [0, 0, 1, 1], [], []>} : vector<8x32xbf16>, vector<32x128xbf16>, vector<8x128xf32> -> vector<8x128xf32>
    %286 = arith.addf %281, %285 : vector<8x128xf32>
    %287 = vector.extract_strided_slice %286 {offsets = [0, 0], sizes = [8, 32], strides = [1, 1]} : vector<8x128xf32> to vector<8x32xf32>
    %288 = arith.negf %287 : vector<8x32xf32>
    %289 = math.exp %288 : vector<8x32xf32>
    %cst_119 = arith.constant 1.000000e+00 : f32
    %290 = vector.broadcast %cst_119 : f32 to vector<8x32xf32>
    %291 = arith.addf %290, %289 : vector<8x32xf32>
    %292 = arith.divf %290, %291 : vector<8x32xf32>
    %293 = vector.extract_strided_slice %286 {offsets = [0, 32], sizes = [8, 32], strides = [1, 1]} : vector<8x128xf32> to vector<8x32xf32>
    %294 = arith.negf %293 : vector<8x32xf32>
    %295 = math.exp %294 : vector<8x32xf32>
    %cst_120 = arith.constant 1.000000e+00 : f32
    %296 = vector.broadcast %cst_120 : f32 to vector<8x32xf32>
    %297 = arith.addf %296, %295 : vector<8x32xf32>
    %298 = arith.divf %296, %297 : vector<8x32xf32>
    %299 = vector.extract_strided_slice %286 {offsets = [0, 64], sizes = [8, 32], strides = [1, 1]} : vector<8x128xf32> to vector<8x32xf32>
    %300 = math.tanh %299 : vector<8x32xf32>
    %301 = vector.extract_strided_slice %286 {offsets = [0, 96], sizes = [8, 32], strides = [1, 1]} : vector<8x128xf32> to vector<8x32xf32>
    %302 = arith.negf %301 : vector<8x32xf32>
    %303 = math.exp %302 : vector<8x32xf32>
    %cst_121 = arith.constant 1.000000e+00 : f32
    %304 = vector.broadcast %cst_121 : f32 to vector<8x32xf32>
    %305 = arith.addf %304, %303 : vector<8x32xf32>
    %306 = arith.divf %304, %305 : vector<8x32xf32>
    %307 = arith.mulf %298, %241 : vector<8x32xf32>
    %308 = arith.mulf %292, %300 : vector<8x32xf32>
    %309 = arith.addf %307, %308 : vector<8x32xf32>
    %310 = math.tanh %309 : vector<8x32xf32>
    %311 = arith.mulf %306, %310 : vector<8x32xf32>
    %312 = arith.truncf %311 : vector<8x32xf32> to vector<8x32xbf16>
    %c32_122 = arith.constant 32 : index
    %c32_123 = arith.constant 32 : index
    %313 = vector.load %arg14[%c32_122, %c32_123] : memref<64x64xbf16, #tpu.memory_space<vmem>>, vector<8x32xbf16>
    tpu.vector_store %arg14[%c32_122, %c32_123], %312 {strides = array<i32>} : memref<64x64xbf16, #tpu.memory_space<vmem>>, vector<8x32xbf16>,
    %c0_124 = arith.constant 0 : index
    %c32_125 = arith.constant 32 : index
    %c0_126 = arith.constant 0 : index
    %314 = vector.load %arg15[%c0_124, %c32_125, %c0_126] : memref<2x64x128xf32, #tpu.memory_space<vmem>>, vector<1x8x128xf32>
    %315 = vector.shape_cast %314 : vector<1x8x128xf32> to vector<8x128xf32>
    %316 = arith.truncf %277 : vector<8x32xf32> to vector<8x32xbf16>
    %c0_127 = arith.constant 0 : index
    %c0_128 = arith.constant 0 : index
    %c0_129 = arith.constant 0 : index
    %c0_130 = arith.constant 0 : index
    %317 = vector.load %arg12[%c0_127, %c0_128, %c0_129, %c0_130] : memref<2x2x32x128xbf16, #tpu.memory_space<vmem>>, vector<1x1x32x128xbf16>
    %318 = vector.shape_cast %317 : vector<1x1x32x128xbf16> to vector<32x128xbf16>
    %cst_131 = arith.constant dense<0.000000e+00> : vector<8x128xf32>
    %319 = tpu.matmul %316, %318, %cst_131 {dimension_numbers = #tpu.dot_dimension_numbers<[1], [0], [0], [1], [0, 0, 1, 1], [], []>} : vector<8x32xbf16>, vector<32x128xbf16>, vector<8x128xf32> -> vector<8x128xf32>
    %320 = arith.addf %315, %319 : vector<8x128xf32>
    %321 = vector.extract_strided_slice %320 {offsets = [0, 0], sizes = [8, 32], strides = [1, 1]} : vector<8x128xf32> to vector<8x32xf32>
    %322 = arith.negf %321 : vector<8x32xf32>
    %323 = math.exp %322 : vector<8x32xf32>
    %cst_132 = arith.constant 1.000000e+00 : f32
    %324 = vector.broadcast %cst_132 : f32 to vector<8x32xf32>
    %325 = arith.addf %324, %323 : vector<8x32xf32>
    %326 = arith.divf %324, %325 : vector<8x32xf32>
    %327 = vector.extract_strided_slice %320 {offsets = [0, 32], sizes = [8, 32], strides = [1, 1]} : vector<8x128xf32> to vector<8x32xf32>
    %328 = arith.negf %327 : vector<8x32xf32>
    %329 = math.exp %328 : vector<8x32xf32>
    %cst_133 = arith.constant 1.000000e+00 : f32
    %330 = vector.broadcast %cst_133 : f32 to vector<8x32xf32>
    %331 = arith.addf %330, %329 : vector<8x32xf32>
    %332 = arith.divf %330, %331 : vector<8x32xf32>
    %333 = vector.extract_strided_slice %320 {offsets = [0, 64], sizes = [8, 32], strides = [1, 1]} : vector<8x128xf32> to vector<8x32xf32>
    %334 = math.tanh %333 : vector<8x32xf32>
    %335 = vector.extract_strided_slice %320 {offsets = [0, 96], sizes = [8, 32], strides = [1, 1]} : vector<8x128xf32> to vector<8x32xf32>
    %336 = arith.negf %335 : vector<8x32xf32>
    %337 = math.exp %336 : vector<8x32xf32>
    %cst_134 = arith.constant 1.000000e+00 : f32
    %338 = vector.broadcast %cst_134 : f32 to vector<8x32xf32>
    %339 = arith.addf %338, %337 : vector<8x32xf32>
    %340 = arith.divf %338, %339 : vector<8x32xf32>
    %341 = arith.mulf %332, %275 : vector<8x32xf32>
    %342 = arith.mulf %326, %334 : vector<8x32xf32>
    %343 = arith.addf %341, %342 : vector<8x32xf32>
    %344 = math.tanh %343 : vector<8x32xf32>
    %345 = arith.mulf %340, %344 : vector<8x32xf32>
    %346 = arith.truncf %345 : vector<8x32xf32> to vector<8x32xbf16>
    %c32_135 = arith.constant 32 : index
    %c0_136 = arith.constant 0 : index
    %347 = vector.load %arg14[%c32_135, %c0_136] : memref<64x64xbf16, #tpu.memory_space<vmem>>, vector<8x32xbf16>
    tpu.vector_store %arg14[%c32_135, %c0_136], %346 {strides = array<i32>} : memref<64x64xbf16, #tpu.memory_space<vmem>>, vector<8x32xbf16>,
    %c1_137 = arith.constant 1 : index
    %c24_138 = arith.constant 24 : index
    %c0_139 = arith.constant 0 : index
    %348 = vector.load %arg15[%c1_137, %c24_138, %c0_139] : memref<2x64x128xf32, #tpu.memory_space<vmem>>, vector<1x8x128xf32>
    %349 = vector.shape_cast %348 : vector<1x8x128xf32> to vector<8x128xf32>
    %350 = arith.truncf %311 : vector<8x32xf32> to vector<8x32xbf16>
    %c0_140 = arith.constant 0 : index
    %c1_141 = arith.constant 1 : index
    %c0_142 = arith.constant 0 : index
    %c0_143 = arith.constant 0 : index
    %351 = vector.load %arg12[%c0_140, %c1_141, %c0_142, %c0_143] : memref<2x2x32x128xbf16, #tpu.memory_space<vmem>>, vector<1x1x32x128xbf16>
    %352 = vector.shape_cast %351 : vector<1x1x32x128xbf16> to vector<32x128xbf16>
    %cst_144 = arith.constant dense<0.000000e+00> : vector<8x128xf32>
    %353 = tpu.matmul %350, %352, %cst_144 {dimension_numbers = #tpu.dot_dimension_numbers<[1], [0], [0], [1], [0, 0, 1, 1], [], []>} : vector<8x32xbf16>, vector<32x128xbf16>, vector<8x128xf32> -> vector<8x128xf32>
    %354 = arith.addf %349, %353 : vector<8x128xf32>
    %355 = vector.extract_strided_slice %354 {offsets = [0, 0], sizes = [8, 32], strides = [1, 1]} : vector<8x128xf32> to vector<8x32xf32>
    %356 = arith.negf %355 : vector<8x32xf32>
    %357 = math.exp %356 : vector<8x32xf32>
    %cst_145 = arith.constant 1.000000e+00 : f32
    %358 = vector.broadcast %cst_145 : f32 to vector<8x32xf32>
    %359 = arith.addf %358, %357 : vector<8x32xf32>
    %360 = arith.divf %358, %359 : vector<8x32xf32>
    %361 = vector.extract_strided_slice %354 {offsets = [0, 32], sizes = [8, 32], strides = [1, 1]} : vector<8x128xf32> to vector<8x32xf32>
    %362 = arith.negf %361 : vector<8x32xf32>
    %363 = math.exp %362 : vector<8x32xf32>
    %cst_146 = arith.constant 1.000000e+00 : f32
    %364 = vector.broadcast %cst_146 : f32 to vector<8x32xf32>
    %365 = arith.addf %364, %363 : vector<8x32xf32>
    %366 = arith.divf %364, %365 : vector<8x32xf32>
    %367 = vector.extract_strided_slice %354 {offsets = [0, 64], sizes = [8, 32], strides = [1, 1]} : vector<8x128xf32> to vector<8x32xf32>
    %368 = math.tanh %367 : vector<8x32xf32>
    %369 = vector.extract_strided_slice %354 {offsets = [0, 96], sizes = [8, 32], strides = [1, 1]} : vector<8x128xf32> to vector<8x32xf32>
    %370 = arith.negf %369 : vector<8x32xf32>
    %371 = math.exp %370 : vector<8x32xf32>
    %cst_147 = arith.constant 1.000000e+00 : f32
    %372 = vector.broadcast %cst_147 : f32 to vector<8x32xf32>
    %373 = arith.addf %372, %371 : vector<8x32xf32>
    %374 = arith.divf %372, %373 : vector<8x32xf32>
    %375 = arith.mulf %366, %309 : vector<8x32xf32>
    %376 = arith.mulf %360, %368 : vector<8x32xf32>
    %377 = arith.addf %375, %376 : vector<8x32xf32>
    %378 = math.tanh %377 : vector<8x32xf32>
    %379 = arith.mulf %374, %378 : vector<8x32xf32>
    %380 = arith.truncf %379 : vector<8x32xf32> to vector<8x32xbf16>
    %c24_148 = arith.constant 24 : index
    %c32_149 = arith.constant 32 : index
    %381 = vector.load %arg14[%c24_148, %c32_149] : memref<64x64xbf16, #tpu.memory_space<vmem>>, vector<8x32xbf16>
    tpu.vector_store %arg14[%c24_148, %c32_149], %380 {strides = array<i32>} : memref<64x64xbf16, #tpu.memory_space<vmem>>, vector<8x32xbf16>,
    %c0_150 = arith.constant 0 : index
    %c40_151 = arith.constant 40 : index
    %c0_152 = arith.constant 0 : index
    %382 = vector.load %arg15[%c0_150, %c40_151, %c0_152] : memref<2x64x128xf32, #tpu.memory_space<vmem>>, vector<1x8x128xf32>
    %383 = vector.shape_cast %382 : vector<1x8x128xf32> to vector<8x128xf32>
    %384 = arith.truncf %345 : vector<8x32xf32> to vector<8x32xbf16>
    %c0_153 = arith.constant 0 : index
    %c0_154 = arith.constant 0 : index
    %c0_155 = arith.constant 0 : index
    %c0_156 = arith.constant 0 : index
    %385 = vector.load %arg12[%c0_153, %c0_154, %c0_155, %c0_156] : memref<2x2x32x128xbf16, #tpu.memory_space<vmem>>, vector<1x1x32x128xbf16>
    %386 = vector.shape_cast %385 : vector<1x1x32x128xbf16> to vector<32x128xbf16>
    %cst_157 = arith.constant dense<0.000000e+00> : vector<8x128xf32>
    %387 = tpu.matmul %384, %386, %cst_157 {dimension_numbers = #tpu.dot_dimension_numbers<[1], [0], [0], [1], [0, 0, 1, 1], [], []>} : vector<8x32xbf16>, vector<32x128xbf16>, vector<8x128xf32> -> vector<8x128xf32>
    %388 = arith.addf %383, %387 : vector<8x128xf32>
    %389 = vector.extract_strided_slice %388 {offsets = [0, 0], sizes = [8, 32], strides = [1, 1]} : vector<8x128xf32> to vector<8x32xf32>
    %390 = arith.negf %389 : vector<8x32xf32>
    %391 = math.exp %390 : vector<8x32xf32>
    %cst_158 = arith.constant 1.000000e+00 : f32
    %392 = vector.broadcast %cst_158 : f32 to vector<8x32xf32>
    %393 = arith.addf %392, %391 : vector<8x32xf32>
    %394 = arith.divf %392, %393 : vector<8x32xf32>
    %395 = vector.extract_strided_slice %388 {offsets = [0, 32], sizes = [8, 32], strides = [1, 1]} : vector<8x128xf32> to vector<8x32xf32>
    %396 = arith.negf %395 : vector<8x32xf32>
    %397 = math.exp %396 : vector<8x32xf32>
    %cst_159 = arith.constant 1.000000e+00 : f32
    %398 = vector.broadcast %cst_159 : f32 to vector<8x32xf32>
    %399 = arith.addf %398, %397 : vector<8x32xf32>
    %400 = arith.divf %398, %399 : vector<8x32xf32>
    %401 = vector.extract_strided_slice %388 {offsets = [0, 64], sizes = [8, 32], strides = [1, 1]} : vector<8x128xf32> to vector<8x32xf32>
    %402 = math.tanh %401 : vector<8x32xf32>
    %403 = vector.extract_strided_slice %388 {offsets = [0, 96], sizes = [8, 32], strides = [1, 1]} : vector<8x128xf32> to vector<8x32xf32>
    %404 = arith.negf %403 : vector<8x32xf32>
    %405 = math.exp %404 : vector<8x32xf32>
    %cst_160 = arith.constant 1.000000e+00 : f32
    %406 = vector.broadcast %cst_160 : f32 to vector<8x32xf32>
    %407 = arith.addf %406, %405 : vector<8x32xf32>
    %408 = arith.divf %406, %407 : vector<8x32xf32>
    %409 = arith.mulf %400, %343 : vector<8x32xf32>
    %410 = arith.mulf %394, %402 : vector<8x32xf32>
    %411 = arith.addf %409, %410 : vector<8x32xf32>
    %412 = math.tanh %411 : vector<8x32xf32>
    %413 = arith.mulf %408, %412 : vector<8x32xf32>
    %414 = arith.truncf %413 : vector<8x32xf32> to vector<8x32xbf16>
    %c40_161 = arith.constant 40 : index
    %c0_162 = arith.constant 0 : index
    %415 = vector.load %arg14[%c40_161, %c0_162] : memref<64x64xbf16, #tpu.memory_space<vmem>>, vector<8x32xbf16>
    tpu.vector_store %arg14[%c40_161, %c0_162], %414 {strides = array<i32>} : memref<64x64xbf16, #tpu.memory_space<vmem>>, vector<8x32xbf16>,
    %c1_163 = arith.constant 1 : index
    %c16_164 = arith.constant 16 : index
    %c0_165 = arith.constant 0 : index
    %416 = vector.load %arg15[%c1_163, %c16_164, %c0_165] : memref<2x64x128xf32, #tpu.memory_space<vmem>>, vector<1x8x128xf32>
    %417 = vector.shape_cast %416 : vector<1x8x128xf32> to vector<8x128xf32>
    %418 = arith.truncf %379 : vector<8x32xf32> to vector<8x32xbf16>
    %c0_166 = arith.constant 0 : index
    %c1_167 = arith.constant 1 : index
    %c0_168 = arith.constant 0 : index
    %c0_169 = arith.constant 0 : index
    %419 = vector.load %arg12[%c0_166, %c1_167, %c0_168, %c0_169] : memref<2x2x32x128xbf16, #tpu.memory_space<vmem>>, vector<1x1x32x128xbf16>
    %420 = vector.shape_cast %419 : vector<1x1x32x128xbf16> to vector<32x128xbf16>
    %cst_170 = arith.constant dense<0.000000e+00> : vector<8x128xf32>
    %421 = tpu.matmul %418, %420, %cst_170 {dimension_numbers = #tpu.dot_dimension_numbers<[1], [0], [0], [1], [0, 0, 1, 1], [], []>} : vector<8x32xbf16>, vector<32x128xbf16>, vector<8x128xf32> -> vector<8x128xf32>
    %422 = arith.addf %417, %421 : vector<8x128xf32>
    %423 = vector.extract_strided_slice %422 {offsets = [0, 0], sizes = [8, 32], strides = [1, 1]} : vector<8x128xf32> to vector<8x32xf32>
    %424 = arith.negf %423 : vector<8x32xf32>
    %425 = math.exp %424 : vector<8x32xf32>
    %cst_171 = arith.constant 1.000000e+00 : f32
    %426 = vector.broadcast %cst_171 : f32 to vector<8x32xf32>
    %427 = arith.addf %426, %425 : vector<8x32xf32>
    %428 = arith.divf %426, %427 : vector<8x32xf32>
    %429 = vector.extract_strided_slice %422 {offsets = [0, 32], sizes = [8, 32], strides = [1, 1]} : vector<8x128xf32> to vector<8x32xf32>
    %430 = arith.negf %429 : vector<8x32xf32>
    %431 = math.exp %430 : vector<8x32xf32>
    %cst_172 = arith.constant 1.000000e+00 : f32
    %432 = vector.broadcast %cst_172 : f32 to vector<8x32xf32>
    %433 = arith.addf %432, %431 : vector<8x32xf32>
    %434 = arith.divf %432, %433 : vector<8x32xf32>
    %435 = vector.extract_strided_slice %422 {offsets = [0, 64], sizes = [8, 32], strides = [1, 1]} : vector<8x128xf32> to vector<8x32xf32>
    %436 = math.tanh %435 : vector<8x32xf32>
    %437 = vector.extract_strided_slice %422 {offsets = [0, 96], sizes = [8, 32], strides = [1, 1]} : vector<8x128xf32> to vector<8x32xf32>
    %438 = arith.negf %437 : vector<8x32xf32>
    %439 = math.exp %438 : vector<8x32xf32>
    %cst_173 = arith.constant 1.000000e+00 : f32
    %440 = vector.broadcast %cst_173 : f32 to vector<8x32xf32>
    %441 = arith.addf %440, %439 : vector<8x32xf32>
    %442 = arith.divf %440, %441 : vector<8x32xf32>
    %443 = arith.mulf %434, %377 : vector<8x32xf32>
    %444 = arith.mulf %428, %436 : vector<8x32xf32>
    %445 = arith.addf %443, %444 : vector<8x32xf32>
    %446 = math.tanh %445 : vector<8x32xf32>
    %447 = arith.mulf %442, %446 : vector<8x32xf32>
    %448 = arith.truncf %447 : vector<8x32xf32> to vector<8x32xbf16>
    %c16_174 = arith.constant 16 : index
    %c32_175 = arith.constant 32 : index
    %449 = vector.load %arg14[%c16_174, %c32_175] : memref<64x64xbf16, #tpu.memory_space<vmem>>, vector<8x32xbf16>
    tpu.vector_store %arg14[%c16_174, %c32_175], %448 {strides = array<i32>} : memref<64x64xbf16, #tpu.memory_space<vmem>>, vector<8x32xbf16>,
    %c0_176 = arith.constant 0 : index
    %c48_177 = arith.constant 48 : index
    %c0_178 = arith.constant 0 : index
    %450 = vector.load %arg15[%c0_176, %c48_177, %c0_178] : memref<2x64x128xf32, #tpu.memory_space<vmem>>, vector<1x8x128xf32>
    %451 = vector.shape_cast %450 : vector<1x8x128xf32> to vector<8x128xf32>
    %452 = arith.truncf %413 : vector<8x32xf32> to vector<8x32xbf16>
    %c0_179 = arith.constant 0 : index
    %c0_180 = arith.constant 0 : index
    %c0_181 = arith.constant 0 : index
    %c0_182 = arith.constant 0 : index
    %453 = vector.load %arg12[%c0_179, %c0_180, %c0_181, %c0_182] : memref<2x2x32x128xbf16, #tpu.memory_space<vmem>>, vector<1x1x32x128xbf16>
    %454 = vector.shape_cast %453 : vector<1x1x32x128xbf16> to vector<32x128xbf16>
    %cst_183 = arith.constant dense<0.000000e+00> : vector<8x128xf32>
    %455 = tpu.matmul %452, %454, %cst_183 {dimension_numbers = #tpu.dot_dimension_numbers<[1], [0], [0], [1], [0, 0, 1, 1], [], []>} : vector<8x32xbf16>, vector<32x128xbf16>, vector<8x128xf32> -> vector<8x128xf32>
    %456 = arith.addf %451, %455 : vector<8x128xf32>
    %457 = vector.extract_strided_slice %456 {offsets = [0, 0], sizes = [8, 32], strides = [1, 1]} : vector<8x128xf32> to vector<8x32xf32>
    %458 = arith.negf %457 : vector<8x32xf32>
    %459 = math.exp %458 : vector<8x32xf32>
    %cst_184 = arith.constant 1.000000e+00 : f32
    %460 = vector.broadcast %cst_184 : f32 to vector<8x32xf32>
    %461 = arith.addf %460, %459 : vector<8x32xf32>
    %462 = arith.divf %460, %461 : vector<8x32xf32>
    %463 = vector.extract_strided_slice %456 {offsets = [0, 32], sizes = [8, 32], strides = [1, 1]} : vector<8x128xf32> to vector<8x32xf32>
    %464 = arith.negf %463 : vector<8x32xf32>
    %465 = math.exp %464 : vector<8x32xf32>
    %cst_185 = arith.constant 1.000000e+00 : f32
    %466 = vector.broadcast %cst_185 : f32 to vector<8x32xf32>
    %467 = arith.addf %466, %465 : vector<8x32xf32>
    %468 = arith.divf %466, %467 : vector<8x32xf32>
    %469 = vector.extract_strided_slice %456 {offsets = [0, 64], sizes = [8, 32], strides = [1, 1]} : vector<8x128xf32> to vector<8x32xf32>
    %470 = math.tanh %469 : vector<8x32xf32>
    %471 = vector.extract_strided_slice %456 {offsets = [0, 96], sizes = [8, 32], strides = [1, 1]} : vector<8x128xf32> to vector<8x32xf32>
    %472 = arith.negf %471 : vector<8x32xf32>
    %473 = math.exp %472 : vector<8x32xf32>
    %cst_186 = arith.constant 1.000000e+00 : f32
    %474 = vector.broadcast %cst_186 : f32 to vector<8x32xf32>
    %475 = arith.addf %474, %473 : vector<8x32xf32>
    %476 = arith.divf %474, %475 : vector<8x32xf32>
    %477 = arith.mulf %468, %411 : vector<8x32xf32>
    %478 = arith.mulf %462, %470 : vector<8x32xf32>
    %479 = arith.addf %477, %478 : vector<8x32xf32>
    %480 = math.tanh %479 : vector<8x32xf32>
    %481 = arith.mulf %476, %480 : vector<8x32xf32>
    %482 = arith.truncf %481 : vector<8x32xf32> to vector<8x32xbf16>
    %c48_187 = arith.constant 48 : index
    %c0_188 = arith.constant 0 : index
    %483 = vector.load %arg14[%c48_187, %c0_188] : memref<64x64xbf16, #tpu.memory_space<vmem>>, vector<8x32xbf16>
    tpu.vector_store %arg14[%c48_187, %c0_188], %482 {strides = array<i32>} : memref<64x64xbf16, #tpu.memory_space<vmem>>, vector<8x32xbf16>,
    %c1_189 = arith.constant 1 : index
    %c8_190 = arith.constant 8 : index
    %c0_191 = arith.constant 0 : index
    %484 = vector.load %arg15[%c1_189, %c8_190, %c0_191] : memref<2x64x128xf32, #tpu.memory_space<vmem>>, vector<1x8x128xf32>
    %485 = vector.shape_cast %484 : vector<1x8x128xf32> to vector<8x128xf32>
    %486 = arith.truncf %447 : vector<8x32xf32> to vector<8x32xbf16>
    %c0_192 = arith.constant 0 : index
    %c1_193 = arith.constant 1 : index
    %c0_194 = arith.constant 0 : index
    %c0_195 = arith.constant 0 : index
    %487 = vector.load %arg12[%c0_192, %c1_193, %c0_194, %c0_195] : memref<2x2x32x128xbf16, #tpu.memory_space<vmem>>, vector<1x1x32x128xbf16>
    %488 = vector.shape_cast %487 : vector<1x1x32x128xbf16> to vector<32x128xbf16>
    %cst_196 = arith.constant dense<0.000000e+00> : vector<8x128xf32>
    %489 = tpu.matmul %486, %488, %cst_196 {dimension_numbers = #tpu.dot_dimension_numbers<[1], [0], [0], [1], [0, 0, 1, 1], [], []>} : vector<8x32xbf16>, vector<32x128xbf16>, vector<8x128xf32> -> vector<8x128xf32>
    %490 = arith.addf %485, %489 : vector<8x128xf32>
    %491 = vector.extract_strided_slice %490 {offsets = [0, 0], sizes = [8, 32], strides = [1, 1]} : vector<8x128xf32> to vector<8x32xf32>
    %492 = arith.negf %491 : vector<8x32xf32>
    %493 = math.exp %492 : vector<8x32xf32>
    %cst_197 = arith.constant 1.000000e+00 : f32
    %494 = vector.broadcast %cst_197 : f32 to vector<8x32xf32>
    %495 = arith.addf %494, %493 : vector<8x32xf32>
    %496 = arith.divf %494, %495 : vector<8x32xf32>
    %497 = vector.extract_strided_slice %490 {offsets = [0, 32], sizes = [8, 32], strides = [1, 1]} : vector<8x128xf32> to vector<8x32xf32>
    %498 = arith.negf %497 : vector<8x32xf32>
    %499 = math.exp %498 : vector<8x32xf32>
    %cst_198 = arith.constant 1.000000e+00 : f32
    %500 = vector.broadcast %cst_198 : f32 to vector<8x32xf32>
    %501 = arith.addf %500, %499 : vector<8x32xf32>
    %502 = arith.divf %500, %501 : vector<8x32xf32>
    %503 = vector.extract_strided_slice %490 {offsets = [0, 64], sizes = [8, 32], strides = [1, 1]} : vector<8x128xf32> to vector<8x32xf32>
    %504 = math.tanh %503 : vector<8x32xf32>
    %505 = vector.extract_strided_slice %490 {offsets = [0, 96], sizes = [8, 32], strides = [1, 1]} : vector<8x128xf32> to vector<8x32xf32>
    %506 = arith.negf %505 : vector<8x32xf32>
    %507 = math.exp %506 : vector<8x32xf32>
    %cst_199 = arith.constant 1.000000e+00 : f32
    %508 = vector.broadcast %cst_199 : f32 to vector<8x32xf32>
    %509 = arith.addf %508, %507 : vector<8x32xf32>
    %510 = arith.divf %508, %509 : vector<8x32xf32>
    %511 = arith.mulf %502, %445 : vector<8x32xf32>
    %512 = arith.mulf %496, %504 : vector<8x32xf32>
    %513 = arith.addf %511, %512 : vector<8x32xf32>
    %514 = math.tanh %513 : vector<8x32xf32>
    %515 = arith.mulf %510, %514 : vector<8x32xf32>
    %516 = arith.truncf %515 : vector<8x32xf32> to vector<8x32xbf16>
    %c8_200 = arith.constant 8 : index
    %c32_201 = arith.constant 32 : index
    %517 = vector.load %arg14[%c8_200, %c32_201] : memref<64x64xbf16, #tpu.memory_space<vmem>>, vector<8x32xbf16>
    tpu.vector_store %arg14[%c8_200, %c32_201], %516 {strides = array<i32>} : memref<64x64xbf16, #tpu.memory_space<vmem>>, vector<8x32xbf16>,
    %c0_202 = arith.constant 0 : index
    %c56_203 = arith.constant 56 : index
    %c0_204 = arith.constant 0 : index
    %518 = vector.load %arg15[%c0_202, %c56_203, %c0_204] : memref<2x64x128xf32, #tpu.memory_space<vmem>>, vector<1x8x128xf32>
    %519 = vector.shape_cast %518 : vector<1x8x128xf32> to vector<8x128xf32>
    %520 = arith.truncf %481 : vector<8x32xf32> to vector<8x32xbf16>
    %c0_205 = arith.constant 0 : index
    %c0_206 = arith.constant 0 : index
    %c0_207 = arith.constant 0 : index
    %c0_208 = arith.constant 0 : index
    %521 = vector.load %arg12[%c0_205, %c0_206, %c0_207, %c0_208] : memref<2x2x32x128xbf16, #tpu.memory_space<vmem>>, vector<1x1x32x128xbf16>
    %522 = vector.shape_cast %521 : vector<1x1x32x128xbf16> to vector<32x128xbf16>
    %cst_209 = arith.constant dense<0.000000e+00> : vector<8x128xf32>
    %523 = tpu.matmul %520, %522, %cst_209 {dimension_numbers = #tpu.dot_dimension_numbers<[1], [0], [0], [1], [0, 0, 1, 1], [], []>} : vector<8x32xbf16>, vector<32x128xbf16>, vector<8x128xf32> -> vector<8x128xf32>
    %524 = arith.addf %519, %523 : vector<8x128xf32>
    %525 = vector.extract_strided_slice %524 {offsets = [0, 0], sizes = [8, 32], strides = [1, 1]} : vector<8x128xf32> to vector<8x32xf32>
    %526 = arith.negf %525 : vector<8x32xf32>
    %527 = math.exp %526 : vector<8x32xf32>
    %cst_210 = arith.constant 1.000000e+00 : f32
    %528 = vector.broadcast %cst_210 : f32 to vector<8x32xf32>
    %529 = arith.addf %528, %527 : vector<8x32xf32>
    %530 = arith.divf %528, %529 : vector<8x32xf32>
    %531 = vector.extract_strided_slice %524 {offsets = [0, 32], sizes = [8, 32], strides = [1, 1]} : vector<8x128xf32> to vector<8x32xf32>
    %532 = arith.negf %531 : vector<8x32xf32>
    %533 = math.exp %532 : vector<8x32xf32>
    %cst_211 = arith.constant 1.000000e+00 : f32
    %534 = vector.broadcast %cst_211 : f32 to vector<8x32xf32>
    %535 = arith.addf %534, %533 : vector<8x32xf32>
    %536 = arith.divf %534, %535 : vector<8x32xf32>
    %537 = vector.extract_strided_slice %524 {offsets = [0, 64], sizes = [8, 32], strides = [1, 1]} : vector<8x128xf32> to vector<8x32xf32>
    %538 = math.tanh %537 : vector<8x32xf32>
    %539 = vector.extract_strided_slice %524 {offsets = [0, 96], sizes = [8, 32], strides = [1, 1]} : vector<8x128xf32> to vector<8x32xf32>
    %540 = arith.negf %539 : vector<8x32xf32>
    %541 = math.exp %540 : vector<8x32xf32>
    %cst_212 = arith.constant 1.000000e+00 : f32
    %542 = vector.broadcast %cst_212 : f32 to vector<8x32xf32>
    %543 = arith.addf %542, %541 : vector<8x32xf32>
    %544 = arith.divf %542, %543 : vector<8x32xf32>
    %545 = arith.mulf %536, %479 : vector<8x32xf32>
    %546 = arith.mulf %530, %538 : vector<8x32xf32>
    %547 = arith.addf %545, %546 : vector<8x32xf32>
    %548 = math.tanh %547 : vector<8x32xf32>
    %549 = arith.mulf %544, %548 : vector<8x32xf32>
    %550 = arith.truncf %549 : vector<8x32xf32> to vector<8x32xbf16>
    %c56_213 = arith.constant 56 : index
    %c0_214 = arith.constant 0 : index
    %551 = vector.load %arg14[%c56_213, %c0_214] : memref<64x64xbf16, #tpu.memory_space<vmem>>, vector<8x32xbf16>
    tpu.vector_store %arg14[%c56_213, %c0_214], %550 {strides = array<i32>} : memref<64x64xbf16, #tpu.memory_space<vmem>>, vector<8x32xbf16>,
    %c1_215 = arith.constant 1 : index
    %c0_216 = arith.constant 0 : index
    %c0_217 = arith.constant 0 : index
    %552 = vector.load %arg15[%c1_215, %c0_216, %c0_217] : memref<2x64x128xf32, #tpu.memory_space<vmem>>, vector<1x8x128xf32>
    %553 = vector.shape_cast %552 : vector<1x8x128xf32> to vector<8x128xf32>
    %554 = arith.truncf %515 : vector<8x32xf32> to vector<8x32xbf16>
    %c0_218 = arith.constant 0 : index
    %c1_219 = arith.constant 1 : index
    %c0_220 = arith.constant 0 : index
    %c0_221 = arith.constant 0 : index
    %555 = vector.load %arg12[%c0_218, %c1_219, %c0_220, %c0_221] : memref<2x2x32x128xbf16, #tpu.memory_space<vmem>>, vector<1x1x32x128xbf16>
    %556 = vector.shape_cast %555 : vector<1x1x32x128xbf16> to vector<32x128xbf16>
    %cst_222 = arith.constant dense<0.000000e+00> : vector<8x128xf32>
    %557 = tpu.matmul %554, %556, %cst_222 {dimension_numbers = #tpu.dot_dimension_numbers<[1], [0], [0], [1], [0, 0, 1, 1], [], []>} : vector<8x32xbf16>, vector<32x128xbf16>, vector<8x128xf32> -> vector<8x128xf32>
    %558 = arith.addf %553, %557 : vector<8x128xf32>
    %559 = vector.extract_strided_slice %558 {offsets = [0, 0], sizes = [8, 32], strides = [1, 1]} : vector<8x128xf32> to vector<8x32xf32>
    %560 = arith.negf %559 : vector<8x32xf32>
    %561 = math.exp %560 : vector<8x32xf32>
    %cst_223 = arith.constant 1.000000e+00 : f32
    %562 = vector.broadcast %cst_223 : f32 to vector<8x32xf32>
    %563 = arith.addf %562, %561 : vector<8x32xf32>
    %564 = arith.divf %562, %563 : vector<8x32xf32>
    %565 = vector.extract_strided_slice %558 {offsets = [0, 32], sizes = [8, 32], strides = [1, 1]} : vector<8x128xf32> to vector<8x32xf32>
    %566 = arith.negf %565 : vector<8x32xf32>
    %567 = math.exp %566 : vector<8x32xf32>
    %cst_224 = arith.constant 1.000000e+00 : f32
    %568 = vector.broadcast %cst_224 : f32 to vector<8x32xf32>
    %569 = arith.addf %568, %567 : vector<8x32xf32>
    %570 = arith.divf %568, %569 : vector<8x32xf32>
    %571 = vector.extract_strided_slice %558 {offsets = [0, 64], sizes = [8, 32], strides = [1, 1]} : vector<8x128xf32> to vector<8x32xf32>
    %572 = math.tanh %571 : vector<8x32xf32>
    %573 = vector.extract_strided_slice %558 {offsets = [0, 96], sizes = [8, 32], strides = [1, 1]} : vector<8x128xf32> to vector<8x32xf32>
    %574 = arith.negf %573 : vector<8x32xf32>
    %575 = math.exp %574 : vector<8x32xf32>
    %cst_225 = arith.constant 1.000000e+00 : f32
    %576 = vector.broadcast %cst_225 : f32 to vector<8x32xf32>
    %577 = arith.addf %576, %575 : vector<8x32xf32>
    %578 = arith.divf %576, %577 : vector<8x32xf32>
    %579 = arith.mulf %570, %513 : vector<8x32xf32>
    %580 = arith.mulf %564, %572 : vector<8x32xf32>
    %581 = arith.addf %579, %580 : vector<8x32xf32>
    %582 = math.tanh %581 : vector<8x32xf32>
    %583 = arith.mulf %578, %582 : vector<8x32xf32>
    %584 = arith.truncf %583 : vector<8x32xf32> to vector<8x32xbf16>
    %c0_226 = arith.constant 0 : index
    %c32_227 = arith.constant 32 : index
    %585 = vector.load %arg14[%c0_226, %c32_227] : memref<64x64xbf16, #tpu.memory_space<vmem>>, vector<8x32xbf16>
    tpu.vector_store %arg14[%c0_226, %c32_227], %584 {strides = array<i32>} : memref<64x64xbf16, #tpu.memory_space<vmem>>, vector<8x32xbf16>,
    %c0_228 = arith.constant 0 : index
    %c0_229 = arith.constant 0 : index
    %586 = vector.load %arg14[%c0_228, %c0_229] : memref<64x64xbf16, #tpu.memory_space<vmem>>, vector<64x64xbf16>
    %c0_230 = arith.constant 0 : index
    %c0_231 = arith.constant 0 : index
    %c0_232 = arith.constant 0 : index
    %c0_233 = arith.constant 0 : index
    %587 = vector.load %arg11[%c0_230, %c0_231, %c0_232, %c0_233] : memref<1x2x64x128xbf16, #tpu.memory_space<vmem>>, vector<1x1x64x128xbf16>
    %588 = vector.shape_cast %587 : vector<1x1x64x128xbf16> to vector<64x128xbf16>
    %cst_234 = arith.constant dense<0.000000e+00> : vector<64x128xf32>
    %589 = tpu.matmul %586, %588, %cst_234 {dimension_numbers = #tpu.dot_dimension_numbers<[1], [0], [0], [1], [0, 0, 1, 1], [], []>} : vector<64x64xbf16>, vector<64x128xbf16>, vector<64x128xf32> -> vector<64x128xf32>
    %c1_235 = arith.constant 1 : index
    %c0_236 = arith.constant 0 : index
    %c0_237 = arith.constant 0 : index
    %c0_238 = arith.constant 0 : index
    %590 = vector.load %arg5[%c1_235, %c0_236, %c0_237, %c0_238] : memref<2x2x1x128xf32, #tpu.memory_space<vmem>>, vector<1x1x1x128xf32>
    %591 = vector.shape_cast %590 : vector<1x1x1x128xf32> to vector<1x128xf32>
    %592 = vector.broadcast %591 : vector<1x128xf32> to vector<64x128xf32>
    %593 = arith.addf %589, %592 : vector<64x128xf32>
    %c0_239 = arith.constant 0 : index
    %c0_240 = arith.constant 0 : index
    %c0_241 = arith.constant 0 : index
    %594 = vector.load %arg15[%c0_239, %c0_240, %c0_241] : memref<2x64x128xf32, #tpu.memory_space<vmem>>, vector<1x64x128xf32>
    %595 = vector.shape_cast %594 : vector<1x64x128xf32> to vector<64x128xf32>
    %596 = vector.shape_cast %593 : vector<64x128xf32> to vector<1x64x128xf32>
    tpu.vector_store %arg15[%c0_239, %c0_240, %c0_241], %596 {strides = array<i32>} : memref<2x64x128xf32, #tpu.memory_space<vmem>>, vector<1x64x128xf32>,
    %c0_242 = arith.constant 0 : index
    %c1_243 = arith.constant 1 : index
    %c0_244 = arith.constant 0 : index
    %c0_245 = arith.constant 0 : index
    %597 = vector.load %arg11[%c0_242, %c1_243, %c0_244, %c0_245] : memref<1x2x64x128xbf16, #tpu.memory_space<vmem>>, vector<1x1x64x128xbf16>
    %598 = vector.shape_cast %597 : vector<1x1x64x128xbf16> to vector<64x128xbf16>
    %cst_246 = arith.constant dense<0.000000e+00> : vector<64x128xf32>
    %599 = tpu.matmul %586, %598, %cst_246 {dimension_numbers = #tpu.dot_dimension_numbers<[1], [0], [0], [1], [0, 0, 1, 1], [], []>} : vector<64x64xbf16>, vector<64x128xbf16>, vector<64x128xf32> -> vector<64x128xf32>
    %c1_247 = arith.constant 1 : index
    %c1_248 = arith.constant 1 : index
    %c0_249 = arith.constant 0 : index
    %c0_250 = arith.constant 0 : index
    %600 = vector.load %arg5[%c1_247, %c1_248, %c0_249, %c0_250] : memref<2x2x1x128xf32, #tpu.memory_space<vmem>>, vector<1x1x1x128xf32>
    %601 = vector.shape_cast %600 : vector<1x1x1x128xf32> to vector<1x128xf32>
    %602 = vector.broadcast %601 : vector<1x128xf32> to vector<64x128xf32>
    %603 = arith.addf %599, %602 : vector<64x128xf32>
    %c1_251 = arith.constant 1 : index
    %c0_252 = arith.constant 0 : index
    %c0_253 = arith.constant 0 : index
    %604 = vector.load %arg15[%c1_251, %c0_252, %c0_253] : memref<2x64x128xf32, #tpu.memory_space<vmem>>, vector<1x64x128xf32>
    %605 = vector.shape_cast %604 : vector<1x64x128xf32> to vector<64x128xf32>
    %606 = vector.shape_cast %603 : vector<64x128xf32> to vector<1x64x128xf32>
    tpu.vector_store %arg15[%c1_251, %c0_252, %c0_253], %606 {strides = array<i32>} : memref<2x64x128xf32, #tpu.memory_space<vmem>>, vector<1x64x128xf32>,
    %cst_254 = arith.constant 0.000000e+00 : f32
    %607 = vector.broadcast %cst_254 : f32 to vector<8x32xf32>
    %c0_255 = arith.constant 0 : index
    %c0_256 = arith.constant 0 : index
    %c0_257 = arith.constant 0 : index
    %608 = vector.load %arg15[%c0_255, %c0_256, %c0_257] : memref<2x64x128xf32, #tpu.memory_space<vmem>>, vector<1x8x128xf32>
    %609 = vector.shape_cast %608 : vector<1x8x128xf32> to vector<8x128xf32>
    %610 = arith.truncf %607 : vector<8x32xf32> to vector<8x32xbf16>
    %c1_258 = arith.constant 1 : index
    %c0_259 = arith.constant 0 : index
    %c0_260 = arith.constant 0 : index
    %c0_261 = arith.constant 0 : index
    %611 = vector.load %arg12[%c1_258, %c0_259, %c0_260, %c0_261] : memref<2x2x32x128xbf16, #tpu.memory_space<vmem>>, vector<1x1x32x128xbf16>
    %612 = vector.shape_cast %611 : vector<1x1x32x128xbf16> to vector<32x128xbf16>
    %cst_262 = arith.constant dense<0.000000e+00> : vector<8x128xf32>
    %613 = tpu.matmul %610, %612, %cst_262 {dimension_numbers = #tpu.dot_dimension_numbers<[1], [0], [0], [1], [0, 0, 1, 1], [], []>} : vector<8x32xbf16>, vector<32x128xbf16>, vector<8x128xf32> -> vector<8x128xf32>
    %614 = arith.addf %609, %613 : vector<8x128xf32>
    %615 = vector.extract_strided_slice %614 {offsets = [0, 0], sizes = [8, 32], strides = [1, 1]} : vector<8x128xf32> to vector<8x32xf32>
    %616 = arith.negf %615 : vector<8x32xf32>
    %617 = math.exp %616 : vector<8x32xf32>
    %cst_263 = arith.constant 1.000000e+00 : f32
    %618 = vector.broadcast %cst_263 : f32 to vector<8x32xf32>
    %619 = arith.addf %618, %617 : vector<8x32xf32>
    %620 = arith.divf %618, %619 : vector<8x32xf32>
    %621 = vector.extract_strided_slice %614 {offsets = [0, 32], sizes = [8, 32], strides = [1, 1]} : vector<8x128xf32> to vector<8x32xf32>
    %622 = arith.negf %621 : vector<8x32xf32>
    %623 = math.exp %622 : vector<8x32xf32>
    %cst_264 = arith.constant 1.000000e+00 : f32
    %624 = vector.broadcast %cst_264 : f32 to vector<8x32xf32>
    %625 = arith.addf %624, %623 : vector<8x32xf32>
    %626 = arith.divf %624, %625 : vector<8x32xf32>
    %627 = vector.extract_strided_slice %614 {offsets = [0, 64], sizes = [8, 32], strides = [1, 1]} : vector<8x128xf32> to vector<8x32xf32>
    %628 = math.tanh %627 : vector<8x32xf32>
    %629 = vector.extract_strided_slice %614 {offsets = [0, 96], sizes = [8, 32], strides = [1, 1]} : vector<8x128xf32> to vector<8x32xf32>
    %630 = arith.negf %629 : vector<8x32xf32>
    %631 = math.exp %630 : vector<8x32xf32>
    %cst_265 = arith.constant 1.000000e+00 : f32
    %632 = vector.broadcast %cst_265 : f32 to vector<8x32xf32>
    %633 = arith.addf %632, %631 : vector<8x32xf32>
    %634 = arith.divf %632, %633 : vector<8x32xf32>
    %635 = arith.mulf %626, %607 : vector<8x32xf32>
    %636 = arith.mulf %620, %628 : vector<8x32xf32>
    %637 = arith.addf %635, %636 : vector<8x32xf32>
    %638 = math.tanh %637 : vector<8x32xf32>
    %639 = arith.mulf %634, %638 : vector<8x32xf32>
    %c1_266 = arith.constant 1 : index
    %c56_267 = arith.constant 56 : index
    %c0_268 = arith.constant 0 : index
    %640 = vector.load %arg15[%c1_266, %c56_267, %c0_268] : memref<2x64x128xf32, #tpu.memory_space<vmem>>, vector<1x8x128xf32>
    %641 = vector.shape_cast %640 : vector<1x8x128xf32> to vector<8x128xf32>
    %642 = arith.truncf %607 : vector<8x32xf32> to vector<8x32xbf16>
    %c1_269 = arith.constant 1 : index
    %c1_270 = arith.constant 1 : index
    %c0_271 = arith.constant 0 : index
    %c0_272 = arith.constant 0 : index
    %643 = vector.load %arg12[%c1_269, %c1_270, %c0_271, %c0_272] : memref<2x2x32x128xbf16, #tpu.memory_space<vmem>>, vector<1x1x32x128xbf16>
    %644 = vector.shape_cast %643 : vector<1x1x32x128xbf16> to vector<32x128xbf16>
    %cst_273 = arith.constant dense<0.000000e+00> : vector<8x128xf32>
    %645 = tpu.matmul %642, %644, %cst_273 {dimension_numbers = #tpu.dot_dimension_numbers<[1], [0], [0], [1], [0, 0, 1, 1], [], []>} : vector<8x32xbf16>, vector<32x128xbf16>, vector<8x128xf32> -> vector<8x128xf32>
    %646 = arith.addf %641, %645 : vector<8x128xf32>
    %647 = vector.extract_strided_slice %646 {offsets = [0, 0], sizes = [8, 32], strides = [1, 1]} : vector<8x128xf32> to vector<8x32xf32>
    %648 = arith.negf %647 : vector<8x32xf32>
    %649 = math.exp %648 : vector<8x32xf32>
    %cst_274 = arith.constant 1.000000e+00 : f32
    %650 = vector.broadcast %cst_274 : f32 to vector<8x32xf32>
    %651 = arith.addf %650, %649 : vector<8x32xf32>
    %652 = arith.divf %650, %651 : vector<8x32xf32>
    %653 = vector.extract_strided_slice %646 {offsets = [0, 32], sizes = [8, 32], strides = [1, 1]} : vector<8x128xf32> to vector<8x32xf32>
    %654 = arith.negf %653 : vector<8x32xf32>
    %655 = math.exp %654 : vector<8x32xf32>
    %cst_275 = arith.constant 1.000000e+00 : f32
    %656 = vector.broadcast %cst_275 : f32 to vector<8x32xf32>
    %657 = arith.addf %656, %655 : vector<8x32xf32>
    %658 = arith.divf %656, %657 : vector<8x32xf32>
    %659 = vector.extract_strided_slice %646 {offsets = [0, 64], sizes = [8, 32], strides = [1, 1]} : vector<8x128xf32> to vector<8x32xf32>
    %660 = math.tanh %659 : vector<8x32xf32>
    %661 = vector.extract_strided_slice %646 {offsets = [0, 96], sizes = [8, 32], strides = [1, 1]} : vector<8x128xf32> to vector<8x32xf32>
    %662 = arith.negf %661 : vector<8x32xf32>
    %663 = math.exp %662 : vector<8x32xf32>
    %cst_276 = arith.constant 1.000000e+00 : f32
    %664 = vector.broadcast %cst_276 : f32 to vector<8x32xf32>
    %665 = arith.addf %664, %663 : vector<8x32xf32>
    %666 = arith.divf %664, %665 : vector<8x32xf32>
    %667 = arith.mulf %658, %607 : vector<8x32xf32>
    %668 = arith.mulf %652, %660 : vector<8x32xf32>
    %669 = arith.addf %667, %668 : vector<8x32xf32>
    %670 = math.tanh %669 : vector<8x32xf32>
    %671 = arith.mulf %666, %670 : vector<8x32xf32>
    %c0_277 = arith.constant 0 : index
    %c8_278 = arith.constant 8 : index
    %c0_279 = arith.constant 0 : index
    %672 = vector.load %arg15[%c0_277, %c8_278, %c0_279] : memref<2x64x128xf32, #tpu.memory_space<vmem>>, vector<1x8x128xf32>
    %673 = vector.shape_cast %672 : vector<1x8x128xf32> to vector<8x128xf32>
    %674 = arith.truncf %639 : vector<8x32xf32> to vector<8x32xbf16>
    %c1_280 = arith.constant 1 : index
    %c0_281 = arith.constant 0 : index
    %c0_282 = arith.constant 0 : index
    %c0_283 = arith.constant 0 : index
    %675 = vector.load %arg12[%c1_280, %c0_281, %c0_282, %c0_283] : memref<2x2x32x128xbf16, #tpu.memory_space<vmem>>, vector<1x1x32x128xbf16>
    %676 = vector.shape_cast %675 : vector<1x1x32x128xbf16> to vector<32x128xbf16>
    %cst_284 = arith.constant dense<0.000000e+00> : vector<8x128xf32>
    %677 = tpu.matmul %674, %676, %cst_284 {dimension_numbers = #tpu.dot_dimension_numbers<[1], [0], [0], [1], [0, 0, 1, 1], [], []>} : vector<8x32xbf16>, vector<32x128xbf16>, vector<8x128xf32> -> vector<8x128xf32>
    %678 = arith.addf %673, %677 : vector<8x128xf32>
    %679 = vector.extract_strided_slice %678 {offsets = [0, 0], sizes = [8, 32], strides = [1, 1]} : vector<8x128xf32> to vector<8x32xf32>
    %680 = arith.negf %679 : vector<8x32xf32>
    %681 = math.exp %680 : vector<8x32xf32>
    %cst_285 = arith.constant 1.000000e+00 : f32
    %682 = vector.broadcast %cst_285 : f32 to vector<8x32xf32>
    %683 = arith.addf %682, %681 : vector<8x32xf32>
    %684 = arith.divf %682, %683 : vector<8x32xf32>
    %685 = vector.extract_strided_slice %678 {offsets = [0, 32], sizes = [8, 32], strides = [1, 1]} : vector<8x128xf32> to vector<8x32xf32>
    %686 = arith.negf %685 : vector<8x32xf32>
    %687 = math.exp %686 : vector<8x32xf32>
    %cst_286 = arith.constant 1.000000e+00 : f32
    %688 = vector.broadcast %cst_286 : f32 to vector<8x32xf32>
    %689 = arith.addf %688, %687 : vector<8x32xf32>
    %690 = arith.divf %688, %689 : vector<8x32xf32>
    %691 = vector.extract_strided_slice %678 {offsets = [0, 64], sizes = [8, 32], strides = [1, 1]} : vector<8x128xf32> to vector<8x32xf32>
    %692 = math.tanh %691 : vector<8x32xf32>
    %693 = vector.extract_strided_slice %678 {offsets = [0, 96], sizes = [8, 32], strides = [1, 1]} : vector<8x128xf32> to vector<8x32xf32>
    %694 = arith.negf %693 : vector<8x32xf32>
    %695 = math.exp %694 : vector<8x32xf32>
    %cst_287 = arith.constant 1.000000e+00 : f32
    %696 = vector.broadcast %cst_287 : f32 to vector<8x32xf32>
    %697 = arith.addf %696, %695 : vector<8x32xf32>
    %698 = arith.divf %696, %697 : vector<8x32xf32>
    %699 = arith.mulf %690, %637 : vector<8x32xf32>
    %700 = arith.mulf %684, %692 : vector<8x32xf32>
    %701 = arith.addf %699, %700 : vector<8x32xf32>
    %702 = math.tanh %701 : vector<8x32xf32>
    %703 = arith.mulf %698, %702 : vector<8x32xf32>
    %c1_288 = arith.constant 1 : index
    %c48_289 = arith.constant 48 : index
    %c0_290 = arith.constant 0 : index
    %704 = vector.load %arg15[%c1_288, %c48_289, %c0_290] : memref<2x64x128xf32, #tpu.memory_space<vmem>>, vector<1x8x128xf32>
    %705 = vector.shape_cast %704 : vector<1x8x128xf32> to vector<8x128xf32>
    %706 = arith.truncf %671 : vector<8x32xf32> to vector<8x32xbf16>
    %c1_291 = arith.constant 1 : index
    %c1_292 = arith.constant 1 : index
    %c0_293 = arith.constant 0 : index
    %c0_294 = arith.constant 0 : index
    %707 = vector.load %arg12[%c1_291, %c1_292, %c0_293, %c0_294] : memref<2x2x32x128xbf16, #tpu.memory_space<vmem>>, vector<1x1x32x128xbf16>
    %708 = vector.shape_cast %707 : vector<1x1x32x128xbf16> to vector<32x128xbf16>
    %cst_295 = arith.constant dense<0.000000e+00> : vector<8x128xf32>
    %709 = tpu.matmul %706, %708, %cst_295 {dimension_numbers = #tpu.dot_dimension_numbers<[1], [0], [0], [1], [0, 0, 1, 1], [], []>} : vector<8x32xbf16>, vector<32x128xbf16>, vector<8x128xf32> -> vector<8x128xf32>
    %710 = arith.addf %705, %709 : vector<8x128xf32>
    %711 = vector.extract_strided_slice %710 {offsets = [0, 0], sizes = [8, 32], strides = [1, 1]} : vector<8x128xf32> to vector<8x32xf32>
    %712 = arith.negf %711 : vector<8x32xf32>
    %713 = math.exp %712 : vector<8x32xf32>
    %cst_296 = arith.constant 1.000000e+00 : f32
    %714 = vector.broadcast %cst_296 : f32 to vector<8x32xf32>
    %715 = arith.addf %714, %713 : vector<8x32xf32>
    %716 = arith.divf %714, %715 : vector<8x32xf32>
    %717 = vector.extract_strided_slice %710 {offsets = [0, 32], sizes = [8, 32], strides = [1, 1]} : vector<8x128xf32> to vector<8x32xf32>
    %718 = arith.negf %717 : vector<8x32xf32>
    %719 = math.exp %718 : vector<8x32xf32>
    %cst_297 = arith.constant 1.000000e+00 : f32
    %720 = vector.broadcast %cst_297 : f32 to vector<8x32xf32>
    %721 = arith.addf %720, %719 : vector<8x32xf32>
    %722 = arith.divf %720, %721 : vector<8x32xf32>
    %723 = vector.extract_strided_slice %710 {offsets = [0, 64], sizes = [8, 32], strides = [1, 1]} : vector<8x128xf32> to vector<8x32xf32>
    %724 = math.tanh %723 : vector<8x32xf32>
    %725 = vector.extract_strided_slice %710 {offsets = [0, 96], sizes = [8, 32], strides = [1, 1]} : vector<8x128xf32> to vector<8x32xf32>
    %726 = arith.negf %725 : vector<8x32xf32>
    %727 = math.exp %726 : vector<8x32xf32>
    %cst_298 = arith.constant 1.000000e+00 : f32
    %728 = vector.broadcast %cst_298 : f32 to vector<8x32xf32>
    %729 = arith.addf %728, %727 : vector<8x32xf32>
    %730 = arith.divf %728, %729 : vector<8x32xf32>
    %731 = arith.mulf %722, %669 : vector<8x32xf32>
    %732 = arith.mulf %716, %724 : vector<8x32xf32>
    %733 = arith.addf %731, %732 : vector<8x32xf32>
    %734 = math.tanh %733 : vector<8x32xf32>
    %735 = arith.mulf %730, %734 : vector<8x32xf32>
    %c0_299 = arith.constant 0 : index
    %c16_300 = arith.constant 16 : index
    %c0_301 = arith.constant 0 : index
    %736 = vector.load %arg15[%c0_299, %c16_300, %c0_301] : memref<2x64x128xf32, #tpu.memory_space<vmem>>, vector<1x8x128xf32>
    %737 = vector.shape_cast %736 : vector<1x8x128xf32> to vector<8x128xf32>
    %738 = arith.truncf %703 : vector<8x32xf32> to vector<8x32xbf16>
    %c1_302 = arith.constant 1 : index
    %c0_303 = arith.constant 0 : index
    %c0_304 = arith.constant 0 : index
    %c0_305 = arith.constant 0 : index
    %739 = vector.load %arg12[%c1_302, %c0_303, %c0_304, %c0_305] : memref<2x2x32x128xbf16, #tpu.memory_space<vmem>>, vector<1x1x32x128xbf16>
    %740 = vector.shape_cast %739 : vector<1x1x32x128xbf16> to vector<32x128xbf16>
    %cst_306 = arith.constant dense<0.000000e+00> : vector<8x128xf32>
    %741 = tpu.matmul %738, %740, %cst_306 {dimension_numbers = #tpu.dot_dimension_numbers<[1], [0], [0], [1], [0, 0, 1, 1], [], []>} : vector<8x32xbf16>, vector<32x128xbf16>, vector<8x128xf32> -> vector<8x128xf32>
    %742 = arith.addf %737, %741 : vector<8x128xf32>
    %743 = vector.extract_strided_slice %742 {offsets = [0, 0], sizes = [8, 32], strides = [1, 1]} : vector<8x128xf32> to vector<8x32xf32>
    %744 = arith.negf %743 : vector<8x32xf32>
    %745 = math.exp %744 : vector<8x32xf32>
    %cst_307 = arith.constant 1.000000e+00 : f32
    %746 = vector.broadcast %cst_307 : f32 to vector<8x32xf32>
    %747 = arith.addf %746, %745 : vector<8x32xf32>
    %748 = arith.divf %746, %747 : vector<8x32xf32>
    %749 = vector.extract_strided_slice %742 {offsets = [0, 32], sizes = [8, 32], strides = [1, 1]} : vector<8x128xf32> to vector<8x32xf32>
    %750 = arith.negf %749 : vector<8x32xf32>
    %751 = math.exp %750 : vector<8x32xf32>
    %cst_308 = arith.constant 1.000000e+00 : f32
    %752 = vector.broadcast %cst_308 : f32 to vector<8x32xf32>
    %753 = arith.addf %752, %751 : vector<8x32xf32>
    %754 = arith.divf %752, %753 : vector<8x32xf32>
    %755 = vector.extract_strided_slice %742 {offsets = [0, 64], sizes = [8, 32], strides = [1, 1]} : vector<8x128xf32> to vector<8x32xf32>
    %756 = math.tanh %755 : vector<8x32xf32>
    %757 = vector.extract_strided_slice %742 {offsets = [0, 96], sizes = [8, 32], strides = [1, 1]} : vector<8x128xf32> to vector<8x32xf32>
    %758 = arith.negf %757 : vector<8x32xf32>
    %759 = math.exp %758 : vector<8x32xf32>
    %cst_309 = arith.constant 1.000000e+00 : f32
    %760 = vector.broadcast %cst_309 : f32 to vector<8x32xf32>
    %761 = arith.addf %760, %759 : vector<8x32xf32>
    %762 = arith.divf %760, %761 : vector<8x32xf32>
    %763 = arith.mulf %754, %701 : vector<8x32xf32>
    %764 = arith.mulf %748, %756 : vector<8x32xf32>
    %765 = arith.addf %763, %764 : vector<8x32xf32>
    %766 = math.tanh %765 : vector<8x32xf32>
    %767 = arith.mulf %762, %766 : vector<8x32xf32>
    %c1_310 = arith.constant 1 : index
    %c40_311 = arith.constant 40 : index
    %c0_312 = arith.constant 0 : index
    %768 = vector.load %arg15[%c1_310, %c40_311, %c0_312] : memref<2x64x128xf32, #tpu.memory_space<vmem>>, vector<1x8x128xf32>
    %769 = vector.shape_cast %768 : vector<1x8x128xf32> to vector<8x128xf32>
    %770 = arith.truncf %735 : vector<8x32xf32> to vector<8x32xbf16>
    %c1_313 = arith.constant 1 : index
    %c1_314 = arith.constant 1 : index
    %c0_315 = arith.constant 0 : index
    %c0_316 = arith.constant 0 : index
    %771 = vector.load %arg12[%c1_313, %c1_314, %c0_315, %c0_316] : memref<2x2x32x128xbf16, #tpu.memory_space<vmem>>, vector<1x1x32x128xbf16>
    %772 = vector.shape_cast %771 : vector<1x1x32x128xbf16> to vector<32x128xbf16>
    %cst_317 = arith.constant dense<0.000000e+00> : vector<8x128xf32>
    %773 = tpu.matmul %770, %772, %cst_317 {dimension_numbers = #tpu.dot_dimension_numbers<[1], [0], [0], [1], [0, 0, 1, 1], [], []>} : vector<8x32xbf16>, vector<32x128xbf16>, vector<8x128xf32> -> vector<8x128xf32>
    %774 = arith.addf %769, %773 : vector<8x128xf32>
    %775 = vector.extract_strided_slice %774 {offsets = [0, 0], sizes = [8, 32], strides = [1, 1]} : vector<8x128xf32> to vector<8x32xf32>
    %776 = arith.negf %775 : vector<8x32xf32>
    %777 = math.exp %776 : vector<8x32xf32>
    %cst_318 = arith.constant 1.000000e+00 : f32
    %778 = vector.broadcast %cst_318 : f32 to vector<8x32xf32>
    %779 = arith.addf %778, %777 : vector<8x32xf32>
    %780 = arith.divf %778, %779 : vector<8x32xf32>
    %781 = vector.extract_strided_slice %774 {offsets = [0, 32], sizes = [8, 32], strides = [1, 1]} : vector<8x128xf32> to vector<8x32xf32>
    %782 = arith.negf %781 : vector<8x32xf32>
    %783 = math.exp %782 : vector<8x32xf32>
    %cst_319 = arith.constant 1.000000e+00 : f32
    %784 = vector.broadcast %cst_319 : f32 to vector<8x32xf32>
    %785 = arith.addf %784, %783 : vector<8x32xf32>
    %786 = arith.divf %784, %785 : vector<8x32xf32>
    %787 = vector.extract_strided_slice %774 {offsets = [0, 64], sizes = [8, 32], strides = [1, 1]} : vector<8x128xf32> to vector<8x32xf32>
    %788 = math.tanh %787 : vector<8x32xf32>
    %789 = vector.extract_strided_slice %774 {offsets = [0, 96], sizes = [8, 32], strides = [1, 1]} : vector<8x128xf32> to vector<8x32xf32>
    %790 = arith.negf %789 : vector<8x32xf32>
    %791 = math.exp %790 : vector<8x32xf32>
    %cst_320 = arith.constant 1.000000e+00 : f32
    %792 = vector.broadcast %cst_320 : f32 to vector<8x32xf32>
    %793 = arith.addf %792, %791 : vector<8x32xf32>
    %794 = arith.divf %792, %793 : vector<8x32xf32>
    %795 = arith.mulf %786, %733 : vector<8x32xf32>
    %796 = arith.mulf %780, %788 : vector<8x32xf32>
    %797 = arith.addf %795, %796 : vector<8x32xf32>
    %798 = math.tanh %797 : vector<8x32xf32>
    %799 = arith.mulf %794, %798 : vector<8x32xf32>
    %c0_321 = arith.constant 0 : index
    %c24_322 = arith.constant 24 : index
    %c0_323 = arith.constant 0 : index
    %800 = vector.load %arg15[%c0_321, %c24_322, %c0_323] : memref<2x64x128xf32, #tpu.memory_space<vmem>>, vector<1x8x128xf32>
    %801 = vector.shape_cast %800 : vector<1x8x128xf32> to vector<8x128xf32>
    %802 = arith.truncf %767 : vector<8x32xf32> to vector<8x32xbf16>
    %c1_324 = arith.constant 1 : index
    %c0_325 = arith.constant 0 : index
    %c0_326 = arith.constant 0 : index
    %c0_327 = arith.constant 0 : index
    %803 = vector.load %arg12[%c1_324, %c0_325, %c0_326, %c0_327] : memref<2x2x32x128xbf16, #tpu.memory_space<vmem>>, vector<1x1x32x128xbf16>
    %804 = vector.shape_cast %803 : vector<1x1x32x128xbf16> to vector<32x128xbf16>
    %cst_328 = arith.constant dense<0.000000e+00> : vector<8x128xf32>
    %805 = tpu.matmul %802, %804, %cst_328 {dimension_numbers = #tpu.dot_dimension_numbers<[1], [0], [0], [1], [0, 0, 1, 1], [], []>} : vector<8x32xbf16>, vector<32x128xbf16>, vector<8x128xf32> -> vector<8x128xf32>
    %806 = arith.addf %801, %805 : vector<8x128xf32>
    %807 = vector.extract_strided_slice %806 {offsets = [0, 0], sizes = [8, 32], strides = [1, 1]} : vector<8x128xf32> to vector<8x32xf32>
    %808 = arith.negf %807 : vector<8x32xf32>
    %809 = math.exp %808 : vector<8x32xf32>
    %cst_329 = arith.constant 1.000000e+00 : f32
    %810 = vector.broadcast %cst_329 : f32 to vector<8x32xf32>
    %811 = arith.addf %810, %809 : vector<8x32xf32>
    %812 = arith.divf %810, %811 : vector<8x32xf32>
    %813 = vector.extract_strided_slice %806 {offsets = [0, 32], sizes = [8, 32], strides = [1, 1]} : vector<8x128xf32> to vector<8x32xf32>
    %814 = arith.negf %813 : vector<8x32xf32>
    %815 = math.exp %814 : vector<8x32xf32>
    %cst_330 = arith.constant 1.000000e+00 : f32
    %816 = vector.broadcast %cst_330 : f32 to vector<8x32xf32>
    %817 = arith.addf %816, %815 : vector<8x32xf32>
    %818 = arith.divf %816, %817 : vector<8x32xf32>
    %819 = vector.extract_strided_slice %806 {offsets = [0, 64], sizes = [8, 32], strides = [1, 1]} : vector<8x128xf32> to vector<8x32xf32>
    %820 = math.tanh %819 : vector<8x32xf32>
    %821 = vector.extract_strided_slice %806 {offsets = [0, 96], sizes = [8, 32], strides = [1, 1]} : vector<8x128xf32> to vector<8x32xf32>
    %822 = arith.negf %821 : vector<8x32xf32>
    %823 = math.exp %822 : vector<8x32xf32>
    %cst_331 = arith.constant 1.000000e+00 : f32
    %824 = vector.broadcast %cst_331 : f32 to vector<8x32xf32>
    %825 = arith.addf %824, %823 : vector<8x32xf32>
    %826 = arith.divf %824, %825 : vector<8x32xf32>
    %827 = arith.mulf %818, %765 : vector<8x32xf32>
    %828 = arith.mulf %812, %820 : vector<8x32xf32>
    %829 = arith.addf %827, %828 : vector<8x32xf32>
    %830 = math.tanh %829 : vector<8x32xf32>
    %831 = arith.mulf %826, %830 : vector<8x32xf32>
    %c1_332 = arith.constant 1 : index
    %c32_333 = arith.constant 32 : index
    %c0_334 = arith.constant 0 : index
    %832 = vector.load %arg15[%c1_332, %c32_333, %c0_334] : memref<2x64x128xf32, #tpu.memory_space<vmem>>, vector<1x8x128xf32>
    %833 = vector.shape_cast %832 : vector<1x8x128xf32> to vector<8x128xf32>
    %834 = arith.truncf %799 : vector<8x32xf32> to vector<8x32xbf16>
    %c1_335 = arith.constant 1 : index
    %c1_336 = arith.constant 1 : index
    %c0_337 = arith.constant 0 : index
    %c0_338 = arith.constant 0 : index
    %835 = vector.load %arg12[%c1_335, %c1_336, %c0_337, %c0_338] : memref<2x2x32x128xbf16, #tpu.memory_space<vmem>>, vector<1x1x32x128xbf16>
    %836 = vector.shape_cast %835 : vector<1x1x32x128xbf16> to vector<32x128xbf16>
    %cst_339 = arith.constant dense<0.000000e+00> : vector<8x128xf32>
    %837 = tpu.matmul %834, %836, %cst_339 {dimension_numbers = #tpu.dot_dimension_numbers<[1], [0], [0], [1], [0, 0, 1, 1], [], []>} : vector<8x32xbf16>, vector<32x128xbf16>, vector<8x128xf32> -> vector<8x128xf32>
    %838 = arith.addf %833, %837 : vector<8x128xf32>
    %839 = vector.extract_strided_slice %838 {offsets = [0, 0], sizes = [8, 32], strides = [1, 1]} : vector<8x128xf32> to vector<8x32xf32>
    %840 = arith.negf %839 : vector<8x32xf32>
    %841 = math.exp %840 : vector<8x32xf32>
    %cst_340 = arith.constant 1.000000e+00 : f32
    %842 = vector.broadcast %cst_340 : f32 to vector<8x32xf32>
    %843 = arith.addf %842, %841 : vector<8x32xf32>
    %844 = arith.divf %842, %843 : vector<8x32xf32>
    %845 = vector.extract_strided_slice %838 {offsets = [0, 32], sizes = [8, 32], strides = [1, 1]} : vector<8x128xf32> to vector<8x32xf32>
    %846 = arith.negf %845 : vector<8x32xf32>
    %847 = math.exp %846 : vector<8x32xf32>
    %cst_341 = arith.constant 1.000000e+00 : f32
    %848 = vector.broadcast %cst_341 : f32 to vector<8x32xf32>
    %849 = arith.addf %848, %847 : vector<8x32xf32>
    %850 = arith.divf %848, %849 : vector<8x32xf32>
    %851 = vector.extract_strided_slice %838 {offsets = [0, 64], sizes = [8, 32], strides = [1, 1]} : vector<8x128xf32> to vector<8x32xf32>
    %852 = math.tanh %851 : vector<8x32xf32>
    %853 = vector.extract_strided_slice %838 {offsets = [0, 96], sizes = [8, 32], strides = [1, 1]} : vector<8x128xf32> to vector<8x32xf32>
    %854 = arith.negf %853 : vector<8x32xf32>
    %855 = math.exp %854 : vector<8x32xf32>
    %cst_342 = arith.constant 1.000000e+00 : f32
    %856 = vector.broadcast %cst_342 : f32 to vector<8x32xf32>
    %857 = arith.addf %856, %855 : vector<8x32xf32>
    %858 = arith.divf %856, %857 : vector<8x32xf32>
    %859 = arith.mulf %850, %797 : vector<8x32xf32>
    %860 = arith.mulf %844, %852 : vector<8x32xf32>
    %861 = arith.addf %859, %860 : vector<8x32xf32>
    %862 = math.tanh %861 : vector<8x32xf32>
    %863 = arith.mulf %858, %862 : vector<8x32xf32>
    %c0_343 = arith.constant 0 : index
    %c32_344 = arith.constant 32 : index
    %c0_345 = arith.constant 0 : index
    %864 = vector.load %arg15[%c0_343, %c32_344, %c0_345] : memref<2x64x128xf32, #tpu.memory_space<vmem>>, vector<1x8x128xf32>
    %865 = vector.shape_cast %864 : vector<1x8x128xf32> to vector<8x128xf32>
    %866 = arith.truncf %831 : vector<8x32xf32> to vector<8x32xbf16>
    %c1_346 = arith.constant 1 : index
    %c0_347 = arith.constant 0 : index
    %c0_348 = arith.constant 0 : index
    %c0_349 = arith.constant 0 : index
    %867 = vector.load %arg12[%c1_346, %c0_347, %c0_348, %c0_349] : memref<2x2x32x128xbf16, #tpu.memory_space<vmem>>, vector<1x1x32x128xbf16>
    %868 = vector.shape_cast %867 : vector<1x1x32x128xbf16> to vector<32x128xbf16>
    %cst_350 = arith.constant dense<0.000000e+00> : vector<8x128xf32>
    %869 = tpu.matmul %866, %868, %cst_350 {dimension_numbers = #tpu.dot_dimension_numbers<[1], [0], [0], [1], [0, 0, 1, 1], [], []>} : vector<8x32xbf16>, vector<32x128xbf16>, vector<8x128xf32> -> vector<8x128xf32>
    %870 = arith.addf %865, %869 : vector<8x128xf32>
    %871 = vector.extract_strided_slice %870 {offsets = [0, 0], sizes = [8, 32], strides = [1, 1]} : vector<8x128xf32> to vector<8x32xf32>
    %872 = arith.negf %871 : vector<8x32xf32>
    %873 = math.exp %872 : vector<8x32xf32>
    %cst_351 = arith.constant 1.000000e+00 : f32
    %874 = vector.broadcast %cst_351 : f32 to vector<8x32xf32>
    %875 = arith.addf %874, %873 : vector<8x32xf32>
    %876 = arith.divf %874, %875 : vector<8x32xf32>
    %877 = vector.extract_strided_slice %870 {offsets = [0, 32], sizes = [8, 32], strides = [1, 1]} : vector<8x128xf32> to vector<8x32xf32>
    %878 = arith.negf %877 : vector<8x32xf32>
    %879 = math.exp %878 : vector<8x32xf32>
    %cst_352 = arith.constant 1.000000e+00 : f32
    %880 = vector.broadcast %cst_352 : f32 to vector<8x32xf32>
    %881 = arith.addf %880, %879 : vector<8x32xf32>
    %882 = arith.divf %880, %881 : vector<8x32xf32>
    %883 = vector.extract_strided_slice %870 {offsets = [0, 64], sizes = [8, 32], strides = [1, 1]} : vector<8x128xf32> to vector<8x32xf32>
    %884 = math.tanh %883 : vector<8x32xf32>
    %885 = vector.extract_strided_slice %870 {offsets = [0, 96], sizes = [8, 32], strides = [1, 1]} : vector<8x128xf32> to vector<8x32xf32>
    %886 = arith.negf %885 : vector<8x32xf32>
    %887 = math.exp %886 : vector<8x32xf32>
    %cst_353 = arith.constant 1.000000e+00 : f32
    %888 = vector.broadcast %cst_353 : f32 to vector<8x32xf32>
    %889 = arith.addf %888, %887 : vector<8x32xf32>
    %890 = arith.divf %888, %889 : vector<8x32xf32>
    %891 = arith.mulf %882, %829 : vector<8x32xf32>
    %892 = arith.mulf %876, %884 : vector<8x32xf32>
    %893 = arith.addf %891, %892 : vector<8x32xf32>
    %894 = math.tanh %893 : vector<8x32xf32>
    %895 = arith.mulf %890, %894 : vector<8x32xf32>
    %c1_354 = arith.constant 1 : index
    %c24_355 = arith.constant 24 : index
    %c0_356 = arith.constant 0 : index
    %896 = vector.load %arg15[%c1_354, %c24_355, %c0_356] : memref<2x64x128xf32, #tpu.memory_space<vmem>>, vector<1x8x128xf32>
    %897 = vector.shape_cast %896 : vector<1x8x128xf32> to vector<8x128xf32>
    %898 = arith.truncf %863 : vector<8x32xf32> to vector<8x32xbf16>
    %c1_357 = arith.constant 1 : index
    %c1_358 = arith.constant 1 : index
    %c0_359 = arith.constant 0 : index
    %c0_360 = arith.constant 0 : index
    %899 = vector.load %arg12[%c1_357, %c1_358, %c0_359, %c0_360] : memref<2x2x32x128xbf16, #tpu.memory_space<vmem>>, vector<1x1x32x128xbf16>
    %900 = vector.shape_cast %899 : vector<1x1x32x128xbf16> to vector<32x128xbf16>
    %cst_361 = arith.constant dense<0.000000e+00> : vector<8x128xf32>
    %901 = tpu.matmul %898, %900, %cst_361 {dimension_numbers = #tpu.dot_dimension_numbers<[1], [0], [0], [1], [0, 0, 1, 1], [], []>} : vector<8x32xbf16>, vector<32x128xbf16>, vector<8x128xf32> -> vector<8x128xf32>
    %902 = arith.addf %897, %901 : vector<8x128xf32>
    %903 = vector.extract_strided_slice %902 {offsets = [0, 0], sizes = [8, 32], strides = [1, 1]} : vector<8x128xf32> to vector<8x32xf32>
    %904 = arith.negf %903 : vector<8x32xf32>
    %905 = math.exp %904 : vector<8x32xf32>
    %cst_362 = arith.constant 1.000000e+00 : f32
    %906 = vector.broadcast %cst_362 : f32 to vector<8x32xf32>
    %907 = arith.addf %906, %905 : vector<8x32xf32>
    %908 = arith.divf %906, %907 : vector<8x32xf32>
    %909 = vector.extract_strided_slice %902 {offsets = [0, 32], sizes = [8, 32], strides = [1, 1]} : vector<8x128xf32> to vector<8x32xf32>
    %910 = arith.negf %909 : vector<8x32xf32>
    %911 = math.exp %910 : vector<8x32xf32>
    %cst_363 = arith.constant 1.000000e+00 : f32
    %912 = vector.broadcast %cst_363 : f32 to vector<8x32xf32>
    %913 = arith.addf %912, %911 : vector<8x32xf32>
    %914 = arith.divf %912, %913 : vector<8x32xf32>
    %915 = vector.extract_strided_slice %902 {offsets = [0, 64], sizes = [8, 32], strides = [1, 1]} : vector<8x128xf32> to vector<8x32xf32>
    %916 = math.tanh %915 : vector<8x32xf32>
    %917 = vector.extract_strided_slice %902 {offsets = [0, 96], sizes = [8, 32], strides = [1, 1]} : vector<8x128xf32> to vector<8x32xf32>
    %918 = arith.negf %917 : vector<8x32xf32>
    %919 = math.exp %918 : vector<8x32xf32>
    %cst_364 = arith.constant 1.000000e+00 : f32
    %920 = vector.broadcast %cst_364 : f32 to vector<8x32xf32>
    %921 = arith.addf %920, %919 : vector<8x32xf32>
    %922 = arith.divf %920, %921 : vector<8x32xf32>
    %923 = arith.mulf %914, %861 : vector<8x32xf32>
    %924 = arith.mulf %908, %916 : vector<8x32xf32>
    %925 = arith.addf %923, %924 : vector<8x32xf32>
    %926 = math.tanh %925 : vector<8x32xf32>
    %927 = arith.mulf %922, %926 : vector<8x32xf32>
    %c0_365 = arith.constant 0 : index
    %c40_366 = arith.constant 40 : index
    %c0_367 = arith.constant 0 : index
    %928 = vector.load %arg15[%c0_365, %c40_366, %c0_367] : memref<2x64x128xf32, #tpu.memory_space<vmem>>, vector<1x8x128xf32>
    %929 = vector.shape_cast %928 : vector<1x8x128xf32> to vector<8x128xf32>
    %930 = arith.truncf %895 : vector<8x32xf32> to vector<8x32xbf16>
    %c1_368 = arith.constant 1 : index
    %c0_369 = arith.constant 0 : index
    %c0_370 = arith.constant 0 : index
    %c0_371 = arith.constant 0 : index
    %931 = vector.load %arg12[%c1_368, %c0_369, %c0_370, %c0_371] : memref<2x2x32x128xbf16, #tpu.memory_space<vmem>>, vector<1x1x32x128xbf16>
    %932 = vector.shape_cast %931 : vector<1x1x32x128xbf16> to vector<32x128xbf16>
    %cst_372 = arith.constant dense<0.000000e+00> : vector<8x128xf32>
    %933 = tpu.matmul %930, %932, %cst_372 {dimension_numbers = #tpu.dot_dimension_numbers<[1], [0], [0], [1], [0, 0, 1, 1], [], []>} : vector<8x32xbf16>, vector<32x128xbf16>, vector<8x128xf32> -> vector<8x128xf32>
    %934 = arith.addf %929, %933 : vector<8x128xf32>
    %935 = vector.extract_strided_slice %934 {offsets = [0, 0], sizes = [8, 32], strides = [1, 1]} : vector<8x128xf32> to vector<8x32xf32>
    %936 = arith.negf %935 : vector<8x32xf32>
    %937 = math.exp %936 : vector<8x32xf32>
    %cst_373 = arith.constant 1.000000e+00 : f32
    %938 = vector.broadcast %cst_373 : f32 to vector<8x32xf32>
    %939 = arith.addf %938, %937 : vector<8x32xf32>
    %940 = arith.divf %938, %939 : vector<8x32xf32>
    %941 = vector.extract_strided_slice %934 {offsets = [0, 32], sizes = [8, 32], strides = [1, 1]} : vector<8x128xf32> to vector<8x32xf32>
    %942 = arith.negf %941 : vector<8x32xf32>
    %943 = math.exp %942 : vector<8x32xf32>
    %cst_374 = arith.constant 1.000000e+00 : f32
    %944 = vector.broadcast %cst_374 : f32 to vector<8x32xf32>
    %945 = arith.addf %944, %943 : vector<8x32xf32>
    %946 = arith.divf %944, %945 : vector<8x32xf32>
    %947 = vector.extract_strided_slice %934 {offsets = [0, 64], sizes = [8, 32], strides = [1, 1]} : vector<8x128xf32> to vector<8x32xf32>
    %948 = math.tanh %947 : vector<8x32xf32>
    %949 = vector.extract_strided_slice %934 {offsets = [0, 96], sizes = [8, 32], strides = [1, 1]} : vector<8x128xf32> to vector<8x32xf32>
    %950 = arith.negf %949 : vector<8x32xf32>
    %951 = math.exp %950 : vector<8x32xf32>
    %cst_375 = arith.constant 1.000000e+00 : f32
    %952 = vector.broadcast %cst_375 : f32 to vector<8x32xf32>
    %953 = arith.addf %952, %951 : vector<8x32xf32>
    %954 = arith.divf %952, %953 : vector<8x32xf32>
    %955 = arith.mulf %946, %893 : vector<8x32xf32>
    %956 = arith.mulf %940, %948 : vector<8x32xf32>
    %957 = arith.addf %955, %956 : vector<8x32xf32>
    %958 = math.tanh %957 : vector<8x32xf32>
    %959 = arith.mulf %954, %958 : vector<8x32xf32>
    %c1_376 = arith.constant 1 : index
    %c16_377 = arith.constant 16 : index
    %c0_378 = arith.constant 0 : index
    %960 = vector.load %arg15[%c1_376, %c16_377, %c0_378] : memref<2x64x128xf32, #tpu.memory_space<vmem>>, vector<1x8x128xf32>
    %961 = vector.shape_cast %960 : vector<1x8x128xf32> to vector<8x128xf32>
    %962 = arith.truncf %927 : vector<8x32xf32> to vector<8x32xbf16>
    %c1_379 = arith.constant 1 : index
    %c1_380 = arith.constant 1 : index
    %c0_381 = arith.constant 0 : index
    %c0_382 = arith.constant 0 : index
    %963 = vector.load %arg12[%c1_379, %c1_380, %c0_381, %c0_382] : memref<2x2x32x128xbf16, #tpu.memory_space<vmem>>, vector<1x1x32x128xbf16>
    %964 = vector.shape_cast %963 : vector<1x1x32x128xbf16> to vector<32x128xbf16>
    %cst_383 = arith.constant dense<0.000000e+00> : vector<8x128xf32>
    %965 = tpu.matmul %962, %964, %cst_383 {dimension_numbers = #tpu.dot_dimension_numbers<[1], [0], [0], [1], [0, 0, 1, 1], [], []>} : vector<8x32xbf16>, vector<32x128xbf16>, vector<8x128xf32> -> vector<8x128xf32>
    %966 = arith.addf %961, %965 : vector<8x128xf32>
    %967 = vector.extract_strided_slice %966 {offsets = [0, 0], sizes = [8, 32], strides = [1, 1]} : vector<8x128xf32> to vector<8x32xf32>
    %968 = arith.negf %967 : vector<8x32xf32>
    %969 = math.exp %968 : vector<8x32xf32>
    %cst_384 = arith.constant 1.000000e+00 : f32
    %970 = vector.broadcast %cst_384 : f32 to vector<8x32xf32>
    %971 = arith.addf %970, %969 : vector<8x32xf32>
    %972 = arith.divf %970, %971 : vector<8x32xf32>
    %973 = vector.extract_strided_slice %966 {offsets = [0, 32], sizes = [8, 32], strides = [1, 1]} : vector<8x128xf32> to vector<8x32xf32>
    %974 = arith.negf %973 : vector<8x32xf32>
    %975 = math.exp %974 : vector<8x32xf32>
    %cst_385 = arith.constant 1.000000e+00 : f32
    %976 = vector.broadcast %cst_385 : f32 to vector<8x32xf32>
    %977 = arith.addf %976, %975 : vector<8x32xf32>
    %978 = arith.divf %976, %977 : vector<8x32xf32>
    %979 = vector.extract_strided_slice %966 {offsets = [0, 64], sizes = [8, 32], strides = [1, 1]} : vector<8x128xf32> to vector<8x32xf32>
    %980 = math.tanh %979 : vector<8x32xf32>
    %981 = vector.extract_strided_slice %966 {offsets = [0, 96], sizes = [8, 32], strides = [1, 1]} : vector<8x128xf32> to vector<8x32xf32>
    %982 = arith.negf %981 : vector<8x32xf32>
    %983 = math.exp %982 : vector<8x32xf32>
    %cst_386 = arith.constant 1.000000e+00 : f32
    %984 = vector.broadcast %cst_386 : f32 to vector<8x32xf32>
    %985 = arith.addf %984, %983 : vector<8x32xf32>
    %986 = arith.divf %984, %985 : vector<8x32xf32>
    %987 = arith.mulf %978, %925 : vector<8x32xf32>
    %988 = arith.mulf %972, %980 : vector<8x32xf32>
    %989 = arith.addf %987, %988 : vector<8x32xf32>
    %990 = math.tanh %989 : vector<8x32xf32>
    %991 = arith.mulf %986, %990 : vector<8x32xf32>
    %c0_387 = arith.constant 0 : index
    %c48_388 = arith.constant 48 : index
    %c0_389 = arith.constant 0 : index
    %992 = vector.load %arg15[%c0_387, %c48_388, %c0_389] : memref<2x64x128xf32, #tpu.memory_space<vmem>>, vector<1x8x128xf32>
    %993 = vector.shape_cast %992 : vector<1x8x128xf32> to vector<8x128xf32>
    %994 = arith.truncf %959 : vector<8x32xf32> to vector<8x32xbf16>
    %c1_390 = arith.constant 1 : index
    %c0_391 = arith.constant 0 : index
    %c0_392 = arith.constant 0 : index
    %c0_393 = arith.constant 0 : index
    %995 = vector.load %arg12[%c1_390, %c0_391, %c0_392, %c0_393] : memref<2x2x32x128xbf16, #tpu.memory_space<vmem>>, vector<1x1x32x128xbf16>
    %996 = vector.shape_cast %995 : vector<1x1x32x128xbf16> to vector<32x128xbf16>
    %cst_394 = arith.constant dense<0.000000e+00> : vector<8x128xf32>
    %997 = tpu.matmul %994, %996, %cst_394 {dimension_numbers = #tpu.dot_dimension_numbers<[1], [0], [0], [1], [0, 0, 1, 1], [], []>} : vector<8x32xbf16>, vector<32x128xbf16>, vector<8x128xf32> -> vector<8x128xf32>
    %998 = arith.addf %993, %997 : vector<8x128xf32>
    %999 = vector.extract_strided_slice %998 {offsets = [0, 0], sizes = [8, 32], strides = [1, 1]} : vector<8x128xf32> to vector<8x32xf32>
    %1000 = arith.negf %999 : vector<8x32xf32>
    %1001 = math.exp %1000 : vector<8x32xf32>
    %cst_395 = arith.constant 1.000000e+00 : f32
    %1002 = vector.broadcast %cst_395 : f32 to vector<8x32xf32>
    %1003 = arith.addf %1002, %1001 : vector<8x32xf32>
    %1004 = arith.divf %1002, %1003 : vector<8x32xf32>
    %1005 = vector.extract_strided_slice %998 {offsets = [0, 32], sizes = [8, 32], strides = [1, 1]} : vector<8x128xf32> to vector<8x32xf32>
    %1006 = arith.negf %1005 : vector<8x32xf32>
    %1007 = math.exp %1006 : vector<8x32xf32>
    %cst_396 = arith.constant 1.000000e+00 : f32
    %1008 = vector.broadcast %cst_396 : f32 to vector<8x32xf32>
    %1009 = arith.addf %1008, %1007 : vector<8x32xf32>
    %1010 = arith.divf %1008, %1009 : vector<8x32xf32>
    %1011 = vector.extract_strided_slice %998 {offsets = [0, 64], sizes = [8, 32], strides = [1, 1]} : vector<8x128xf32> to vector<8x32xf32>
    %1012 = math.tanh %1011 : vector<8x32xf32>
    %1013 = vector.extract_strided_slice %998 {offsets = [0, 96], sizes = [8, 32], strides = [1, 1]} : vector<8x128xf32> to vector<8x32xf32>
    %1014 = arith.negf %1013 : vector<8x32xf32>
    %1015 = math.exp %1014 : vector<8x32xf32>
    %cst_397 = arith.constant 1.000000e+00 : f32
    %1016 = vector.broadcast %cst_397 : f32 to vector<8x32xf32>
    %1017 = arith.addf %1016, %1015 : vector<8x32xf32>
    %1018 = arith.divf %1016, %1017 : vector<8x32xf32>
    %1019 = arith.mulf %1010, %957 : vector<8x32xf32>
    %1020 = arith.mulf %1004, %1012 : vector<8x32xf32>
    %1021 = arith.addf %1019, %1020 : vector<8x32xf32>
    %1022 = math.tanh %1021 : vector<8x32xf32>
    %1023 = arith.mulf %1018, %1022 : vector<8x32xf32>
    %c1_398 = arith.constant 1 : index
    %c8_399 = arith.constant 8 : index
    %c0_400 = arith.constant 0 : index
    %1024 = vector.load %arg15[%c1_398, %c8_399, %c0_400] : memref<2x64x128xf32, #tpu.memory_space<vmem>>, vector<1x8x128xf32>
    %1025 = vector.shape_cast %1024 : vector<1x8x128xf32> to vector<8x128xf32>
    %1026 = arith.truncf %991 : vector<8x32xf32> to vector<8x32xbf16>
    %c1_401 = arith.constant 1 : index
    %c1_402 = arith.constant 1 : index
    %c0_403 = arith.constant 0 : index
    %c0_404 = arith.constant 0 : index
    %1027 = vector.load %arg12[%c1_401, %c1_402, %c0_403, %c0_404] : memref<2x2x32x128xbf16, #tpu.memory_space<vmem>>, vector<1x1x32x128xbf16>
    %1028 = vector.shape_cast %1027 : vector<1x1x32x128xbf16> to vector<32x128xbf16>
    %cst_405 = arith.constant dense<0.000000e+00> : vector<8x128xf32>
    %1029 = tpu.matmul %1026, %1028, %cst_405 {dimension_numbers = #tpu.dot_dimension_numbers<[1], [0], [0], [1], [0, 0, 1, 1], [], []>} : vector<8x32xbf16>, vector<32x128xbf16>, vector<8x128xf32> -> vector<8x128xf32>
    %1030 = arith.addf %1025, %1029 : vector<8x128xf32>
    %1031 = vector.extract_strided_slice %1030 {offsets = [0, 0], sizes = [8, 32], strides = [1, 1]} : vector<8x128xf32> to vector<8x32xf32>
    %1032 = arith.negf %1031 : vector<8x32xf32>
    %1033 = math.exp %1032 : vector<8x32xf32>
    %cst_406 = arith.constant 1.000000e+00 : f32
    %1034 = vector.broadcast %cst_406 : f32 to vector<8x32xf32>
    %1035 = arith.addf %1034, %1033 : vector<8x32xf32>
    %1036 = arith.divf %1034, %1035 : vector<8x32xf32>
    %1037 = vector.extract_strided_slice %1030 {offsets = [0, 32], sizes = [8, 32], strides = [1, 1]} : vector<8x128xf32> to vector<8x32xf32>
    %1038 = arith.negf %1037 : vector<8x32xf32>
    %1039 = math.exp %1038 : vector<8x32xf32>
    %cst_407 = arith.constant 1.000000e+00 : f32
    %1040 = vector.broadcast %cst_407 : f32 to vector<8x32xf32>
    %1041 = arith.addf %1040, %1039 : vector<8x32xf32>
    %1042 = arith.divf %1040, %1041 : vector<8x32xf32>
    %1043 = vector.extract_strided_slice %1030 {offsets = [0, 64], sizes = [8, 32], strides = [1, 1]} : vector<8x128xf32> to vector<8x32xf32>
    %1044 = math.tanh %1043 : vector<8x32xf32>
    %1045 = vector.extract_strided_slice %1030 {offsets = [0, 96], sizes = [8, 32], strides = [1, 1]} : vector<8x128xf32> to vector<8x32xf32>
    %1046 = arith.negf %1045 : vector<8x32xf32>
    %1047 = math.exp %1046 : vector<8x32xf32>
    %cst_408 = arith.constant 1.000000e+00 : f32
    %1048 = vector.broadcast %cst_408 : f32 to vector<8x32xf32>
    %1049 = arith.addf %1048, %1047 : vector<8x32xf32>
    %1050 = arith.divf %1048, %1049 : vector<8x32xf32>
    %1051 = arith.mulf %1042, %989 : vector<8x32xf32>
    %1052 = arith.mulf %1036, %1044 : vector<8x32xf32>
    %1053 = arith.addf %1051, %1052 : vector<8x32xf32>
    %1054 = math.tanh %1053 : vector<8x32xf32>
    %1055 = arith.mulf %1050, %1054 : vector<8x32xf32>
    %c0_409 = arith.constant 0 : index
    %c56_410 = arith.constant 56 : index
    %c0_411 = arith.constant 0 : index
    %1056 = vector.load %arg15[%c0_409, %c56_410, %c0_411] : memref<2x64x128xf32, #tpu.memory_space<vmem>>, vector<1x8x128xf32>
    %1057 = vector.shape_cast %1056 : vector<1x8x128xf32> to vector<8x128xf32>
    %1058 = arith.truncf %1023 : vector<8x32xf32> to vector<8x32xbf16>
    %c1_412 = arith.constant 1 : index
    %c0_413 = arith.constant 0 : index
    %c0_414 = arith.constant 0 : index
    %c0_415 = arith.constant 0 : index
    %1059 = vector.load %arg12[%c1_412, %c0_413, %c0_414, %c0_415] : memref<2x2x32x128xbf16, #tpu.memory_space<vmem>>, vector<1x1x32x128xbf16>
    %1060 = vector.shape_cast %1059 : vector<1x1x32x128xbf16> to vector<32x128xbf16>
    %cst_416 = arith.constant dense<0.000000e+00> : vector<8x128xf32>
    %1061 = tpu.matmul %1058, %1060, %cst_416 {dimension_numbers = #tpu.dot_dimension_numbers<[1], [0], [0], [1], [0, 0, 1, 1], [], []>} : vector<8x32xbf16>, vector<32x128xbf16>, vector<8x128xf32> -> vector<8x128xf32>
    %1062 = arith.addf %1057, %1061 : vector<8x128xf32>
    %1063 = vector.extract_strided_slice %1062 {offsets = [0, 0], sizes = [8, 32], strides = [1, 1]} : vector<8x128xf32> to vector<8x32xf32>
    %1064 = arith.negf %1063 : vector<8x32xf32>
    %1065 = math.exp %1064 : vector<8x32xf32>
    %cst_417 = arith.constant 1.000000e+00 : f32
    %1066 = vector.broadcast %cst_417 : f32 to vector<8x32xf32>
    %1067 = arith.addf %1066, %1065 : vector<8x32xf32>
    %1068 = arith.divf %1066, %1067 : vector<8x32xf32>
    %1069 = vector.extract_strided_slice %1062 {offsets = [0, 32], sizes = [8, 32], strides = [1, 1]} : vector<8x128xf32> to vector<8x32xf32>
    %1070 = arith.negf %1069 : vector<8x32xf32>
    %1071 = math.exp %1070 : vector<8x32xf32>
    %cst_418 = arith.constant 1.000000e+00 : f32
    %1072 = vector.broadcast %cst_418 : f32 to vector<8x32xf32>
    %1073 = arith.addf %1072, %1071 : vector<8x32xf32>
    %1074 = arith.divf %1072, %1073 : vector<8x32xf32>
    %1075 = vector.extract_strided_slice %1062 {offsets = [0, 64], sizes = [8, 32], strides = [1, 1]} : vector<8x128xf32> to vector<8x32xf32>
    %1076 = math.tanh %1075 : vector<8x32xf32>
    %1077 = vector.extract_strided_slice %1062 {offsets = [0, 96], sizes = [8, 32], strides = [1, 1]} : vector<8x128xf32> to vector<8x32xf32>
    %1078 = arith.negf %1077 : vector<8x32xf32>
    %1079 = math.exp %1078 : vector<8x32xf32>
    %cst_419 = arith.constant 1.000000e+00 : f32
    %1080 = vector.broadcast %cst_419 : f32 to vector<8x32xf32>
    %1081 = arith.addf %1080, %1079 : vector<8x32xf32>
    %1082 = arith.divf %1080, %1081 : vector<8x32xf32>
    %1083 = arith.mulf %1074, %1021 : vector<8x32xf32>
    %1084 = arith.mulf %1068, %1076 : vector<8x32xf32>
    %1085 = arith.addf %1083, %1084 : vector<8x32xf32>
    %1086 = math.tanh %1085 : vector<8x32xf32>
    %1087 = arith.mulf %1082, %1086 : vector<8x32xf32>
    %c1_420 = arith.constant 1 : index
    %c0_421 = arith.constant 0 : index
    %c0_422 = arith.constant 0 : index
    %1088 = vector.load %arg15[%c1_420, %c0_421, %c0_422] : memref<2x64x128xf32, #tpu.memory_space<vmem>>, vector<1x8x128xf32>
    %1089 = vector.shape_cast %1088 : vector<1x8x128xf32> to vector<8x128xf32>
    %1090 = arith.truncf %1055 : vector<8x32xf32> to vector<8x32xbf16>
    %c1_423 = arith.constant 1 : index
    %c1_424 = arith.constant 1 : index
    %c0_425 = arith.constant 0 : index
    %c0_426 = arith.constant 0 : index
    %1091 = vector.load %arg12[%c1_423, %c1_424, %c0_425, %c0_426] : memref<2x2x32x128xbf16, #tpu.memory_space<vmem>>, vector<1x1x32x128xbf16>
    %1092 = vector.shape_cast %1091 : vector<1x1x32x128xbf16> to vector<32x128xbf16>
    %cst_427 = arith.constant dense<0.000000e+00> : vector<8x128xf32>
    %1093 = tpu.matmul %1090, %1092, %cst_427 {dimension_numbers = #tpu.dot_dimension_numbers<[1], [0], [0], [1], [0, 0, 1, 1], [], []>} : vector<8x32xbf16>, vector<32x128xbf16>, vector<8x128xf32> -> vector<8x128xf32>
    %1094 = arith.addf %1089, %1093 : vector<8x128xf32>
    %1095 = vector.extract_strided_slice %1094 {offsets = [0, 0], sizes = [8, 32], strides = [1, 1]} : vector<8x128xf32> to vector<8x32xf32>
    %1096 = arith.negf %1095 : vector<8x32xf32>
    %1097 = math.exp %1096 : vector<8x32xf32>
    %cst_428 = arith.constant 1.000000e+00 : f32
    %1098 = vector.broadcast %cst_428 : f32 to vector<8x32xf32>
    %1099 = arith.addf %1098, %1097 : vector<8x32xf32>
    %1100 = arith.divf %1098, %1099 : vector<8x32xf32>
    %1101 = vector.extract_strided_slice %1094 {offsets = [0, 32], sizes = [8, 32], strides = [1, 1]} : vector<8x128xf32> to vector<8x32xf32>
    %1102 = arith.negf %1101 : vector<8x32xf32>
    %1103 = math.exp %1102 : vector<8x32xf32>
    %cst_429 = arith.constant 1.000000e+00 : f32
    %1104 = vector.broadcast %cst_429 : f32 to vector<8x32xf32>
    %1105 = arith.addf %1104, %1103 : vector<8x32xf32>
    %1106 = arith.divf %1104, %1105 : vector<8x32xf32>
    %1107 = vector.extract_strided_slice %1094 {offsets = [0, 64], sizes = [8, 32], strides = [1, 1]} : vector<8x128xf32> to vector<8x32xf32>
    %1108 = math.tanh %1107 : vector<8x32xf32>
    %1109 = vector.extract_strided_slice %1094 {offsets = [0, 96], sizes = [8, 32], strides = [1, 1]} : vector<8x128xf32> to vector<8x32xf32>
    %1110 = arith.negf %1109 : vector<8x32xf32>
    %1111 = math.exp %1110 : vector<8x32xf32>
    %cst_430 = arith.constant 1.000000e+00 : f32
    %1112 = vector.broadcast %cst_430 : f32 to vector<8x32xf32>
    %1113 = arith.addf %1112, %1111 : vector<8x32xf32>
    %1114 = arith.divf %1112, %1113 : vector<8x32xf32>
    %1115 = arith.mulf %1106, %1053 : vector<8x32xf32>
    %1116 = arith.mulf %1100, %1108 : vector<8x32xf32>
    %1117 = arith.addf %1115, %1116 : vector<8x32xf32>
    %1118 = math.tanh %1117 : vector<8x32xf32>
    %1119 = arith.mulf %1114, %1118 : vector<8x32xf32>
    %1120 = arith.truncf %1119 : vector<8x32xf32> to vector<8x32xbf16>
    %c0_431 = arith.constant 0 : index
    %c0_432 = arith.constant 0 : index
    %c0_433 = arith.constant 0 : index
    %1121 = vector.load %arg13[%c0_431, %c0_432, %c0_433] : memref<2x32x128xbf16, #tpu.memory_space<vmem>>, vector<1x32x128xbf16>
    %1122 = vector.shape_cast %1121 : vector<1x32x128xbf16> to vector<32x128xbf16>
    %cst_434 = arith.constant dense<0.000000e+00> : vector<8x128xf32>
    %1123 = tpu.matmul %1120, %1122, %cst_434 {dimension_numbers = #tpu.dot_dimension_numbers<[1], [0], [0], [1], [0, 0, 1, 1], [], []>} : vector<8x32xbf16>, vector<32x128xbf16>, vector<8x128xf32> -> vector<8x128xf32>
    %1124 = arith.truncf %1087 : vector<8x32xf32> to vector<8x32xbf16>
    %c1_435 = arith.constant 1 : index
    %c0_436 = arith.constant 0 : index
    %c0_437 = arith.constant 0 : index
    %1125 = vector.load %arg13[%c1_435, %c0_436, %c0_437] : memref<2x32x128xbf16, #tpu.memory_space<vmem>>, vector<1x32x128xbf16>
    %1126 = vector.shape_cast %1125 : vector<1x32x128xbf16> to vector<32x128xbf16>
    %cst_438 = arith.constant dense<0.000000e+00> : vector<8x128xf32>
    %1127 = tpu.matmul %1124, %1126, %cst_438 {dimension_numbers = #tpu.dot_dimension_numbers<[1], [0], [0], [1], [0, 0, 1, 1], [], []>} : vector<8x32xbf16>, vector<32x128xbf16>, vector<8x128xf32> -> vector<8x128xf32>
    %1128 = arith.addf %1123, %1127 : vector<8x128xf32>
    %c0_439 = arith.constant 0 : index
    %c0_440 = arith.constant 0 : index
    %1129 = vector.load %arg7[%c0_439, %c0_440] : memref<1x128xf32, #tpu.memory_space<vmem>>, vector<1x128xf32>
    %1130 = vector.broadcast %1129 : vector<1x128xf32> to vector<8x128xf32>
    %1131 = arith.addf %1128, %1130 : vector<8x128xf32>
    %c0_441 = arith.constant 0 : index
    %c0_442 = arith.constant 0 : index
    %1132 = vector.load %arg8[%c0_441, %c0_442] : memref<8x128xf32, #tpu.memory_space<vmem>>, vector<8x128xf32>
    tpu.vector_store %arg8[%c0_441, %c0_442], %1131 {strides = array<i32>} : memref<8x128xf32, #tpu.memory_space<vmem>>, vector<8x128xf32>,
    return
  }
  func.func @transform_4(%arg0: i32) -> (i32, i32, i32, i32) {
    %c0_i32 = arith.constant 0 : i32
    %c0_i32_0 = arith.constant 0 : i32
    %c0_i32_1 = arith.constant 0 : i32
    %c0_i32_2 = arith.constant 0 : i32
    %c0_i32_3 = arith.constant 0 : i32
    return %c0_i32, %c0_i32_0, %c0_i32_1, %c0_i32_2 : i32, i32, i32, i32
  }
  func.func @transform_6(%arg0: i32) -> (i32, i32) {
    %c0_i32 = arith.constant 0 : i32
    %c0_i32_0 = arith.constant 0 : i32
    %c0_i32_1 = arith.constant 0 : i32
    return %c0_i32, %c0_i32_0 : i32, i32
  }
  func.func @transform_7(%arg0: i32) -> (i32, i32) {
    %c0_i32 = arith.constant 0 : i32
    %c0_i32_0 = arith.constant 0 : i32
    %c0_i32_1 = arith.constant 0 : i32
    return %c0_i32, %c0_i32_0 : i32, i32
  }
}

</mosaic_0001>

<llo_original>
// kernel: lstm_model_forward.1
$region0: #{lstm_model_forward.1}
  #allocation0 [shape = 'u32[]', space=smem, size = 0x4, offset = 0x4, fixed_abs, tag = 'smem constant byte address 0x4 - core index']
  #allocation1 [shape = 'u32[144,128]{1,0:T(1,128)}', space=vmem, size = 0x12000, scoped, tag = 'internal scratch']
  #allocation2 [shape = 'bf16[64,128]{1,0:T(16,128)(2,1)}', space=vmem, size = 0x4000, scoped, tag = 'scratch operand']
  #allocation3 [shape = 'bf16[2,128,128]{2,1,0:T(16,128)(2,1)}', space=vmem, size = 0x10000, scoped, tag = 'scratch operand']
  #allocation4 [shape = 'bf16[1,2,64,128]{3,2,1,0:T(16,128)(2,1)}', space=vmem, size = 0x8000, scoped, tag = 'scratch operand']
  #allocation5 [shape = 'bf16[2,2,32,128]{3,2,1,0:T(16,128)(2,1)}', space=vmem, size = 0x8000, scoped, tag = 'scratch operand']
  #allocation6 [shape = 'bf16[2,32,128]{2,1,0:T(16,128)(2,1)}', space=vmem, size = 0x4000, scoped, tag = 'scratch operand']
  #allocation7 [shape = 'bf16[64,64]{1,0:T(16,128)(2,1)}', space=vmem, size = 0x4000, scoped, tag = 'scratch operand']
  #allocation8 [shape = 'f32[2,64,128]{2,1,0:T(8,128)}', space=vmem, size = 0x10000, scoped, tag = 'scratch operand']
  #allocation9 [shape = 's32[5]{0}', space=sflag, size = 0x14, scoped, tag = 'scratch operand']
  #allocation10 [shape = 's32[]', space=sflag, size = 0x4, offset = 0, fixed_abs, tag = 'sflag constant byte address 0x0 - dummy sync flag']
  #allocation11 [shape = 's32[]', space=sflag, size = 0x4, offset = 0, fixed_abs, tag = 'sflag constant byte address 0x0 - dummy sync flag']
  #allocation12 [shape = 's32[]', space=sflag, size = 0x4, offset = 0, fixed_abs, tag = 'sflag constant byte address 0x0 - dummy sync flag']
  #allocation13 [shape = 'u32[]', space=smem, size = 0x4, offset = 0x44, fixed_abs, tag = 'smem constant byte address 0x44 - assertion arg 0']
  #allocation14 [shape = 'u32[]', space=smem, size = 0x4, offset = 0x48, fixed_abs, tag = 'smem constant byte address 0x48 - assertion arg 1']
  #allocation15 [shape = 's32[]', space=sflag, size = 0x4, offset = 0, fixed_abs, tag = 'sflag constant byte address 0x0 - dummy sync flag']
  #allocation16 [shape = 's32[]', space=sflag, size = 0x4, offset = 0, fixed_abs, tag = 'sflag constant byte address 0x0 - dummy sync flag']
  #allocation17 [shape = 's32[]', space=sflag, size = 0x4, offset = 0, fixed_abs, tag = 'sflag constant byte address 0x0 - dummy sync flag']
  #allocation18 [shape = 's32[]', space=sflag, size = 0x4, offset = 0, fixed_abs, tag = 'sflag constant byte address 0x0 - dummy sync flag']
  %s0 = inlined_call_operand.vmem [shape: bf16[64,128], index: 0, kind: input, shape index: {}]
  %s1 = inlined_call_operand.hbm [shape: bf16[2,128,128], index: 1, kind: input, shape index: {}]
  %s2 = inlined_call_operand.vmem [shape: bf16[1,2,64,128], index: 2, kind: input, shape index: {}]
  %s3 = inlined_call_operand.hbm [shape: bf16[2,2,32,128], index: 3, kind: input, shape index: {}]
  %s4 = inlined_call_operand.vmem [shape: f32[2,2,1,128], index: 4, kind: input, shape index: {}]
  %s5 = inlined_call_operand.vmem [shape: bf16[2,32,128], index: 5, kind: input, shape index: {}]
  %s6 = inlined_call_operand.vmem [shape: f32[1,128], index: 6, kind: input, shape index: {}]
  %s7 = inlined_call_operand.vmem [shape: f32[8,128], index: 7, kind: output, shape index: {}]
  %s8 = sld [smem:[#allocation0]]
  $region128: #{lstm_model_forward.1} parent=0
    _
  %s10 = ssub.s32 1, %s8
  %s11 = scalar_select 0, %s10, %s8
  // Predicated region
  $region2: #{lstm_model_forward.1} parent=0 // pred_check
    _
  $region3: #{lstm_model_forward.1} parent=0 // pred_check_branch
    %13 = sbr.rel (0) target = $region5
  $region4: #{lstm_model_forward.1} parent=0 // pred_region
    _
  $region5: #{lstm_model_forward.1} parent=0 // pred_fallthru
    _
  // Predicated region
  $region6: #{lstm_model_forward.1} parent=0 // pred_check
    _
  $region7: #{lstm_model_forward.1} parent=0 // pred_check_branch
    %15 = sbr.rel (0) target = $region9
  $region8: #{lstm_model_forward.1} parent=0 // pred_region
    _
  $region9: #{lstm_model_forward.1} parent=0 // pred_fallthru
    _
  %p18 = scmp.lt.u32.totalorder 32, 8
  %p19 = pneg %p18
  // Predicated region
  $region10: #{lstm_model_forward.1} parent=0 // pred_check
    _
  $region11: #{lstm_model_forward.1} parent=0 // pred_check_branch
    %21 = sbr.rel (%p18) target = $region13
  $region12: #{lstm_model_forward.1} parent=0 // pred_region
    %s36 = sand.u32 32, 7
    %p37 = scmp.eq.s32.totalorder %s36, 0
    // Predicated region
    $region25: #{lstm_model_forward.1} parent=12 // pred_check
      %p38 = pneg %p37
    $region26: #{lstm_model_forward.1} parent=12 // pred_check_branch
      %40 = sbr.rel (%p38) target = $region28
    $region27: #{lstm_model_forward.1} parent=12 // pred_region
      loop: start=0, step=1, limit=1
      $region29: #{lstm_model_forward.1} parent=27 // loop_pre_header
        _
      $region30: #{lstm_model_forward.1} parent=27 // loop_header
        %s42 = sphi 0, %s46
        %p43 = scmp.ge.s32.totalorder %s42, 1
        %s47 = sphi %s0, %s0
        %s48 = sphi [#allocation2], [#allocation2]
      $region31: #{lstm_model_forward.1} parent=27 // loop_header_branch
        %45 = sbr.rel (%p43) target = $region35
      $region32: #{lstm_model_forward.1} parent=27 // loop_body
        %v49 = vld [vmem:[%s47] sm:$0xff]
        %50 = vst [vmem:[%s48] sm:$0xff] %v49
        %v51 = vld [vmem:[%s47 + $0x8] sm:$0xff]
        %52 = vst [vmem:[%s48 + $0x8] sm:$0xff] %v51
        %v53 = vld [vmem:[%s47 + $0x10] sm:$0xff]
        %54 = vst [vmem:[%s48 + $0x10] sm:$0xff] %v53
        %v55 = vld [vmem:[%s47 + $0x18] sm:$0xff]
        %56 = vst [vmem:[%s48 + $0x18] sm:$0xff] %v55
      $region33: #{lstm_model_forward.1} parent=27 // loop_footer
        %s46 = sadd.s32 1, %s42
      $region34: #{lstm_model_forward.1} parent=27 // loop_footer_branch
        %41 = sbr.rel target = $region30
      $region35: #{lstm_model_forward.1} parent=27 // loop_exit
        _
    $region28: #{lstm_model_forward.1} parent=12 // pred_fallthru
      _
    %p57 = pneg %p37
    // Predicated region
    $region36: #{lstm_model_forward.1} parent=12 // pred_check
      _
    $region37: #{lstm_model_forward.1} parent=12 // pred_check_branch
      %59 = sbr.rel (%p37) target = $region39
    $region38: #{lstm_model_forward.1} parent=12 // pred_region
      %s60 = sand.u32 32, 7
    $region39: #{lstm_model_forward.1} parent=12 // pred_fallthru
      _
  $region13: #{lstm_model_forward.1} parent=0 // pred_fallthru
    _
  // Predicated region
  $region14: #{lstm_model_forward.1} parent=0 // pred_check
    %p22 = pneg %p18
  $region15: #{lstm_model_forward.1} parent=0 // pred_check_branch
    %24 = sbr.rel (%p22) target = $region17
  $region16: #{lstm_model_forward.1} parent=0 // pred_region
    %s25 = sshllo.u32 0, 32
    loop: start=0, step=1, limit=1
    $region18: #{lstm_model_forward.1} parent=16 // loop_pre_header
      _
    $region19: #{lstm_model_forward.1} parent=16 // loop_header
      %s27 = sphi 0, %s31
      %p28 = scmp.ge.s32.totalorder %s27, 1
      %s32 = sphi %s0, %s0
      %s33 = sphi [#allocation2], [#allocation2]
    $region20: #{lstm_model_forward.1} parent=16 // loop_header_branch
      %30 = sbr.rel (%p28) target = $region24
    $region21: #{lstm_model_forward.1} parent=16 // loop_body
      %v34 = vld [vmem:[%s32] sm:%s25]
      %35 = vst [vmem:[%s33] sm:%s25] %v34
    $region22: #{lstm_model_forward.1} parent=16 // loop_footer
      %s31 = sadd.s32 1, %s27
    $region23: #{lstm_model_forward.1} parent=16 // loop_footer_branch
      %26 = sbr.rel target = $region19
    $region24: #{lstm_model_forward.1} parent=16 // loop_exit
      _
  $region17: #{lstm_model_forward.1} parent=0 // pred_fallthru
    _
  // Predicated region
  $region40: #{lstm_model_forward.1} parent=0 // pred_check
    _
  $region41: #{lstm_model_forward.1} parent=0 // pred_check_branch
    %63 = sbr.rel (0) target = $region43
  $region42: #{lstm_model_forward.1} parent=0 // pred_region
    %64 = vsyncadd [#allocation9], 512
  $region43: #{lstm_model_forward.1} parent=0 // pred_fallthru
    _
  %s65 = scalar_lea.sflag [#allocation9], 1
  // Predicated region
  $region44: #{lstm_model_forward.1} parent=0 // pred_check
    _
  $region45: #{lstm_model_forward.1} parent=0 // pred_check_branch
    %67 = sbr.rel target = $region47
  $region46: #{lstm_model_forward.1} parent=0 // pred_region
    %68 = sst [smem:[#allocation13]] [#allocation12]
    %69 = sst [smem:[#allocation14]] [#allocation11]
  $region47: #{lstm_model_forward.1} parent=0 // pred_fallthru
    _
  %71 = shalt.err (0)
  %s73 = sshll.u32 [#allocation3], 4
  %s74 = int_to_ptr.vmem [resolvable:$true] %s73
  %76 = dma.hbm_to_vmem [thread:$0]  %s1, 2048, %s74, %s65
  %s77 = scalar_lea.sflag [#allocation9], 2
  // Predicated region
  $region48: #{lstm_model_forward.1} parent=0 // pred_check
    _
  $region49: #{lstm_model_forward.1} parent=0 // pred_check_branch
    %79 = sbr.rel target = $region51
  $region50: #{lstm_model_forward.1} parent=0 // pred_region
    %80 = sst [smem:[#allocation13]] [#allocation16]
    %81 = sst [smem:[#allocation14]] [#allocation15]
  $region51: #{lstm_model_forward.1} parent=0 // pred_fallthru
    _
  %83 = shalt.err (0)
  %s85 = sshll.u32 [#allocation5], 4
  %s86 = int_to_ptr.vmem [resolvable:$true] %s85
  %88 = dma.hbm_to_vmem [thread:$0]  %s3, 1024, %s86, %s77
  %s89 = scalar_lea.sflag [#allocation9], 3
  %p91 = scmp.lt.u32.totalorder 32, 8
  %p92 = pneg %p91
  // Predicated region
  $region52: #{lstm_model_forward.1} parent=0 // pred_check
    _
  $region53: #{lstm_model_forward.1} parent=0 // pred_check_branch
    %94 = sbr.rel (%p91) target = $region55
  $region54: #{lstm_model_forward.1} parent=0 // pred_region
    %s109 = sand.u32 32, 7
    %p110 = scmp.eq.s32.totalorder %s109, 0
    // Predicated region
    $region67: #{lstm_model_forward.1} parent=54 // pred_check
      %p111 = pneg %p110
    $region68: #{lstm_model_forward.1} parent=54 // pred_check_branch
      %113 = sbr.rel (%p111) target = $region70
    $region69: #{lstm_model_forward.1} parent=54 // pred_region
      loop: start=0, step=1, limit=1
      $region71: #{lstm_model_forward.1} parent=69 // loop_pre_header
        _
      $region72: #{lstm_model_forward.1} parent=69 // loop_header
        %s115 = sphi 0, %s119
        %p116 = scmp.ge.s32.totalorder %s115, 1
        %s120 = sphi %s5, %s5
        %s121 = sphi [#allocation6], [#allocation6]
      $region73: #{lstm_model_forward.1} parent=69 // loop_header_branch
        %118 = sbr.rel (%p116) target = $region77
      $region74: #{lstm_model_forward.1} parent=69 // loop_body
        %v122 = vld [vmem:[%s120] sm:$0xff]
        %123 = vst [vmem:[%s121] sm:$0xff] %v122
        %v124 = vld [vmem:[%s120 + $0x8] sm:$0xff]
        %125 = vst [vmem:[%s121 + $0x8] sm:$0xff] %v124
        %v126 = vld [vmem:[%s120 + $0x10] sm:$0xff]
        %127 = vst [vmem:[%s121 + $0x10] sm:$0xff] %v126
        %v128 = vld [vmem:[%s120 + $0x18] sm:$0xff]
        %129 = vst [vmem:[%s121 + $0x18] sm:$0xff] %v128
      $region75: #{lstm_model_forward.1} parent=69 // loop_footer
        %s119 = sadd.s32 1, %s115
      $region76: #{lstm_model_forward.1} parent=69 // loop_footer_branch
        %114 = sbr.rel target = $region72
      $region77: #{lstm_model_forward.1} parent=69 // loop_exit
        _
    $region70: #{lstm_model_forward.1} parent=54 // pred_fallthru
      _
    %p130 = pneg %p110
    // Predicated region
    $region78: #{lstm_model_forward.1} parent=54 // pred_check
      _
    $region79: #{lstm_model_forward.1} parent=54 // pred_check_branch
      %132 = sbr.rel (%p110) target = $region81
    $region80: #{lstm_model_forward.1} parent=54 // pred_region
      %s133 = sand.u32 32, 7
    $region81: #{lstm_model_forward.1} parent=54 // pred_fallthru
      _
  $region55: #{lstm_model_forward.1} parent=0 // pred_fallthru
    _
  // Predicated region
  $region56: #{lstm_model_forward.1} parent=0 // pred_check
    %p95 = pneg %p91
  $region57: #{lstm_model_forward.1} parent=0 // pred_check_branch
    %97 = sbr.rel (%p95) target = $region59
  $region58: #{lstm_model_forward.1} parent=0 // pred_region
    %s98 = sshllo.u32 0, 32
    loop: start=0, step=1, limit=1
    $region60: #{lstm_model_forward.1} parent=58 // loop_pre_header
      _
    $region61: #{lstm_model_forward.1} parent=58 // loop_header
      %s100 = sphi 0, %s104
      %p101 = scmp.ge.s32.totalorder %s100, 1
      %s105 = sphi %s5, %s5
      %s106 = sphi [#allocation6], [#allocation6]
    $region62: #{lstm_model_forward.1} parent=58 // loop_header_branch
      %103 = sbr.rel (%p101) target = $region66
    $region63: #{lstm_model_forward.1} parent=58 // loop_body
      %v107 = vld [vmem:[%s105] sm:%s98]
      %108 = vst [vmem:[%s106] sm:%s98] %v107
    $region64: #{lstm_model_forward.1} parent=58 // loop_footer
      %s104 = sadd.s32 1, %s100
    $region65: #{lstm_model_forward.1} parent=58 // loop_footer_branch
      %99 = sbr.rel target = $region61
    $region66: #{lstm_model_forward.1} parent=58 // loop_exit
      _
  $region59: #{lstm_model_forward.1} parent=0 // pred_fallthru
    _
  // Predicated region
  $region82: #{lstm_model_forward.1} parent=0 // pred_check
    _
  $region83: #{lstm_model_forward.1} parent=0 // pred_check_branch
    %136 = sbr.rel (0) target = $region85
  $region84: #{lstm_model_forward.1} parent=0 // pred_region
    %137 = vsyncadd %s89, 512
  $region85: #{lstm_model_forward.1} parent=0 // pred_fallthru
    _
  %s138 = scalar_lea.sflag [#allocation9], 4
  %p140 = scmp.lt.u32.totalorder 64, 8
  %p141 = pneg %p140
  // Predicated region
  $region86: #{lstm_model_forward.1} parent=0 // pred_check
    _
  $region87: #{lstm_model_forward.1} parent=0 // pred_check_branch
    %143 = sbr.rel (%p140) target = $region89
  $region88: #{lstm_model_forward.1} parent=0 // pred_region
    %s158 = sand.u32 64, 7
    %p159 = scmp.eq.s32.totalorder %s158, 0
    // Predicated region
    $region101: #{lstm_model_forward.1} parent=88 // pred_check
      %p160 = pneg %p159
    $region102: #{lstm_model_forward.1} parent=88 // pred_check_branch
      %162 = sbr.rel (%p160) target = $region104
    $region103: #{lstm_model_forward.1} parent=88 // pred_region
      loop: start=0, step=1, limit=1
      $region105: #{lstm_model_forward.1} parent=103 // loop_pre_header
        _
      $region106: #{lstm_model_forward.1} parent=103 // loop_header
        %s164 = sphi 0, %s168
        %p165 = scmp.ge.s32.totalorder %s164, 1
        %s169 = sphi %s2, %s2
        %s170 = sphi [#allocation4], [#allocation4]
      $region107: #{lstm_model_forward.1} parent=103 // loop_header_branch
        %167 = sbr.rel (%p165) target = $region111
      $region108: #{lstm_model_forward.1} parent=103 // loop_body
        %v171 = vld [vmem:[%s169] sm:$0xff]
        %172 = vst [vmem:[%s170] sm:$0xff] %v171
        %v173 = vld [vmem:[%s169 + $0x8] sm:$0xff]
        %174 = vst [vmem:[%s170 + $0x8] sm:$0xff] %v173
        %v175 = vld [vmem:[%s169 + $0x10] sm:$0xff]
        %176 = vst [vmem:[%s170 + $0x10] sm:$0xff] %v175
        %v177 = vld [vmem:[%s169 + $0x18] sm:$0xff]
        %178 = vst [vmem:[%s170 + $0x18] sm:$0xff] %v177
        %v179 = vld [vmem:[%s169 + $0x20] sm:$0xff]
        %180 = vst [vmem:[%s170 + $0x20] sm:$0xff] %v179
        %v181 = vld [vmem:[%s169 + $0x28] sm:$0xff]
        %182 = vst [vmem:[%s170 + $0x28] sm:$0xff] %v181
        %v183 = vld [vmem:[%s169 + $0x30] sm:$0xff]
        %184 = vst [vmem:[%s170 + $0x30] sm:$0xff] %v183
        %v185 = vld [vmem:[%s169 + $0x38] sm:$0xff]
        %186 = vst [vmem:[%s170 + $0x38] sm:$0xff] %v185
      $region109: #{lstm_model_forward.1} parent=103 // loop_footer
        %s168 = sadd.s32 1, %s164
      $region110: #{lstm_model_forward.1} parent=103 // loop_footer_branch
        %163 = sbr.rel target = $region106
      $region111: #{lstm_model_forward.1} parent=103 // loop_exit
        _
    $region104: #{lstm_model_forward.1} parent=88 // pred_fallthru
      _
    %p187 = pneg %p159
    // Predicated region
    $region112: #{lstm_model_forward.1} parent=88 // pred_check
      _
    $region113: #{lstm_model_forward.1} parent=88 // pred_check_branch
      %189 = sbr.rel (%p159) target = $region115
    $region114: #{lstm_model_forward.1} parent=88 // pred_region
      %s190 = sand.u32 64, 7
    $region115: #{lstm_model_forward.1} parent=88 // pred_fallthru
      _
  $region89: #{lstm_model_forward.1} parent=0 // pred_fallthru
    _
  // Predicated region
  $region90: #{lstm_model_forward.1} parent=0 // pred_check
    %p144 = pneg %p140
  $region91: #{lstm_model_forward.1} parent=0 // pred_check_branch
    %146 = sbr.rel (%p144) target = $region93
  $region92: #{lstm_model_forward.1} parent=0 // pred_region
    %s147 = sshllo.u32 0, 64
    loop: start=0, step=1, limit=1
    $region94: #{lstm_model_forward.1} parent=92 // loop_pre_header
      _
    $region95: #{lstm_model_forward.1} parent=92 // loop_header
      %s149 = sphi 0, %s153
      %p150 = scmp.ge.s32.totalorder %s149, 1
      %s154 = sphi %s2, %s2
      %s155 = sphi [#allocation4], [#allocation4]
    $region96: #{lstm_model_forward.1} parent=92 // loop_header_branch
      %152 = sbr.rel (%p150) target = $region100
    $region97: #{lstm_model_forward.1} parent=92 // loop_body
      %v156 = vld [vmem:[%s154] sm:%s147]
      %157 = vst [vmem:[%s155] sm:%s147] %v156
    $region98: #{lstm_model_forward.1} parent=92 // loop_footer
      %s153 = sadd.s32 1, %s149
    $region99: #{lstm_model_forward.1} parent=92 // loop_footer_branch
      %148 = sbr.rel target = $region95
    $region100: #{lstm_model_forward.1} parent=92 // loop_exit
      _
  $region93: #{lstm_model_forward.1} parent=0 // pred_fallthru
    _
  // Predicated region
  $region116: #{lstm_model_forward.1} parent=0 // pred_check
    _
  $region117: #{lstm_model_forward.1} parent=0 // pred_check_branch
    %193 = sbr.rel (0) target = $region119
  $region118: #{lstm_model_forward.1} parent=0 // pred_region
    %194 = vsyncadd %s138, 1024
  $region119: #{lstm_model_forward.1} parent=0 // pred_fallthru
    _
  %s195 = smul.u32 4, 8
  %s196 = smul.u32 %s195, 1
  %s197 = sshll.u32 %s196, 4
  %198 = dma.done [#allocation9], %s197
  %s199 = smul.u32 4, 2
  %s200 = smul.u32 %s199, 16
  %s201 = smul.u32 %s200, 1
  %s202 = sshll.u32 %s201, 4
  %203 = dma.done %s65, %s202
  %s204 = smul.u32 %s199, 2
  %s205 = smul.u32 %s204, 4
  %s206 = smul.u32 %s205, 1
  %s207 = sshll.u32 %s206, 4
  %208 = dma.done %s77, %s207
  %s209 = smul.u32 %s199, 4
  %s210 = smul.u32 %s209, 1
  %s211 = sshll.u32 %s210, 4
  %212 = dma.done %s89, %s211
  %s213 = smul.u32 4, 1
  %s214 = smul.u32 %s213, 2
  %s215 = smul.u32 %s214, 8
  %s216 = smul.u32 %s215, 1
  %s217 = sshll.u32 %s216, 4
  %218 = dma.done %s138, %s217
  %v219 = vld [vmem:[#allocation2] sm:$0xff]
  %v220 = vld [vmem:[#allocation2 + $0x8] sm:$0xff]
  %v221 = vld [vmem:[#allocation2 + $0x10] sm:$0xff]
  %v222 = vld [vmem:[#allocation2 + $0x18] sm:$0xff]
  %v223 = vld [vmem:[#allocation3] sm:$0xff]
  %v224 = vld [vmem:[#allocation3 + $0x8] sm:$0xff]
  %v225 = vld [vmem:[#allocation3 + $0x10] sm:$0xff]
  %v226 = vld [vmem:[#allocation3 + $0x18] sm:$0xff]
  %v227 = vld [vmem:[#allocation3 + $0x20] sm:$0xff]
  %v228 = vld [vmem:[#allocation3 + $0x28] sm:$0xff]
  %v229 = vld [vmem:[#allocation3 + $0x30] sm:$0xff]
  %v230 = vld [vmem:[#allocation3 + $0x38] sm:$0xff]
  %v231 = vld [vmem:[%s4] sm:$0x1]
  %v233 = vlaneseq
  %v234 = vshrl.u32 %v233, 7
  %v235 = vsub.s32 0, %v234
  %v236 = vrot.slane %v231, %v235
  %238 = vmatprep.subr.bf16.mxu0 0
  %239 = vmatpush1.bf16.msra.mxu0 %v223
  %240 = vmatprep.subr.bf16.mxu0 0
  %241 = vmatpush1.bf16.msra.mxu0 %v224
  %242 = vmatprep.subr.bf16.mxu0 0
  %243 = vmatpush1.bf16.msra.mxu0 %v225
  %244 = vmatprep.subr.bf16.mxu0 0
  %245 = vmatpush1.bf16.msra.mxu0 %v226
  %246 = vmatprep.subr.bf16.mxu0 0
  %247 = vmatpush1.bf16.msra.mxu0 %v227
  %248 = vmatprep.subr.bf16.mxu0 0
  %249 = vmatpush1.bf16.msra.mxu0 %v228
  %250 = vmatprep.subr.bf16.mxu0 0
  %251 = vmatpush1.bf16.msra.mxu0 %v229
  %252 = vmatprep.subr.bf16.mxu0 0
  %253 = vmatpush1.bf16.msra.mxu0 %v230
  %254 = vmatprep.subr.bf16.mxu0 0
  %255 = vmatpush1.bf16.msra.mxu0 0
  %256 = vmatprep.subr.bf16.mxu0 0
  %257 = vmatpush1.bf16.msra.mxu0 0
  %258 = vmatprep.subr.bf16.mxu0 0
  %259 = vmatpush1.bf16.msra.mxu0 0
  %260 = vmatprep.subr.bf16.mxu0 0
  %261 = vmatpush1.bf16.msra.mxu0 0
  %262 = vmatprep.subr.bf16.mxu0 0
  %263 = vmatpush1.bf16.msra.mxu0 0
  %264 = vmatprep.subr.bf16.mxu0 0
  %265 = vmatpush1.bf16.msra.mxu0 0
  %266 = vmatprep.subr.bf16.mxu0 0
  %267 = vmatpush1.bf16.msra.mxu0 0
  %268 = vmatprep.subr.bf16.mxu0 0
  %269 = vmatpush1.bf16.msra.mxu0 0
  %270 = vmatprep.mubr.bf16.mxu0 0
  %271 = vmatmul.mubr.bf16.gmra.mrb[0].mxu0 %v219
  %v272 = vpop.f32.mrb[0].mxu0
  %v273 = vadd.f32 %v236, %v272
  %v274 = vpop.f32.mrb[0].mxu0
  %v275 = vpop.f32.mrb[0].mxu0
  %v276 = vadd.f32 %v236, %v275
  %v277 = vpop.f32.mrb[0].mxu0
  %278 = vmatprep.mubr.bf16.mxu0 0
  %279 = vmatmul.mubr.bf16.gmra.mrb[0].mxu0 %v220
  %v280 = vpop.f32.mrb[0].mxu0
  %v281 = vadd.f32 %v236, %v280
  %v282 = vpop.f32.mrb[0].mxu0
  %v283 = vpop.f32.mrb[0].mxu0
  %v284 = vadd.f32 %v236, %v283
  %v285 = vpop.f32.mrb[0].mxu0
  %286 = vmatprep.mubr.bf16.mxu0 0
  %287 = vmatmul.mubr.bf16.gmra.mrb[0].mxu0 %v221
  %v288 = vpop.f32.mrb[0].mxu0
  %v289 = vadd.f32 %v236, %v288
  %v290 = vpop.f32.mrb[0].mxu0
  %v291 = vpop.f32.mrb[0].mxu0
  %v292 = vadd.f32 %v236, %v291
  %v293 = vpop.f32.mrb[0].mxu0
  %294 = vmatprep.mubr.bf16.mxu0 0
  %295 = vmatmul.mubr.bf16.gmra.mrb[0].mxu0 %v222
  %v296 = vpop.f32.mrb[0].mxu0
  %v297 = vadd.f32 %v236, %v296
  %v298 = vpop.f32.mrb[0].mxu0
  %v299 = vpop.f32.mrb[0].mxu0
  %v300 = vadd.f32 %v236, %v299
  %v301 = vpop.f32.mrb[0].mxu0
  %302 = vdwg.mxu0
  %303 = vst [vmem:[#allocation8] sm:$0xff] %v273
  %304 = vst [vmem:[#allocation8 + $0x8] sm:$0xff] %v276
  %305 = vst [vmem:[#allocation8 + $0x10] sm:$0xff] %v281
  %306 = vst [vmem:[#allocation8 + $0x18] sm:$0xff] %v284
  %307 = vst [vmem:[#allocation8 + $0x20] sm:$0xff] %v289
  %308 = vst [vmem:[#allocation8 + $0x28] sm:$0xff] %v292
  %309 = vst [vmem:[#allocation8 + $0x30] sm:$0xff] %v297
  %310 = vst [vmem:[#allocation8 + $0x38] sm:$0xff] %v300
  %s311 = scalar_lea.vmem [#allocation3], 64
  %v312 = vld [vmem:[%s311] sm:$0xff]
  %v313 = vld [vmem:[%s311 + $0x8] sm:$0xff]
  %v314 = vld [vmem:[%s311 + $0x10] sm:$0xff]
  %v315 = vld [vmem:[%s311 + $0x18] sm:$0xff]
  %v316 = vld [vmem:[%s311 + $0x20] sm:$0xff]
  %v317 = vld [vmem:[%s311 + $0x28] sm:$0xff]
  %v318 = vld [vmem:[%s311 + $0x30] sm:$0xff]
  %v319 = vld [vmem:[%s311 + $0x38] sm:$0xff]
  %s320 = scalar_lea.vmem %s4, 1
  %v321 = vld [vmem:[%s320] sm:$0x1]
  %v323 = vlaneseq
  %v324 = vshrl.u32 %v323, 7
  %v325 = vsub.s32 0, %v324
  %v326 = vrot.slane %v321, %v325
  %328 = vmatprep.subr.bf16.mxu0 0
  %329 = vmatpush1.bf16.msra.mxu0 %v312
  %330 = vmatprep.subr.bf16.mxu0 0
  %331 = vmatpush1.bf16.msra.mxu0 %v313
  %332 = vmatprep.subr.bf16.mxu0 0
  %333 = vmatpush1.bf16.msra.mxu0 %v314
  %334 = vmatprep.subr.bf16.mxu0 0
  %335 = vmatpush1.bf16.msra.mxu0 %v315
  %336 = vmatprep.subr.bf16.mxu0 0
  %337 = vmatpush1.bf16.msra.mxu0 %v316
  %338 = vmatprep.subr.bf16.mxu0 0
  %339 = vmatpush1.bf16.msra.mxu0 %v317
  %340 = vmatprep.subr.bf16.mxu0 0
  %341 = vmatpush1.bf16.msra.mxu0 %v318
  %342 = vmatprep.subr.bf16.mxu0 0
  %343 = vmatpush1.bf16.msra.mxu0 %v319
  %344 = vmatprep.subr.bf16.mxu0 0
  %345 = vmatpush1.bf16.msra.mxu0 0
  %346 = vmatprep.subr.bf16.mxu0 0
  %347 = vmatpush1.bf16.msra.mxu0 0
  %348 = vmatprep.subr.bf16.mxu0 0
  %349 = vmatpush1.bf16.msra.mxu0 0
  %350 = vmatprep.subr.bf16.mxu0 0
  %351 = vmatpush1.bf16.msra.mxu0 0
  %352 = vmatprep.subr.bf16.mxu0 0
  %353 = vmatpush1.bf16.msra.mxu0 0
  %354 = vmatprep.subr.bf16.mxu0 0
  %355 = vmatpush1.bf16.msra.mxu0 0
  %356 = vmatprep.subr.bf16.mxu0 0
  %357 = vmatpush1.bf16.msra.mxu0 0
  %358 = vmatprep.subr.bf16.mxu0 0
  %359 = vmatpush1.bf16.msra.mxu0 0
  %360 = vmatprep.mubr.bf16.mxu0 0
  %361 = vmatmul.mubr.bf16.gmra.mrb[0].mxu0 %v219
  %v362 = vpop.f32.mrb[0].mxu0
  %v363 = vadd.f32 %v326, %v362
  %v364 = vpop.f32.mrb[0].mxu0
  %v365 = vpop.f32.mrb[0].mxu0
  %v366 = vadd.f32 %v326, %v365
  %v367 = vpop.f32.mrb[0].mxu0
  %368 = vmatprep.mubr.bf16.mxu0 0
  %369 = vmatmul.mubr.bf16.gmra.mrb[0].mxu0 %v220
  %v370 = vpop.f32.mrb[0].mxu0
  %v371 = vadd.f32 %v326, %v370
  %v372 = vpop.f32.mrb[0].mxu0
  %v373 = vpop.f32.mrb[0].mxu0
  %v374 = vadd.f32 %v326, %v373
  %v375 = vpop.f32.mrb[0].mxu0
  %376 = vmatprep.mubr.bf16.mxu0 0
  %377 = vmatmul.mubr.bf16.gmra.mrb[0].mxu0 %v221
  %v378 = vpop.f32.mrb[0].mxu0
  %v379 = vadd.f32 %v326, %v378
  %v380 = vpop.f32.mrb[0].mxu0
  %v381 = vpop.f32.mrb[0].mxu0
  %v382 = vadd.f32 %v326, %v381
  %v383 = vpop.f32.mrb[0].mxu0
  %384 = vmatprep.mubr.bf16.mxu0 0
  %385 = vmatmul.mubr.bf16.gmra.mrb[0].mxu0 %v222
  %v386 = vpop.f32.mrb[0].mxu0
  %v387 = vadd.f32 %v326, %v386
  %v388 = vpop.f32.mrb[0].mxu0
  %v389 = vpop.f32.mrb[0].mxu0
  %v390 = vadd.f32 %v326, %v389
  %v391 = vpop.f32.mrb[0].mxu0
  %392 = vdwg.mxu0
  %s393 = scalar_lea.vmem [#allocation8], 64
  %394 = vst [vmem:[%s393] sm:$0xff] %v363
  %395 = vst [vmem:[%s393 + $0x8] sm:$0xff] %v366
  %396 = vst [vmem:[%s393 + $0x10] sm:$0xff] %v371
  %397 = vst [vmem:[%s393 + $0x18] sm:$0xff] %v374
  %398 = vst [vmem:[%s393 + $0x20] sm:$0xff] %v379
  %399 = vst [vmem:[%s393 + $0x28] sm:$0xff] %v382
  %400 = vst [vmem:[%s393 + $0x30] sm:$0xff] %v387
  %401 = vst [vmem:[%s393 + $0x38] sm:$0xff] %v390
  %v402 = vld [vmem:[#allocation8] sm:$0xff]
  %v403 = vld [vmem:[#allocation5] sm:$0xff]
  %v404 = vld [vmem:[#allocation5 + $0x8] sm:$0xff]
  %vm405 = vcmask 261120
  %v407 = vsel %vm405, 0, 0
  %409 = vmatprep.subr.bf16.mxu0 0
  %410 = vmatpush1.bf16.msra.mxu0 %v403
  %411 = vmatprep.subr.bf16.mxu0 0
  %412 = vmatpush1.bf16.msra.mxu0 %v404
  %413 = vmatprep.subr.bf16.mxu0 0
  %414 = vmatpush1.bf16.msra.mxu0 0
  %415 = vmatprep.subr.bf16.mxu0 0
  %416 = vmatpush1.bf16.msra.mxu0 0
  %417 = vmatprep.subr.bf16.mxu0 0
  %418 = vmatpush1.bf16.msra.mxu0 0
  %419 = vmatprep.subr.bf16.mxu0 0
  %420 = vmatpush1.bf16.msra.mxu0 0
  %421 = vmatprep.subr.bf16.mxu0 0
  %422 = vmatpush1.bf16.msra.mxu0 0
  %423 = vmatprep.subr.bf16.mxu0 0
  %424 = vmatpush1.bf16.msra.mxu0 0
  %425 = vmatprep.subr.bf16.mxu0 0
  %426 = vmatpush1.bf16.msra.mxu0 0
  %427 = vmatprep.subr.bf16.mxu0 0
  %428 = vmatpush1.bf16.msra.mxu0 0
  %429 = vmatprep.subr.bf16.mxu0 0
  %430 = vmatpush1.bf16.msra.mxu0 0
  %431 = vmatprep.subr.bf16.mxu0 0
  %432 = vmatpush1.bf16.msra.mxu0 0
  %433 = vmatprep.subr.bf16.mxu0 0
  %434 = vmatpush1.bf16.msra.mxu0 0
  %435 = vmatprep.subr.bf16.mxu0 0
  %436 = vmatpush1.bf16.msra.mxu0 0
  %437 = vmatprep.subr.bf16.mxu0 0
  %438 = vmatpush1.bf16.msra.mxu0 0
  %439 = vmatprep.subr.bf16.mxu0 0
  %440 = vmatpush1.bf16.msra.mxu0 0
  %441 = vmatprep.mubr.bf16.mxu0 0
  %442 = vmatmul.mubr.bf16.gmra.mrb[0].mxu0 %v407
  %v443 = vpop.f32.mrb[0].mxu0
  %v444 = vadd.f32 0.0, %v443
  %v445 = vpop.f32.mrb[0].mxu0
  %v446 = vpop.f32.mrb[0].mxu0
  %v447 = vpop.f32.mrb[0].mxu0
  %448 = vdwg.mxu0
  %v449 = vadd.f32 %v402, %v444
  %v450 = vxor.u32 %v449, 2147483648
  %v451 = vmul.f32 %v450, 1.442695
  %v452 = vpow.pop %v451
  %v453 = vadd.f32 %v452, 1.0
  %v454 = vrcp.pop %v453
  %v455 = vmul.f32 1.0, %v454
  %v456 = vtanh.pop %v449
  %v457 = vmul.f32 %v455, 0.0
  %459 = vrot.lane.b32.xlu0 %v456, 64
  %v460 = vpop.permute.xlu0 %459
  %v462 = vmul.f32 %v455, %v460
  %464 = vrot.lane.b32.xlu0 %v462, 32
  %v465 = vpop.permute.xlu0 %464
  %v467 = vadd.f32 %v457, %v465
  %v468 = vtanh.pop %v467
  %470 = vrot.lane.b32.xlu0 %v468, 64
  %v471 = vpop.permute.xlu0 %470
  %v473 = vmul.f32 %v455, %v471
  %v474 = vpack.c.bf16 %v473, %v473
  %476 = vrot.lane.b32.xlu0 %v474, 32
  %v477 = vpop.permute.xlu0 %476
  %vm479 = vcmask 257024
  %480 = vst.msk [vmem:[#allocation7] sm:$0xf] %vm479, %v477
  %v481 = vld [vmem:[%s393 + $0x38] sm:$0xff]
  %s482 = scalar_lea.vmem [#allocation5], 16
  %v483 = vld [vmem:[%s482] sm:$0xff]
  %v484 = vld [vmem:[%s482 + $0x8] sm:$0xff]
  %485 = vmatprep.subr.bf16.mxu0 0
  %486 = vmatpush1.bf16.msra.mxu0 %v483
  %487 = vmatprep.subr.bf16.mxu0 0
  %488 = vmatpush1.bf16.msra.mxu0 %v484
  %489 = vmatprep.subr.bf16.mxu0 0
  %490 = vmatpush1.bf16.msra.mxu0 0
  %491 = vmatprep.subr.bf16.mxu0 0
  %492 = vmatpush1.bf16.msra.mxu0 0
  %493 = vmatprep.subr.bf16.mxu0 0
  %494 = vmatpush1.bf16.msra.mxu0 0
  %495 = vmatprep.subr.bf16.mxu0 0
  %496 = vmatpush1.bf16.msra.mxu0 0
  %497 = vmatprep.subr.bf16.mxu0 0
  %498 = vmatpush1.bf16.msra.mxu0 0
  %499 = vmatprep.subr.bf16.mxu0 0
  %500 = vmatpush1.bf16.msra.mxu0 0
  %501 = vmatprep.subr.bf16.mxu0 0
  %502 = vmatpush1.bf16.msra.mxu0 0
  %503 = vmatprep.subr.bf16.mxu0 0
  %504 = vmatpush1.bf16.msra.mxu0 0
  %505 = vmatprep.subr.bf16.mxu0 0
  %506 = vmatpush1.bf16.msra.mxu0 0
  %507 = vmatprep.subr.bf16.mxu0 0
  %508 = vmatpush1.bf16.msra.mxu0 0
  %509 = vmatprep.subr.bf16.mxu0 0
  %510 = vmatpush1.bf16.msra.mxu0 0
  %511 = vmatprep.subr.bf16.mxu0 0
  %512 = vmatpush1.bf16.msra.mxu0 0
  %513 = vmatprep.subr.bf16.mxu0 0
  %514 = vmatpush1.bf16.msra.mxu0 0
  %515 = vmatprep.subr.bf16.mxu0 0
  %516 = vmatpush1.bf16.msra.mxu0 0
  %517 = vmatprep.mubr.bf16.mxu0 0
  %518 = vmatmul.mubr.bf16.gmra.mrb[0].mxu0 %v407
  %v519 = vpop.f32.mrb[0].mxu0
  %v520 = vadd.f32 0.0, %v519
  %v521 = vpop.f32.mrb[0].mxu0
  %v522 = vpop.f32.mrb[0].mxu0
  %v523 = vpop.f32.mrb[0].mxu0
  %524 = vdwg.mxu0
  %v525 = vadd.f32 %v481, %v520
  %v526 = vxor.u32 %v525, 2147483648
  %v527 = vmul.f32 %v526, 1.442695
  %v528 = vpow.pop %v527
  %v529 = vadd.f32 %v528, 1.0
  %v530 = vrcp.pop %v529
  %v531 = vmul.f32 1.0, %v530
  %v532 = vtanh.pop %v525
  %v533 = vmul.f32 %v531, 0.0
  %535 = vrot.lane.b32.xlu0 %v532, 64
  %v536 = vpop.permute.xlu0 %535
  %v538 = vmul.f32 %v531, %v536
  %540 = vrot.lane.b32.xlu0 %v538, 32
  %v541 = vpop.permute.xlu0 %540
  %v543 = vadd.f32 %v533, %v541
  %v544 = vtanh.pop %v543
  %546 = vrot.lane.b32.xlu0 %v544, 64
  %v547 = vpop.permute.xlu0 %546
  %v549 = vmul.f32 %v531, %v547
  %v550 = vpack.c.bf16 %v549, %v549
  %v552 = vrot.slane %v550, 4
  %553 = vrot.lane.b32.xlu0 %v552, 64
  %v554 = vpop.permute.xlu0 %553
  %vm556 = vcmask 523524
  %557 = vst.msk [vmem:[#allocation7 + $0x18] sm:$0xf0] %vm556, %v554
  %v558 = vld [vmem:[#allocation8 + $0x8] sm:$0xff]
  %v559 = vld [vmem:[#allocation5] sm:$0xff]
  %v560 = vld [vmem:[#allocation5 + $0x8] sm:$0xff]
  %v562 = vsel %vm405, %v477, 0
  %564 = vmatprep.subr.bf16.mxu0 0
  %565 = vmatpush1.bf16.msra.mxu0 %v559
  %566 = vmatprep.subr.bf16.mxu0 0
  %567 = vmatpush1.bf16.msra.mxu0 %v560
  %568 = vmatprep.subr.bf16.mxu0 0
  %569 = vmatpush1.bf16.msra.mxu0 0
  %570 = vmatprep.subr.bf16.mxu0 0
  %571 = vmatpush1.bf16.msra.mxu0 0
  %572 = vmatprep.subr.bf16.mxu0 0
  %573 = vmatpush1.bf16.msra.mxu0 0
  %574 = vmatprep.subr.bf16.mxu0 0
  %575 = vmatpush1.bf16.msra.mxu0 0
  %576 = vmatprep.subr.bf16.mxu0 0
  %577 = vmatpush1.bf16.msra.mxu0 0
  %578 = vmatprep.subr.bf16.mxu0 0
  %579 = vmatpush1.bf16.msra.mxu0 0
  %580 = vmatprep.subr.bf16.mxu0 0
  %581 = vmatpush1.bf16.msra.mxu0 0
  %582 = vmatprep.subr.bf16.mxu0 0
  %583 = vmatpush1.bf16.msra.mxu0 0
  %584 = vmatprep.subr.bf16.mxu0 0
  %585 = vmatpush1.bf16.msra.mxu0 0
  %586 = vmatprep.subr.bf16.mxu0 0
  %587 = vmatpush1.bf16.msra.mxu0 0
  %588 = vmatprep.subr.bf16.mxu0 0
  %589 = vmatpush1.bf16.msra.mxu0 0
  %590 = vmatprep.subr.bf16.mxu0 0
  %591 = vmatpush1.bf16.msra.mxu0 0
  %592 = vmatprep.subr.bf16.mxu0 0
  %593 = vmatpush1.bf16.msra.mxu0 0
  %594 = vmatprep.subr.bf16.mxu0 0
  %595 = vmatpush1.bf16.msra.mxu0 0
  %596 = vmatprep.mubr.bf16.mxu0 0
  %597 = vmatmul.mubr.bf16.gmra.mrb[0].mxu0 %v562
  %v598 = vpop.f32.mrb[0].mxu0
  %v599 = vadd.f32 0.0, %v598
  %v600 = vpop.f32.mrb[0].mxu0
  %v601 = vpop.f32.mrb[0].mxu0
  %v602 = vpop.f32.mrb[0].mxu0
  %603 = vdwg.mxu0
  %v604 = vadd.f32 %v558, %v599
  %v605 = vxor.u32 %v604, 2147483648
  %v606 = vmul.f32 %v605, 1.442695
  %v607 = vpow.pop %v606
  %v608 = vadd.f32 %v607, 1.0
  %v609 = vrcp.pop %v608
  %v610 = vmul.f32 1.0, %v609
  %v611 = vtanh.pop %v604
  %v612 = vmul.f32 %v610, %v467
  %614 = vrot.lane.b32.xlu0 %v611, 64
  %v615 = vpop.permute.xlu0 %614
  %v617 = vmul.f32 %v610, %v615
  %619 = vrot.lane.b32.xlu0 %v617, 32
  %v620 = vpop.permute.xlu0 %619
  %v622 = vadd.f32 %v612, %v620
  %v623 = vtanh.pop %v622
  %625 = vrot.lane.b32.xlu0 %v623, 64
  %v626 = vpop.permute.xlu0 %625
  %v628 = vmul.f32 %v610, %v626
  %v629 = vpack.c.bf16 %v628, %v628
  %v631 = vrot.slane %v629, 4
  %632 = vrot.lane.b32.xlu0 %v631, 32
  %v633 = vpop.permute.xlu0 %632
  %vm635 = vcmask 261124
  %636 = vst.msk [vmem:[#allocation7] sm:$0xf0] %vm635, %v633
  %v637 = vld [vmem:[%s393 + $0x30] sm:$0xff]
  %v638 = vld [vmem:[%s482] sm:$0xff]
  %v639 = vld [vmem:[%s482 + $0x8] sm:$0xff]
  %640 = vrot.lane.b32.xlu0 %v550, 32
  %v641 = vpop.permute.xlu0 %640
  %v643 = vsel %vm405, %v641, 0
  %645 = vmatprep.subr.bf16.mxu0 0
  %646 = vmatpush1.bf16.msra.mxu0 %v638
  %647 = vmatprep.subr.bf16.mxu0 0
  %648 = vmatpush1.bf16.msra.mxu0 %v639
  %649 = vmatprep.subr.bf16.mxu0 0
  %650 = vmatpush1.bf16.msra.mxu0 0
  %651 = vmatprep.subr.bf16.mxu0 0
  %652 = vmatpush1.bf16.msra.mxu0 0
  %653 = vmatprep.subr.bf16.mxu0 0
  %654 = vmatpush1.bf16.msra.mxu0 0
  %655 = vmatprep.subr.bf16.mxu0 0
  %656 = vmatpush1.bf16.msra.mxu0 0
  %657 = vmatprep.subr.bf16.mxu0 0
  %658 = vmatpush1.bf16.msra.mxu0 0
  %659 = vmatprep.subr.bf16.mxu0 0
  %660 = vmatpush1.bf16.msra.mxu0 0
  %661 = vmatprep.subr.bf16.mxu0 0
  %662 = vmatpush1.bf16.msra.mxu0 0
  %663 = vmatprep.subr.bf16.mxu0 0
  %664 = vmatpush1.bf16.msra.mxu0 0
  %665 = vmatprep.subr.bf16.mxu0 0
  %666 = vmatpush1.bf16.msra.mxu0 0
  %667 = vmatprep.subr.bf16.mxu0 0
  %668 = vmatpush1.bf16.msra.mxu0 0
  %669 = vmatprep.subr.bf16.mxu0 0
  %670 = vmatpush1.bf16.msra.mxu0 0
  %671 = vmatprep.subr.bf16.mxu0 0
  %672 = vmatpush1.bf16.msra.mxu0 0
  %673 = vmatprep.subr.bf16.mxu0 0
  %674 = vmatpush1.bf16.msra.mxu0 0
  %675 = vmatprep.subr.bf16.mxu0 0
  %676 = vmatpush1.bf16.msra.mxu0 0
  %677 = vmatprep.mubr.bf16.mxu0 0
  %678 = vmatmul.mubr.bf16.gmra.mrb[0].mxu0 %v643
  %v679 = vpop.f32.mrb[0].mxu0
  %v680 = vadd.f32 0.0, %v679
  %v681 = vpop.f32.mrb[0].mxu0
  %v682 = vpop.f32.mrb[0].mxu0
  %v683 = vpop.f32.mrb[0].mxu0
  %684 = vdwg.mxu0
  %v685 = vadd.f32 %v637, %v680
  %v686 = vxor.u32 %v685, 2147483648
  %v687 = vmul.f32 %v686, 1.442695
  %v688 = vpow.pop %v687
  %v689 = vadd.f32 %v688, 1.0
  %v690 = vrcp.pop %v689
  %v691 = vmul.f32 1.0, %v690
  %v692 = vtanh.pop %v685
  %v693 = vmul.f32 %v691, %v543
  %695 = vrot.lane.b32.xlu0 %v692, 64
  %v696 = vpop.permute.xlu0 %695
  %v698 = vmul.f32 %v691, %v696
  %700 = vrot.lane.b32.xlu0 %v698, 32
  %v701 = vpop.permute.xlu0 %700
  %v703 = vadd.f32 %v693, %v701
  %v704 = vtanh.pop %v703
  %706 = vrot.lane.b32.xlu0 %v704, 64
  %v707 = vpop.permute.xlu0 %706
  %v709 = vmul.f32 %v691, %v707
  %v710 = vpack.c.bf16 %v709, %v709
  %712 = vrot.lane.b32.xlu0 %v710, 64
  %v713 = vpop.permute.xlu0 %712
  %vm715 = vcmask 519424
  %716 = vst.msk [vmem:[#allocation7 + $0x18] sm:$0xf] %vm715, %v713
  %v717 = vld [vmem:[#allocation8 + $0x10] sm:$0xff]
  %v718 = vld [vmem:[#allocation5] sm:$0xff]
  %v719 = vld [vmem:[#allocation5 + $0x8] sm:$0xff]
  %720 = vrot.lane.b32.xlu0 %v629, 32
  %v721 = vpop.permute.xlu0 %720
  %v723 = vsel %vm405, %v721, 0
  %725 = vmatprep.subr.bf16.mxu0 0
  %726 = vmatpush1.bf16.msra.mxu0 %v718
  %727 = vmatprep.subr.bf16.mxu0 0
  %728 = vmatpush1.bf16.msra.mxu0 %v719
  %729 = vmatprep.subr.bf16.mxu0 0
  %730 = vmatpush1.bf16.msra.mxu0 0
  %731 = vmatprep.subr.bf16.mxu0 0
  %732 = vmatpush1.bf16.msra.mxu0 0
  %733 = vmatprep.subr.bf16.mxu0 0
  %734 = vmatpush1.bf16.msra.mxu0 0
  %735 = vmatprep.subr.bf16.mxu0 0
  %736 = vmatpush1.bf16.msra.mxu0 0
  %737 = vmatprep.subr.bf16.mxu0 0
  %738 = vmatpush1.bf16.msra.mxu0 0
  %739 = vmatprep.subr.bf16.mxu0 0
  %740 = vmatpush1.bf16.msra.mxu0 0
  %741 = vmatprep.subr.bf16.mxu0 0
  %742 = vmatpush1.bf16.msra.mxu0 0
  %743 = vmatprep.subr.bf16.mxu0 0
  %744 = vmatpush1.bf16.msra.mxu0 0
  %745 = vmatprep.subr.bf16.mxu0 0
  %746 = vmatpush1.bf16.msra.mxu0 0
  %747 = vmatprep.subr.bf16.mxu0 0
  %748 = vmatpush1.bf16.msra.mxu0 0
  %749 = vmatprep.subr.bf16.mxu0 0
  %750 = vmatpush1.bf16.msra.mxu0 0
  %751 = vmatprep.subr.bf16.mxu0 0
  %752 = vmatpush1.bf16.msra.mxu0 0
  %753 = vmatprep.subr.bf16.mxu0 0
  %754 = vmatpush1.bf16.msra.mxu0 0
  %755 = vmatprep.subr.bf16.mxu0 0
  %756 = vmatpush1.bf16.msra.mxu0 0
  %757 = vmatprep.mubr.bf16.mxu0 0
  %758 = vmatmul.mubr.bf16.gmra.mrb[0].mxu0 %v723
  %v759 = vpop.f32.mrb[0].mxu0
  %v760 = vadd.f32 0.0, %v759
  %v761 = vpop.f32.mrb[0].mxu0
  %v762 = vpop.f32.mrb[0].mxu0
  %v763 = vpop.f32.mrb[0].mxu0
  %764 = vdwg.mxu0
  %v765 = vadd.f32 %v717, %v760
  %v766 = vxor.u32 %v765, 2147483648
  %v767 = vmul.f32 %v766, 1.442695
  %v768 = vpow.pop %v767
  %v769 = vadd.f32 %v768, 1.0
  %v770 = vrcp.pop %v769
  %v771 = vmul.f32 1.0, %v770
  %v772 = vtanh.pop %v765
  %v773 = vmul.f32 %v771, %v622
  %775 = vrot.lane.b32.xlu0 %v772, 64
  %v776 = vpop.permute.xlu0 %775
  %v778 = vmul.f32 %v771, %v776
  %780 = vrot.lane.b32.xlu0 %v778, 32
  %v781 = vpop.permute.xlu0 %780
  %v783 = vadd.f32 %v773, %v781
  %v784 = vtanh.pop %v783
  %786 = vrot.lane.b32.xlu0 %v784, 64
  %v787 = vpop.permute.xlu0 %786
  %v789 = vmul.f32 %v771, %v787
  %v790 = vpack.c.bf16 %v789, %v789
  %792 = vrot.lane.b32.xlu0 %v790, 32
  %v793 = vpop.permute.xlu0 %792
  %795 = vst.msk [vmem:[#allocation7 + $0x8] sm:$0xf] %vm479, %v793
  %v796 = vld [vmem:[%s393 + $0x28] sm:$0xff]
  %v797 = vld [vmem:[%s482] sm:$0xff]
  %v798 = vld [vmem:[%s482 + $0x8] sm:$0xff]
  %799 = vrot.lane.b32.xlu0 %v710, 32
  %v800 = vpop.permute.xlu0 %799
  %v802 = vsel %vm405, %v800, 0
  %804 = vmatprep.subr.bf16.mxu0 0
  %805 = vmatpush1.bf16.msra.mxu0 %v797
  %806 = vmatprep.subr.bf16.mxu0 0
  %807 = vmatpush1.bf16.msra.mxu0 %v798
  %808 = vmatprep.subr.bf16.mxu0 0
  %809 = vmatpush1.bf16.msra.mxu0 0
  %810 = vmatprep.subr.bf16.mxu0 0
  %811 = vmatpush1.bf16.msra.mxu0 0
  %812 = vmatprep.subr.bf16.mxu0 0
  %813 = vmatpush1.bf16.msra.mxu0 0
  %814 = vmatprep.subr.bf16.mxu0 0
  %815 = vmatpush1.bf16.msra.mxu0 0
  %816 = vmatprep.subr.bf16.mxu0 0
  %817 = vmatpush1.bf16.msra.mxu0 0
  %818 = vmatprep.subr.bf16.mxu0 0
  %819 = vmatpush1.bf16.msra.mxu0 0
  %820 = vmatprep.subr.bf16.mxu0 0
  %821 = vmatpush1.bf16.msra.mxu0 0
  %822 = vmatprep.subr.bf16.mxu0 0
  %823 = vmatpush1.bf16.msra.mxu0 0
  %824 = vmatprep.subr.bf16.mxu0 0
  %825 = vmatpush1.bf16.msra.mxu0 0
  %826 = vmatprep.subr.bf16.mxu0 0
  %827 = vmatpush1.bf16.msra.mxu0 0
  %828 = vmatprep.subr.bf16.mxu0 0
  %829 = vmatpush1.bf16.msra.mxu0 0
  %830 = vmatprep.subr.bf16.mxu0 0
  %831 = vmatpush1.bf16.msra.mxu0 0
  %832 = vmatprep.subr.bf16.mxu0 0
  %833 = vmatpush1.bf16.msra.mxu0 0
  %834 = vmatprep.subr.bf16.mxu0 0
  %835 = vmatpush1.bf16.msra.mxu0 0
  %836 = vmatprep.mubr.bf16.mxu0 0
  %837 = vmatmul.mubr.bf16.gmra.mrb[0].mxu0 %v802
  %v838 = vpop.f32.mrb[0].mxu0
  %v839 = vadd.f32 0.0, %v838
  %v840 = vpop.f32.mrb[0].mxu0
  %v841 = vpop.f32.mrb[0].mxu0
  %v842 = vpop.f32.mrb[0].mxu0
  %843 = vdwg.mxu0
  %v844 = vadd.f32 %v796, %v839
  %v845 = vxor.u32 %v844, 2147483648
  %v846 = vmul.f32 %v845, 1.442695
  %v847 = vpow.pop %v846
  %v848 = vadd.f32 %v847, 1.0
  %v849 = vrcp.pop %v848
  %v850 = vmul.f32 1.0, %v849
  %v851 = vtanh.pop %v844
  %v852 = vmul.f32 %v850, %v703
  %854 = vrot.lane.b32.xlu0 %v851, 64
  %v855 = vpop.permute.xlu0 %854
  %v857 = vmul.f32 %v850, %v855
  %859 = vrot.lane.b32.xlu0 %v857, 32
  %v860 = vpop.permute.xlu0 %859
  %v862 = vadd.f32 %v852, %v860
  %v863 = vtanh.pop %v862
  %865 = vrot.lane.b32.xlu0 %v863, 64
  %v866 = vpop.permute.xlu0 %865
  %v868 = vmul.f32 %v850, %v866
  %v869 = vpack.c.bf16 %v868, %v868
  %v871 = vrot.slane %v869, 4
  %872 = vrot.lane.b32.xlu0 %v871, 64
  %v873 = vpop.permute.xlu0 %872
  %875 = vst.msk [vmem:[#allocation7 + $0x10] sm:$0xf0] %vm556, %v873
  %v876 = vld [vmem:[#allocation8 + $0x18] sm:$0xff]
  %v877 = vld [vmem:[#allocation5] sm:$0xff]
  %v878 = vld [vmem:[#allocation5 + $0x8] sm:$0xff]
  %v880 = vsel %vm405, %v793, 0
  %882 = vmatprep.subr.bf16.mxu0 0
  %883 = vmatpush1.bf16.msra.mxu0 %v877
  %884 = vmatprep.subr.bf16.mxu0 0
  %885 = vmatpush1.bf16.msra.mxu0 %v878
  %886 = vmatprep.subr.bf16.mxu0 0
  %887 = vmatpush1.bf16.msra.mxu0 0
  %888 = vmatprep.subr.bf16.mxu0 0
  %889 = vmatpush1.bf16.msra.mxu0 0
  %890 = vmatprep.subr.bf16.mxu0 0
  %891 = vmatpush1.bf16.msra.mxu0 0
  %892 = vmatprep.subr.bf16.mxu0 0
  %893 = vmatpush1.bf16.msra.mxu0 0
  %894 = vmatprep.subr.bf16.mxu0 0
  %895 = vmatpush1.bf16.msra.mxu0 0
  %896 = vmatprep.subr.bf16.mxu0 0
  %897 = vmatpush1.bf16.msra.mxu0 0
  %898 = vmatprep.subr.bf16.mxu0 0
  %899 = vmatpush1.bf16.msra.mxu0 0
  %900 = vmatprep.subr.bf16.mxu0 0
  %901 = vmatpush1.bf16.msra.mxu0 0
  %902 = vmatprep.subr.bf16.mxu0 0
  %903 = vmatpush1.bf16.msra.mxu0 0
  %904 = vmatprep.subr.bf16.mxu0 0
  %905 = vmatpush1.bf16.msra.mxu0 0
  %906 = vmatprep.subr.bf16.mxu0 0
  %907 = vmatpush1.bf16.msra.mxu0 0
  %908 = vmatprep.subr.bf16.mxu0 0
  %909 = vmatpush1.bf16.msra.mxu0 0
  %910 = vmatprep.subr.bf16.mxu0 0
  %911 = vmatpush1.bf16.msra.mxu0 0
  %912 = vmatprep.subr.bf16.mxu0 0
  %913 = vmatpush1.bf16.msra.mxu0 0
  %914 = vmatprep.mubr.bf16.mxu0 0
  %915 = vmatmul.mubr.bf16.gmra.mrb[0].mxu0 %v880
  %v916 = vpop.f32.mrb[0].mxu0
  %v917 = vadd.f32 0.0, %v916
  %v918 = vpop.f32.mrb[0].mxu0
  %v919 = vpop.f32.mrb[0].mxu0
  %v920 = vpop.f32.mrb[0].mxu0
  %921 = vdwg.mxu0
  %v922 = vadd.f32 %v876, %v917
  %v923 = vxor.u32 %v922, 2147483648
  %v924 = vmul.f32 %v923, 1.442695
  %v925 = vpow.pop %v924
  %v926 = vadd.f32 %v925, 1.0
  %v927 = vrcp.pop %v926
  %v928 = vmul.f32 1.0, %v927
  %v929 = vtanh.pop %v922
  %v930 = vmul.f32 %v928, %v783
  %932 = vrot.lane.b32.xlu0 %v929, 64
  %v933 = vpop.permute.xlu0 %932
  %v935 = vmul.f32 %v928, %v933
  %937 = vrot.lane.b32.xlu0 %v935, 32
  %v938 = vpop.permute.xlu0 %937
  %v940 = vadd.f32 %v930, %v938
  %v941 = vtanh.pop %v940
  %943 = vrot.lane.b32.xlu0 %v941, 64
  %v944 = vpop.permute.xlu0 %943
  %v946 = vmul.f32 %v928, %v944
  %v947 = vpack.c.bf16 %v946, %v946
  %v949 = vrot.slane %v947, 4
  %950 = vrot.lane.b32.xlu0 %v949, 32
  %v951 = vpop.permute.xlu0 %950
  %953 = vst.msk [vmem:[#allocation7 + $0x8] sm:$0xf0] %vm635, %v951
  %v954 = vld [vmem:[%s393 + $0x20] sm:$0xff]
  %v955 = vld [vmem:[%s482] sm:$0xff]
  %v956 = vld [vmem:[%s482 + $0x8] sm:$0xff]
  %957 = vrot.lane.b32.xlu0 %v869, 32
  %v958 = vpop.permute.xlu0 %957
  %v960 = vsel %vm405, %v958, 0
  %962 = vmatprep.subr.bf16.mxu0 0
  %963 = vmatpush1.bf16.msra.mxu0 %v955
  %964 = vmatprep.subr.bf16.mxu0 0
  %965 = vmatpush1.bf16.msra.mxu0 %v956
  %966 = vmatprep.subr.bf16.mxu0 0
  %967 = vmatpush1.bf16.msra.mxu0 0
  %968 = vmatprep.subr.bf16.mxu0 0
  %969 = vmatpush1.bf16.msra.mxu0 0
  %970 = vmatprep.subr.bf16.mxu0 0
  %971 = vmatpush1.bf16.msra.mxu0 0
  %972 = vmatprep.subr.bf16.mxu0 0
  %973 = vmatpush1.bf16.msra.mxu0 0
  %974 = vmatprep.subr.bf16.mxu0 0
  %975 = vmatpush1.bf16.msra.mxu0 0
  %976 = vmatprep.subr.bf16.mxu0 0
  %977 = vmatpush1.bf16.msra.mxu0 0
  %978 = vmatprep.subr.bf16.mxu0 0
  %979 = vmatpush1.bf16.msra.mxu0 0
  %980 = vmatprep.subr.bf16.mxu0 0
  %981 = vmatpush1.bf16.msra.mxu0 0
  %982 = vmatprep.subr.bf16.mxu0 0
  %983 = vmatpush1.bf16.msra.mxu0 0
  %984 = vmatprep.subr.bf16.mxu0 0
  %985 = vmatpush1.bf16.msra.mxu0 0
  %986 = vmatprep.subr.bf16.mxu0 0
  %987 = vmatpush1.bf16.msra.mxu0 0
  %988 = vmatprep.subr.bf16.mxu0 0
  %989 = vmatpush1.bf16.msra.mxu0 0
  %990 = vmatprep.subr.bf16.mxu0 0
  %991 = vmatpush1.bf16.msra.mxu0 0
  %992 = vmatprep.subr.bf16.mxu0 0
  %993 = vmatpush1.bf16.msra.mxu0 0
  %994 = vmatprep.mubr.bf16.mxu0 0
  %995 = vmatmul.mubr.bf16.gmra.mrb[0].mxu0 %v960
  %v996 = vpop.f32.mrb[0].mxu0
  %v997 = vadd.f32 0.0, %v996
  %v998 = vpop.f32.mrb[0].mxu0
  %v999 = vpop.f32.mrb[0].mxu0
  %v1000 = vpop.f32.mrb[0].mxu0
  %1001 = vdwg.mxu0
  %v1002 = vadd.f32 %v954, %v997
  %v1003 = vxor.u32 %v1002, 2147483648
  %v1004 = vmul.f32 %v1003, 1.442695
  %v1005 = vpow.pop %v1004
  %v1006 = vadd.f32 %v1005, 1.0
  %v1007 = vrcp.pop %v1006
  %v1008 = vmul.f32 1.0, %v1007
  %v1009 = vtanh.pop %v1002
  %v1010 = vmul.f32 %v1008, %v862
  %1012 = vrot.lane.b32.xlu0 %v1009, 64
  %v1013 = vpop.permute.xlu0 %1012
  %v1015 = vmul.f32 %v1008, %v1013
  %1017 = vrot.lane.b32.xlu0 %v1015, 32
  %v1018 = vpop.permute.xlu0 %1017
  %v1020 = vadd.f32 %v1010, %v1018
  %v1021 = vtanh.pop %v1020
  %1023 = vrot.lane.b32.xlu0 %v1021, 64
  %v1024 = vpop.permute.xlu0 %1023
  %v1026 = vmul.f32 %v1008, %v1024
  %v1027 = vpack.c.bf16 %v1026, %v1026
  %1029 = vrot.lane.b32.xlu0 %v1027, 64
  %v1030 = vpop.permute.xlu0 %1029
  %1032 = vst.msk [vmem:[#allocation7 + $0x10] sm:$0xf] %vm715, %v1030
  %v1033 = vld [vmem:[#allocation8 + $0x20] sm:$0xff]
  %v1034 = vld [vmem:[#allocation5] sm:$0xff]
  %v1035 = vld [vmem:[#allocation5 + $0x8] sm:$0xff]
  %1036 = vrot.lane.b32.xlu0 %v947, 32
  %v1037 = vpop.permute.xlu0 %1036
  %v1039 = vsel %vm405, %v1037, 0
  %1041 = vmatprep.subr.bf16.mxu0 0
  %1042 = vmatpush1.bf16.msra.mxu0 %v1034
  %1043 = vmatprep.subr.bf16.mxu0 0
  %1044 = vmatpush1.bf16.msra.mxu0 %v1035
  %1045 = vmatprep.subr.bf16.mxu0 0
  %1046 = vmatpush1.bf16.msra.mxu0 0
  %1047 = vmatprep.subr.bf16.mxu0 0
  %1048 = vmatpush1.bf16.msra.mxu0 0
  %1049 = vmatprep.subr.bf16.mxu0 0
  %1050 = vmatpush1.bf16.msra.mxu0 0
  %1051 = vmatprep.subr.bf16.mxu0 0
  %1052 = vmatpush1.bf16.msra.mxu0 0
  %1053 = vmatprep.subr.bf16.mxu0 0
  %1054 = vmatpush1.bf16.msra.mxu0 0
  %1055 = vmatprep.subr.bf16.mxu0 0
  %1056 = vmatpush1.bf16.msra.mxu0 0
  %1057 = vmatprep.subr.bf16.mxu0 0
  %1058 = vmatpush1.bf16.msra.mxu0 0
  %1059 = vmatprep.subr.bf16.mxu0 0
  %1060 = vmatpush1.bf16.msra.mxu0 0
  %1061 = vmatprep.subr.bf16.mxu0 0
  %1062 = vmatpush1.bf16.msra.mxu0 0
  %1063 = vmatprep.subr.bf16.mxu0 0
  %1064 = vmatpush1.bf16.msra.mxu0 0
  %1065 = vmatprep.subr.bf16.mxu0 0
  %1066 = vmatpush1.bf16.msra.mxu0 0
  %1067 = vmatprep.subr.bf16.mxu0 0
  %1068 = vmatpush1.bf16.msra.mxu0 0
  %1069 = vmatprep.subr.bf16.mxu0 0
  %1070 = vmatpush1.bf16.msra.mxu0 0
  %1071 = vmatprep.subr.bf16.mxu0 0
  %1072 = vmatpush1.bf16.msra.mxu0 0
  %1073 = vmatprep.mubr.bf16.mxu0 0
  %1074 = vmatmul.mubr.bf16.gmra.mrb[0].mxu0 %v1039
  %v1075 = vpop.f32.mrb[0].mxu0
  %v1076 = vadd.f32 0.0, %v1075
  %v1077 = vpop.f32.mrb[0].mxu0
  %v1078 = vpop.f32.mrb[0].mxu0
  %v1079 = vpop.f32.mrb[0].mxu0
  %1080 = vdwg.mxu0
  %v1081 = vadd.f32 %v1033, %v1076
  %v1082 = vxor.u32 %v1081, 2147483648
  %v1083 = vmul.f32 %v1082, 1.442695
  %v1084 = vpow.pop %v1083
  %v1085 = vadd.f32 %v1084, 1.0
  %v1086 = vrcp.pop %v1085
  %v1087 = vmul.f32 1.0, %v1086
  %v1088 = vtanh.pop %v1081
  %v1089 = vmul.f32 %v1087, %v940
  %1091 = vrot.lane.b32.xlu0 %v1088, 64
  %v1092 = vpop.permute.xlu0 %1091
  %v1094 = vmul.f32 %v1087, %v1092
  %1096 = vrot.lane.b32.xlu0 %v1094, 32
  %v1097 = vpop.permute.xlu0 %1096
  %v1099 = vadd.f32 %v1089, %v1097
  %v1100 = vtanh.pop %v1099
  %1102 = vrot.lane.b32.xlu0 %v1100, 64
  %v1103 = vpop.permute.xlu0 %1102
  %v1105 = vmul.f32 %v1087, %v1103
  %v1106 = vpack.c.bf16 %v1105, %v1105
  %1108 = vrot.lane.b32.xlu0 %v1106, 32
  %v1109 = vpop.permute.xlu0 %1108
  %1111 = vst.msk [vmem:[#allocation7 + $0x10] sm:$0xf] %vm479, %v1109
  %v1112 = vld [vmem:[%s393 + $0x18] sm:$0xff]
  %v1113 = vld [vmem:[%s482] sm:$0xff]
  %v1114 = vld [vmem:[%s482 + $0x8] sm:$0xff]
  %1115 = vrot.lane.b32.xlu0 %v1027, 32
  %v1116 = vpop.permute.xlu0 %1115
  %v1118 = vsel %vm405, %v1116, 0
  %1120 = vmatprep.subr.bf16.mxu0 0
  %1121 = vmatpush1.bf16.msra.mxu0 %v1113
  %1122 = vmatprep.subr.bf16.mxu0 0
  %1123 = vmatpush1.bf16.msra.mxu0 %v1114
  %1124 = vmatprep.subr.bf16.mxu0 0
  %1125 = vmatpush1.bf16.msra.mxu0 0
  %1126 = vmatprep.subr.bf16.mxu0 0
  %1127 = vmatpush1.bf16.msra.mxu0 0
  %1128 = vmatprep.subr.bf16.mxu0 0
  %1129 = vmatpush1.bf16.msra.mxu0 0
  %1130 = vmatprep.subr.bf16.mxu0 0
  %1131 = vmatpush1.bf16.msra.mxu0 0
  %1132 = vmatprep.subr.bf16.mxu0 0
  %1133 = vmatpush1.bf16.msra.mxu0 0
  %1134 = vmatprep.subr.bf16.mxu0 0
  %1135 = vmatpush1.bf16.msra.mxu0 0
  %1136 = vmatprep.subr.bf16.mxu0 0
  %1137 = vmatpush1.bf16.msra.mxu0 0
  %1138 = vmatprep.subr.bf16.mxu0 0
  %1139 = vmatpush1.bf16.msra.mxu0 0
  %1140 = vmatprep.subr.bf16.mxu0 0
  %1141 = vmatpush1.bf16.msra.mxu0 0
  %1142 = vmatprep.subr.bf16.mxu0 0
  %1143 = vmatpush1.bf16.msra.mxu0 0
  %1144 = vmatprep.subr.bf16.mxu0 0
  %1145 = vmatpush1.bf16.msra.mxu0 0
  %1146 = vmatprep.subr.bf16.mxu0 0
  %1147 = vmatpush1.bf16.msra.mxu0 0
  %1148 = vmatprep.subr.bf16.mxu0 0
  %1149 = vmatpush1.bf16.msra.mxu0 0
  %1150 = vmatprep.subr.bf16.mxu0 0
  %1151 = vmatpush1.bf16.msra.mxu0 0
  %1152 = vmatprep.mubr.bf16.mxu0 0
  %1153 = vmatmul.mubr.bf16.gmra.mrb[0].mxu0 %v1118
  %v1154 = vpop.f32.mrb[0].mxu0
  %v1155 = vadd.f32 0.0, %v1154
  %v1156 = vpop.f32.mrb[0].mxu0
  %v1157 = vpop.f32.mrb[0].mxu0
  %v1158 = vpop.f32.mrb[0].mxu0
  %1159 = vdwg.mxu0
  %v1160 = vadd.f32 %v1112, %v1155
  %v1161 = vxor.u32 %v1160, 2147483648
  %v1162 = vmul.f32 %v1161, 1.442695
  %v1163 = vpow.pop %v1162
  %v1164 = vadd.f32 %v1163, 1.0
  %v1165 = vrcp.pop %v1164
  %v1166 = vmul.f32 1.0, %v1165
  %v1167 = vtanh.pop %v1160
  %v1168 = vmul.f32 %v1166, %v1020
  %1170 = vrot.lane.b32.xlu0 %v1167, 64
  %v1171 = vpop.permute.xlu0 %1170
  %v1173 = vmul.f32 %v1166, %v1171
  %1175 = vrot.lane.b32.xlu0 %v1173, 32
  %v1176 = vpop.permute.xlu0 %1175
  %v1178 = vadd.f32 %v1168, %v1176
  %v1179 = vtanh.pop %v1178
  %1181 = vrot.lane.b32.xlu0 %v1179, 64
  %v1182 = vpop.permute.xlu0 %1181
  %v1184 = vmul.f32 %v1166, %v1182
  %v1185 = vpack.c.bf16 %v1184, %v1184
  %v1187 = vrot.slane %v1185, 4
  %1188 = vrot.lane.b32.xlu0 %v1187, 64
  %v1189 = vpop.permute.xlu0 %1188
  %1191 = vst.msk [vmem:[#allocation7 + $0x8] sm:$0xf0] %vm556, %v1189
  %v1192 = vld [vmem:[#allocation8 + $0x28] sm:$0xff]
  %v1193 = vld [vmem:[#allocation5] sm:$0xff]
  %v1194 = vld [vmem:[#allocation5 + $0x8] sm:$0xff]
  %v1196 = vsel %vm405, %v1109, 0
  %1198 = vmatprep.subr.bf16.mxu0 0
  %1199 = vmatpush1.bf16.msra.mxu0 %v1193
  %1200 = vmatprep.subr.bf16.mxu0 0
  %1201 = vmatpush1.bf16.msra.mxu0 %v1194
  %1202 = vmatprep.subr.bf16.mxu0 0
  %1203 = vmatpush1.bf16.msra.mxu0 0
  %1204 = vmatprep.subr.bf16.mxu0 0
  %1205 = vmatpush1.bf16.msra.mxu0 0
  %1206 = vmatprep.subr.bf16.mxu0 0
  %1207 = vmatpush1.bf16.msra.mxu0 0
  %1208 = vmatprep.subr.bf16.mxu0 0
  %1209 = vmatpush1.bf16.msra.mxu0 0
  %1210 = vmatprep.subr.bf16.mxu0 0
  %1211 = vmatpush1.bf16.msra.mxu0 0
  %1212 = vmatprep.subr.bf16.mxu0 0
  %1213 = vmatpush1.bf16.msra.mxu0 0
  %1214 = vmatprep.subr.bf16.mxu0 0
  %1215 = vmatpush1.bf16.msra.mxu0 0
  %1216 = vmatprep.subr.bf16.mxu0 0
  %1217 = vmatpush1.bf16.msra.mxu0 0
  %1218 = vmatprep.subr.bf16.mxu0 0
  %1219 = vmatpush1.bf16.msra.mxu0 0
  %1220 = vmatprep.subr.bf16.mxu0 0
  %1221 = vmatpush1.bf16.msra.mxu0 0
  %1222 = vmatprep.subr.bf16.mxu0 0
  %1223 = vmatpush1.bf16.msra.mxu0 0
  %1224 = vmatprep.subr.bf16.mxu0 0
  %1225 = vmatpush1.bf16.msra.mxu0 0
  %1226 = vmatprep.subr.bf16.mxu0 0
  %1227 = vmatpush1.bf16.msra.mxu0 0
  %1228 = vmatprep.subr.bf16.mxu0 0
  %1229 = vmatpush1.bf16.msra.mxu0 0
  %1230 = vmatprep.mubr.bf16.mxu0 0
  %1231 = vmatmul.mubr.bf16.gmra.mrb[0].mxu0 %v1196
  %v1232 = vpop.f32.mrb[0].mxu0
  %v1233 = vadd.f32 0.0, %v1232
  %v1234 = vpop.f32.mrb[0].mxu0
  %v1235 = vpop.f32.mrb[0].mxu0
  %v1236 = vpop.f32.mrb[0].mxu0
  %1237 = vdwg.mxu0
  %v1238 = vadd.f32 %v1192, %v1233
  %v1239 = vxor.u32 %v1238, 2147483648
  %v1240 = vmul.f32 %v1239, 1.442695
  %v1241 = vpow.pop %v1240
  %v1242 = vadd.f32 %v1241, 1.0
  %v1243 = vrcp.pop %v1242
  %v1244 = vmul.f32 1.0, %v1243
  %v1245 = vtanh.pop %v1238
  %v1246 = vmul.f32 %v1244, %v1099
  %1248 = vrot.lane.b32.xlu0 %v1245, 64
  %v1249 = vpop.permute.xlu0 %1248
  %v1251 = vmul.f32 %v1244, %v1249
  %1253 = vrot.lane.b32.xlu0 %v1251, 32
  %v1254 = vpop.permute.xlu0 %1253
  %v1256 = vadd.f32 %v1246, %v1254
  %v1257 = vtanh.pop %v1256
  %1259 = vrot.lane.b32.xlu0 %v1257, 64
  %v1260 = vpop.permute.xlu0 %1259
  %v1262 = vmul.f32 %v1244, %v1260
  %v1263 = vpack.c.bf16 %v1262, %v1262
  %v1265 = vrot.slane %v1263, 4
  %1266 = vrot.lane.b32.xlu0 %v1265, 32
  %v1267 = vpop.permute.xlu0 %1266
  %1269 = vst.msk [vmem:[#allocation7 + $0x10] sm:$0xf0] %vm635, %v1267
  %v1270 = vld [vmem:[%s393 + $0x10] sm:$0xff]
  %v1271 = vld [vmem:[%s482] sm:$0xff]
  %v1272 = vld [vmem:[%s482 + $0x8] sm:$0xff]
  %1273 = vrot.lane.b32.xlu0 %v1185, 32
  %v1274 = vpop.permute.xlu0 %1273
  %v1276 = vsel %vm405, %v1274, 0
  %1278 = vmatprep.subr.bf16.mxu0 0
  %1279 = vmatpush1.bf16.msra.mxu0 %v1271
  %1280 = vmatprep.subr.bf16.mxu0 0
  %1281 = vmatpush1.bf16.msra.mxu0 %v1272
  %1282 = vmatprep.subr.bf16.mxu0 0
  %1283 = vmatpush1.bf16.msra.mxu0 0
  %1284 = vmatprep.subr.bf16.mxu0 0
  %1285 = vmatpush1.bf16.msra.mxu0 0
  %1286 = vmatprep.subr.bf16.mxu0 0
  %1287 = vmatpush1.bf16.msra.mxu0 0
  %1288 = vmatprep.subr.bf16.mxu0 0
  %1289 = vmatpush1.bf16.msra.mxu0 0
  %1290 = vmatprep.subr.bf16.mxu0 0
  %1291 = vmatpush1.bf16.msra.mxu0 0
  %1292 = vmatprep.subr.bf16.mxu0 0
  %1293 = vmatpush1.bf16.msra.mxu0 0
  %1294 = vmatprep.subr.bf16.mxu0 0
  %1295 = vmatpush1.bf16.msra.mxu0 0
  %1296 = vmatprep.subr.bf16.mxu0 0
  %1297 = vmatpush1.bf16.msra.mxu0 0
  %1298 = vmatprep.subr.bf16.mxu0 0
  %1299 = vmatpush1.bf16.msra.mxu0 0
  %1300 = vmatprep.subr.bf16.mxu0 0
  %1301 = vmatpush1.bf16.msra.mxu0 0
  %1302 = vmatprep.subr.bf16.mxu0 0
  %1303 = vmatpush1.bf16.msra.mxu0 0
  %1304 = vmatprep.subr.bf16.mxu0 0
  %1305 = vmatpush1.bf16.msra.mxu0 0
  %1306 = vmatprep.subr.bf16.mxu0 0
  %1307 = vmatpush1.bf16.msra.mxu0 0
  %1308 = vmatprep.subr.bf16.mxu0 0
  %1309 = vmatpush1.bf16.msra.mxu0 0
  %1310 = vmatprep.mubr.bf16.mxu0 0
  %1311 = vmatmul.mubr.bf16.gmra.mrb[0].mxu0 %v1276
  %v1312 = vpop.f32.mrb[0].mxu0
  %v1313 = vadd.f32 0.0, %v1312
  %v1314 = vpop.f32.mrb[0].mxu0
  %v1315 = vpop.f32.mrb[0].mxu0
  %v1316 = vpop.f32.mrb[0].mxu0
  %1317 = vdwg.mxu0
  %v1318 = vadd.f32 %v1270, %v1313
  %v1319 = vxor.u32 %v1318, 2147483648
  %v1320 = vmul.f32 %v1319, 1.442695
  %v1321 = vpow.pop %v1320
  %v1322 = vadd.f32 %v1321, 1.0
  %v1323 = vrcp.pop %v1322
  %v1324 = vmul.f32 1.0, %v1323
  %v1325 = vtanh.pop %v1318
  %v1326 = vmul.f32 %v1324, %v1178
  %1328 = vrot.lane.b32.xlu0 %v1325, 64
  %v1329 = vpop.permute.xlu0 %1328
  %v1331 = vmul.f32 %v1324, %v1329
  %1333 = vrot.lane.b32.xlu0 %v1331, 32
  %v1334 = vpop.permute.xlu0 %1333
  %v1336 = vadd.f32 %v1326, %v1334
  %v1337 = vtanh.pop %v1336
  %1339 = vrot.lane.b32.xlu0 %v1337, 64
  %v1340 = vpop.permute.xlu0 %1339
  %v1342 = vmul.f32 %v1324, %v1340
  %v1343 = vpack.c.bf16 %v1342, %v1342
  %1345 = vrot.lane.b32.xlu0 %v1343, 64
  %v1346 = vpop.permute.xlu0 %1345
  %1348 = vst.msk [vmem:[#allocation7 + $0x8] sm:$0xf] %vm715, %v1346
  %v1349 = vld [vmem:[#allocation8 + $0x30] sm:$0xff]
  %v1350 = vld [vmem:[#allocation5] sm:$0xff]
  %v1351 = vld [vmem:[#allocation5 + $0x8] sm:$0xff]
  %1352 = vrot.lane.b32.xlu0 %v1263, 32
  %v1353 = vpop.permute.xlu0 %1352
  %v1355 = vsel %vm405, %v1353, 0
  %1357 = vmatprep.subr.bf16.mxu0 0
  %1358 = vmatpush1.bf16.msra.mxu0 %v1350
  %1359 = vmatprep.subr.bf16.mxu0 0
  %1360 = vmatpush1.bf16.msra.mxu0 %v1351
  %1361 = vmatprep.subr.bf16.mxu0 0
  %1362 = vmatpush1.bf16.msra.mxu0 0
  %1363 = vmatprep.subr.bf16.mxu0 0
  %1364 = vmatpush1.bf16.msra.mxu0 0
  %1365 = vmatprep.subr.bf16.mxu0 0
  %1366 = vmatpush1.bf16.msra.mxu0 0
  %1367 = vmatprep.subr.bf16.mxu0 0
  %1368 = vmatpush1.bf16.msra.mxu0 0
  %1369 = vmatprep.subr.bf16.mxu0 0
  %1370 = vmatpush1.bf16.msra.mxu0 0
  %1371 = vmatprep.subr.bf16.mxu0 0
  %1372 = vmatpush1.bf16.msra.mxu0 0
  %1373 = vmatprep.subr.bf16.mxu0 0
  %1374 = vmatpush1.bf16.msra.mxu0 0
  %1375 = vmatprep.subr.bf16.mxu0 0
  %1376 = vmatpush1.bf16.msra.mxu0 0
  %1377 = vmatprep.subr.bf16.mxu0 0
  %1378 = vmatpush1.bf16.msra.mxu0 0
  %1379 = vmatprep.subr.bf16.mxu0 0
  %1380 = vmatpush1.bf16.msra.mxu0 0
  %1381 = vmatprep.subr.bf16.mxu0 0
  %1382 = vmatpush1.bf16.msra.mxu0 0
  %1383 = vmatprep.subr.bf16.mxu0 0
  %1384 = vmatpush1.bf16.msra.mxu0 0
  %1385 = vmatprep.subr.bf16.mxu0 0
  %1386 = vmatpush1.bf16.msra.mxu0 0
  %1387 = vmatprep.subr.bf16.mxu0 0
  %1388 = vmatpush1.bf16.msra.mxu0 0
  %1389 = vmatprep.mubr.bf16.mxu0 0
  %1390 = vmatmul.mubr.bf16.gmra.mrb[0].mxu0 %v1355
  %v1391 = vpop.f32.mrb[0].mxu0
  %v1392 = vadd.f32 0.0, %v1391
  %v1393 = vpop.f32.mrb[0].mxu0
  %v1394 = vpop.f32.mrb[0].mxu0
  %v1395 = vpop.f32.mrb[0].mxu0
  %1396 = vdwg.mxu0
  %v1397 = vadd.f32 %v1349, %v1392
  %v1398 = vxor.u32 %v1397, 2147483648
  %v1399 = vmul.f32 %v1398, 1.442695
  %v1400 = vpow.pop %v1399
  %v1401 = vadd.f32 %v1400, 1.0
  %v1402 = vrcp.pop %v1401
  %v1403 = vmul.f32 1.0, %v1402
  %v1404 = vtanh.pop %v1397
  %v1405 = vmul.f32 %v1403, %v1256
  %1407 = vrot.lane.b32.xlu0 %v1404, 64
  %v1408 = vpop.permute.xlu0 %1407
  %v1410 = vmul.f32 %v1403, %v1408
  %1412 = vrot.lane.b32.xlu0 %v1410, 32
  %v1413 = vpop.permute.xlu0 %1412
  %v1415 = vadd.f32 %v1405, %v1413
  %v1416 = vtanh.pop %v1415
  %1418 = vrot.lane.b32.xlu0 %v1416, 64
  %v1419 = vpop.permute.xlu0 %1418
  %v1421 = vmul.f32 %v1403, %v1419
  %v1422 = vpack.c.bf16 %v1421, %v1421
  %1424 = vrot.lane.b32.xlu0 %v1422, 32
  %v1425 = vpop.permute.xlu0 %1424
  %1427 = vst.msk [vmem:[#allocation7 + $0x18] sm:$0xf] %vm479, %v1425
  %v1428 = vld [vmem:[%s393 + $0x8] sm:$0xff]
  %v1429 = vld [vmem:[%s482] sm:$0xff]
  %v1430 = vld [vmem:[%s482 + $0x8] sm:$0xff]
  %1431 = vrot.lane.b32.xlu0 %v1343, 32
  %v1432 = vpop.permute.xlu0 %1431
  %v1434 = vsel %vm405, %v1432, 0
  %1436 = vmatprep.subr.bf16.mxu0 0
  %1437 = vmatpush1.bf16.msra.mxu0 %v1429
  %1438 = vmatprep.subr.bf16.mxu0 0
  %1439 = vmatpush1.bf16.msra.mxu0 %v1430
  %1440 = vmatprep.subr.bf16.mxu0 0
  %1441 = vmatpush1.bf16.msra.mxu0 0
  %1442 = vmatprep.subr.bf16.mxu0 0
  %1443 = vmatpush1.bf16.msra.mxu0 0
  %1444 = vmatprep.subr.bf16.mxu0 0
  %1445 = vmatpush1.bf16.msra.mxu0 0
  %1446 = vmatprep.subr.bf16.mxu0 0
  %1447 = vmatpush1.bf16.msra.mxu0 0
  %1448 = vmatprep.subr.bf16.mxu0 0
  %1449 = vmatpush1.bf16.msra.mxu0 0
  %1450 = vmatprep.subr.bf16.mxu0 0
  %1451 = vmatpush1.bf16.msra.mxu0 0
  %1452 = vmatprep.subr.bf16.mxu0 0
  %1453 = vmatpush1.bf16.msra.mxu0 0
  %1454 = vmatprep.subr.bf16.mxu0 0
  %1455 = vmatpush1.bf16.msra.mxu0 0
  %1456 = vmatprep.subr.bf16.mxu0 0
  %1457 = vmatpush1.bf16.msra.mxu0 0
  %1458 = vmatprep.subr.bf16.mxu0 0
  %1459 = vmatpush1.bf16.msra.mxu0 0
  %1460 = vmatprep.subr.bf16.mxu0 0
  %1461 = vmatpush1.bf16.msra.mxu0 0
  %1462 = vmatprep.subr.bf16.mxu0 0
  %1463 = vmatpush1.bf16.msra.mxu0 0
  %1464 = vmatprep.subr.bf16.mxu0 0
  %1465 = vmatpush1.bf16.msra.mxu0 0
  %1466 = vmatprep.subr.bf16.mxu0 0
  %1467 = vmatpush1.bf16.msra.mxu0 0
  %1468 = vmatprep.mubr.bf16.mxu0 0
  %1469 = vmatmul.mubr.bf16.gmra.mrb[0].mxu0 %v1434
  %v1470 = vpop.f32.mrb[0].mxu0
  %v1471 = vadd.f32 0.0, %v1470
  %v1472 = vpop.f32.mrb[0].mxu0
  %v1473 = vpop.f32.mrb[0].mxu0
  %v1474 = vpop.f32.mrb[0].mxu0
  %1475 = vdwg.mxu0
  %v1476 = vadd.f32 %v1428, %v1471
  %v1477 = vxor.u32 %v1476, 2147483648
  %v1478 = vmul.f32 %v1477, 1.442695
  %v1479 = vpow.pop %v1478
  %v1480 = vadd.f32 %v1479, 1.0
  %v1481 = vrcp.pop %v1480
  %v1482 = vmul.f32 1.0, %v1481
  %v1483 = vtanh.pop %v1476
  %v1484 = vmul.f32 %v1482, %v1336
  %1486 = vrot.lane.b32.xlu0 %v1483, 64
  %v1487 = vpop.permute.xlu0 %1486
  %v1489 = vmul.f32 %v1482, %v1487
  %1491 = vrot.lane.b32.xlu0 %v1489, 32
  %v1492 = vpop.permute.xlu0 %1491
  %v1494 = vadd.f32 %v1484, %v1492
  %v1495 = vtanh.pop %v1494
  %1497 = vrot.lane.b32.xlu0 %v1495, 64
  %v1498 = vpop.permute.xlu0 %1497
  %v1500 = vmul.f32 %v1482, %v1498
  %v1501 = vpack.c.bf16 %v1500, %v1500
  %v1503 = vrot.slane %v1501, 4
  %1504 = vrot.lane.b32.xlu0 %v1503, 64
  %v1505 = vpop.permute.xlu0 %1504
  %1507 = vst.msk [vmem:[#allocation7] sm:$0xf0] %vm556, %v1505
  %v1508 = vld [vmem:[#allocation8 + $0x38] sm:$0xff]
  %v1509 = vld [vmem:[#allocation5] sm:$0xff]
  %v1510 = vld [vmem:[#allocation5 + $0x8] sm:$0xff]
  %v1512 = vsel %vm405, %v1425, 0
  %1514 = vmatprep.subr.bf16.mxu0 0
  %1515 = vmatpush1.bf16.msra.mxu0 %v1509
  %1516 = vmatprep.subr.bf16.mxu0 0
  %1517 = vmatpush1.bf16.msra.mxu0 %v1510
  %1518 = vmatprep.subr.bf16.mxu0 0
  %1519 = vmatpush1.bf16.msra.mxu0 0
  %1520 = vmatprep.subr.bf16.mxu0 0
  %1521 = vmatpush1.bf16.msra.mxu0 0
  %1522 = vmatprep.subr.bf16.mxu0 0
  %1523 = vmatpush1.bf16.msra.mxu0 0
  %1524 = vmatprep.subr.bf16.mxu0 0
  %1525 = vmatpush1.bf16.msra.mxu0 0
  %1526 = vmatprep.subr.bf16.mxu0 0
  %1527 = vmatpush1.bf16.msra.mxu0 0
  %1528 = vmatprep.subr.bf16.mxu0 0
  %1529 = vmatpush1.bf16.msra.mxu0 0
  %1530 = vmatprep.subr.bf16.mxu0 0
  %1531 = vmatpush1.bf16.msra.mxu0 0
  %1532 = vmatprep.subr.bf16.mxu0 0
  %1533 = vmatpush1.bf16.msra.mxu0 0
  %1534 = vmatprep.subr.bf16.mxu0 0
  %1535 = vmatpush1.bf16.msra.mxu0 0
  %1536 = vmatprep.subr.bf16.mxu0 0
  %1537 = vmatpush1.bf16.msra.mxu0 0
  %1538 = vmatprep.subr.bf16.mxu0 0
  %1539 = vmatpush1.bf16.msra.mxu0 0
  %1540 = vmatprep.subr.bf16.mxu0 0
  %1541 = vmatpush1.bf16.msra.mxu0 0
  %1542 = vmatprep.subr.bf16.mxu0 0
  %1543 = vmatpush1.bf16.msra.mxu0 0
  %1544 = vmatprep.subr.bf16.mxu0 0
  %1545 = vmatpush1.bf16.msra.mxu0 0
  %1546 = vmatprep.mubr.bf16.mxu0 0
  %1547 = vmatmul.mubr.bf16.gmra.mrb[0].mxu0 %v1512
  %v1548 = vpop.f32.mrb[0].mxu0
  %v1549 = vadd.f32 0.0, %v1548
  %v1550 = vpop.f32.mrb[0].mxu0
  %v1551 = vpop.f32.mrb[0].mxu0
  %v1552 = vpop.f32.mrb[0].mxu0
  %1553 = vdwg.mxu0
  %v1554 = vadd.f32 %v1508, %v1549
  %v1555 = vxor.u32 %v1554, 2147483648
  %v1556 = vmul.f32 %v1555, 1.442695
  %v1557 = vpow.pop %v1556
  %v1558 = vadd.f32 %v1557, 1.0
  %v1559 = vrcp.pop %v1558
  %v1560 = vmul.f32 1.0, %v1559
  %v1561 = vtanh.pop %v1554
  %v1562 = vmul.f32 %v1560, %v1415
  %1564 = vrot.lane.b32.xlu0 %v1561, 64
  %v1565 = vpop.permute.xlu0 %1564
  %v1567 = vmul.f32 %v1560, %v1565
  %1569 = vrot.lane.b32.xlu0 %v1567, 32
  %v1570 = vpop.permute.xlu0 %1569
  %v1572 = vadd.f32 %v1562, %v1570
  %v1573 = vtanh.pop %v1572
  %1575 = vrot.lane.b32.xlu0 %v1573, 64
  %v1576 = vpop.permute.xlu0 %1575
  %v1578 = vmul.f32 %v1560, %v1576
  %v1579 = vpack.c.bf16 %v1578, %v1578
  %v1581 = vrot.slane %v1579, 4
  %1582 = vrot.lane.b32.xlu0 %v1581, 32
  %v1583 = vpop.permute.xlu0 %1582
  %1585 = vst.msk [vmem:[#allocation7 + $0x18] sm:$0xf0] %vm635, %v1583
  %v1586 = vld [vmem:[%s393] sm:$0xff]
  %v1587 = vld [vmem:[%s482] sm:$0xff]
  %v1588 = vld [vmem:[%s482 + $0x8] sm:$0xff]
  %1589 = vrot.lane.b32.xlu0 %v1501, 32
  %v1590 = vpop.permute.xlu0 %1589
  %v1592 = vsel %vm405, %v1590, 0
  %1594 = vmatprep.subr.bf16.mxu0 0
  %1595 = vmatpush1.bf16.msra.mxu0 %v1587
  %1596 = vmatprep.subr.bf16.mxu0 0
  %1597 = vmatpush1.bf16.msra.mxu0 %v1588
  %1598 = vmatprep.subr.bf16.mxu0 0
  %1599 = vmatpush1.bf16.msra.mxu0 0
  %1600 = vmatprep.subr.bf16.mxu0 0
  %1601 = vmatpush1.bf16.msra.mxu0 0
  %1602 = vmatprep.subr.bf16.mxu0 0
  %1603 = vmatpush1.bf16.msra.mxu0 0
  %1604 = vmatprep.subr.bf16.mxu0 0
  %1605 = vmatpush1.bf16.msra.mxu0 0
  %1606 = vmatprep.subr.bf16.mxu0 0
  %1607 = vmatpush1.bf16.msra.mxu0 0
  %1608 = vmatprep.subr.bf16.mxu0 0
  %1609 = vmatpush1.bf16.msra.mxu0 0
  %1610 = vmatprep.subr.bf16.mxu0 0
  %1611 = vmatpush1.bf16.msra.mxu0 0
  %1612 = vmatprep.subr.bf16.mxu0 0
  %1613 = vmatpush1.bf16.msra.mxu0 0
  %1614 = vmatprep.subr.bf16.mxu0 0
  %1615 = vmatpush1.bf16.msra.mxu0 0
  %1616 = vmatprep.subr.bf16.mxu0 0
  %1617 = vmatpush1.bf16.msra.mxu0 0
  %1618 = vmatprep.subr.bf16.mxu0 0
  %1619 = vmatpush1.bf16.msra.mxu0 0
  %1620 = vmatprep.subr.bf16.mxu0 0
  %1621 = vmatpush1.bf16.msra.mxu0 0
  %1622 = vmatprep.subr.bf16.mxu0 0
  %1623 = vmatpush1.bf16.msra.mxu0 0
  %1624 = vmatprep.subr.bf16.mxu0 0
  %1625 = vmatpush1.bf16.msra.mxu0 0
  %1626 = vmatprep.mubr.bf16.mxu0 0
  %1627 = vmatmul.mubr.bf16.gmra.mrb[0].mxu0 %v1592
  %v1628 = vpop.f32.mrb[0].mxu0
  %v1629 = vadd.f32 0.0, %v1628
  %v1630 = vpop.f32.mrb[0].mxu0
  %v1631 = vpop.f32.mrb[0].mxu0
  %v1632 = vpop.f32.mrb[0].mxu0
  %1633 = vdwg.mxu0
  %v1634 = vadd.f32 %v1586, %v1629
  %v1635 = vxor.u32 %v1634, 2147483648
  %v1636 = vmul.f32 %v1635, 1.442695
  %v1637 = vpow.pop %v1636
  %v1638 = vadd.f32 %v1637, 1.0
  %v1639 = vrcp.pop %v1638
  %v1640 = vmul.f32 1.0, %v1639
  %v1641 = vtanh.pop %v1634
  %v1642 = vmul.f32 %v1640, %v1494
  %1644 = vrot.lane.b32.xlu0 %v1641, 64
  %v1645 = vpop.permute.xlu0 %1644
  %v1647 = vmul.f32 %v1640, %v1645
  %1649 = vrot.lane.b32.xlu0 %v1647, 32
  %v1650 = vpop.permute.xlu0 %1649
  %v1652 = vadd.f32 %v1642, %v1650
  %v1653 = vtanh.pop %v1652
  %1655 = vrot.lane.b32.xlu0 %v1653, 64
  %v1656 = vpop.permute.xlu0 %1655
  %v1658 = vmul.f32 %v1640, %v1656
  %v1659 = vpack.c.bf16 %v1658, %v1658
  %1661 = vrot.lane.b32.xlu0 %v1659, 64
  %v1662 = vpop.permute.xlu0 %1661
  %1664 = vst.msk [vmem:[#allocation7] sm:$0xf] %vm715, %v1662
  %v1665 = vld [vmem:[#allocation7] sm:$0xff]
  %v1666 = vld [vmem:[#allocation7 + $0x8] sm:$0xff]
  %v1667 = vld [vmem:[#allocation7 + $0x10] sm:$0xff]
  %v1668 = vld [vmem:[#allocation7 + $0x18] sm:$0xff]
  %v1669 = vld [vmem:[#allocation4] sm:$0xff]
  %v1670 = vld [vmem:[#allocation4 + $0x8] sm:$0xff]
  %v1671 = vld [vmem:[#allocation4 + $0x10] sm:$0xff]
  %v1672 = vld [vmem:[#allocation4 + $0x18] sm:$0xff]
  %s1673 = scalar_lea.vmem %s4, 2
  %v1674 = vld [vmem:[%s1673] sm:$0x1]
  %v1676 = vlaneseq
  %v1677 = vshrl.u32 %v1676, 7
  %v1678 = vsub.s32 0, %v1677
  %v1679 = vrot.slane %v1674, %v1678
  %vm1681 = vcmask 523264
  %v1683 = vsel %vm1681, %v1665, 0
  %v1686 = vsel %vm1681, %v1666, 0
  %v1689 = vsel %vm1681, %v1667, 0
  %v1692 = vsel %vm1681, %v1668, 0
  %1694 = vmatprep.subr.bf16.mxu0 0
  %1695 = vmatpush1.bf16.msra.mxu0 %v1669
  %1696 = vmatprep.subr.bf16.mxu0 0
  %1697 = vmatpush1.bf16.msra.mxu0 %v1670
  %1698 = vmatprep.subr.bf16.mxu0 0
  %1699 = vmatpush1.bf16.msra.mxu0 %v1671
  %1700 = vmatprep.subr.bf16.mxu0 0
  %1701 = vmatpush1.bf16.msra.mxu0 %v1672
  %1702 = vmatprep.subr.bf16.mxu0 0
  %1703 = vmatpush1.bf16.msra.mxu0 0
  %1704 = vmatprep.subr.bf16.mxu0 0
  %1705 = vmatpush1.bf16.msra.mxu0 0
  %1706 = vmatprep.subr.bf16.mxu0 0
  %1707 = vmatpush1.bf16.msra.mxu0 0
  %1708 = vmatprep.subr.bf16.mxu0 0
  %1709 = vmatpush1.bf16.msra.mxu0 0
  %1710 = vmatprep.subr.bf16.mxu0 0
  %1711 = vmatpush1.bf16.msra.mxu0 0
  %1712 = vmatprep.subr.bf16.mxu0 0
  %1713 = vmatpush1.bf16.msra.mxu0 0
  %1714 = vmatprep.subr.bf16.mxu0 0
  %1715 = vmatpush1.bf16.msra.mxu0 0
  %1716 = vmatprep.subr.bf16.mxu0 0
  %1717 = vmatpush1.bf16.msra.mxu0 0
  %1718 = vmatprep.subr.bf16.mxu0 0
  %1719 = vmatpush1.bf16.msra.mxu0 0
  %1720 = vmatprep.subr.bf16.mxu0 0
  %1721 = vmatpush1.bf16.msra.mxu0 0
  %1722 = vmatprep.subr.bf16.mxu0 0
  %1723 = vmatpush1.bf16.msra.mxu0 0
  %1724 = vmatprep.subr.bf16.mxu0 0
  %1725 = vmatpush1.bf16.msra.mxu0 0
  %1726 = vmatprep.mubr.bf16.mxu0 0
  %1727 = vmatmul.mubr.bf16.gmra.mrb[0].mxu0 %v1683
  %v1728 = vpop.f32.mrb[0].mxu0
  %v1729 = vadd.f32 %v1679, %v1728
  %v1730 = vpop.f32.mrb[0].mxu0
  %v1731 = vpop.f32.mrb[0].mxu0
  %v1732 = vadd.f32 %v1679, %v1731
  %v1733 = vpop.f32.mrb[0].mxu0
  %1734 = vmatprep.mubr.bf16.mxu0 0
  %1735 = vmatmul.mubr.bf16.gmra.mrb[0].mxu0 %v1686
  %v1736 = vpop.f32.mrb[0].mxu0
  %v1737 = vadd.f32 %v1679, %v1736
  %v1738 = vpop.f32.mrb[0].mxu0
  %v1739 = vpop.f32.mrb[0].mxu0
  %v1740 = vadd.f32 %v1679, %v1739
  %v1741 = vpop.f32.mrb[0].mxu0
  %1742 = vmatprep.mubr.bf16.mxu0 0
  %1743 = vmatmul.mubr.bf16.gmra.mrb[0].mxu0 %v1689
  %v1744 = vpop.f32.mrb[0].mxu0
  %v1745 = vadd.f32 %v1679, %v1744
  %v1746 = vpop.f32.mrb[0].mxu0
  %v1747 = vpop.f32.mrb[0].mxu0
  %v1748 = vadd.f32 %v1679, %v1747
  %v1749 = vpop.f32.mrb[0].mxu0
  %1750 = vmatprep.mubr.bf16.mxu0 0
  %1751 = vmatmul.mubr.bf16.gmra.mrb[0].mxu0 %v1692
  %v1752 = vpop.f32.mrb[0].mxu0
  %v1753 = vadd.f32 %v1679, %v1752
  %v1754 = vpop.f32.mrb[0].mxu0
  %v1755 = vpop.f32.mrb[0].mxu0
  %v1756 = vadd.f32 %v1679, %v1755
  %v1757 = vpop.f32.mrb[0].mxu0
  %1758 = vdwg.mxu0
  %1759 = vst [vmem:[#allocation8] sm:$0xff] %v1729
  %1760 = vst [vmem:[#allocation8 + $0x8] sm:$0xff] %v1732
  %1761 = vst [vmem:[#allocation8 + $0x10] sm:$0xff] %v1737
  %1762 = vst [vmem:[#allocation8 + $0x18] sm:$0xff] %v1740
  %1763 = vst [vmem:[#allocation8 + $0x20] sm:$0xff] %v1745
  %1764 = vst [vmem:[#allocation8 + $0x28] sm:$0xff] %v1748
  %1765 = vst [vmem:[#allocation8 + $0x30] sm:$0xff] %v1753
  %1766 = vst [vmem:[#allocation8 + $0x38] sm:$0xff] %v1756
  %s1767 = scalar_lea.vmem [#allocation4], 32
  %v1768 = vld [vmem:[%s1767] sm:$0xff]
  %v1769 = vld [vmem:[%s1767 + $0x8] sm:$0xff]
  %v1770 = vld [vmem:[%s1767 + $0x10] sm:$0xff]
  %v1771 = vld [vmem:[%s1767 + $0x18] sm:$0xff]
  %s1772 = scalar_lea.vmem %s4, 3
  %v1773 = vld [vmem:[%s1772] sm:$0x1]
  %v1775 = vlaneseq
  %v1776 = vshrl.u32 %v1775, 7
  %v1777 = vsub.s32 0, %v1776
  %v1778 = vrot.slane %v1773, %v1777
  %1780 = vmatprep.subr.bf16.mxu0 0
  %1781 = vmatpush1.bf16.msra.mxu0 %v1768
  %1782 = vmatprep.subr.bf16.mxu0 0
  %1783 = vmatpush1.bf16.msra.mxu0 %v1769
  %1784 = vmatprep.subr.bf16.mxu0 0
  %1785 = vmatpush1.bf16.msra.mxu0 %v1770
  %1786 = vmatprep.subr.bf16.mxu0 0
  %1787 = vmatpush1.bf16.msra.mxu0 %v1771
  %1788 = vmatprep.subr.bf16.mxu0 0
  %1789 = vmatpush1.bf16.msra.mxu0 0
  %1790 = vmatprep.subr.bf16.mxu0 0
  %1791 = vmatpush1.bf16.msra.mxu0 0
  %1792 = vmatprep.subr.bf16.mxu0 0
  %1793 = vmatpush1.bf16.msra.mxu0 0
  %1794 = vmatprep.subr.bf16.mxu0 0
  %1795 = vmatpush1.bf16.msra.mxu0 0
  %1796 = vmatprep.subr.bf16.mxu0 0
  %1797 = vmatpush1.bf16.msra.mxu0 0
  %1798 = vmatprep.subr.bf16.mxu0 0
  %1799 = vmatpush1.bf16.msra.mxu0 0
  %1800 = vmatprep.subr.bf16.mxu0 0
  %1801 = vmatpush1.bf16.msra.mxu0 0
  %1802 = vmatprep.subr.bf16.mxu0 0
  %1803 = vmatpush1.bf16.msra.mxu0 0
  %1804 = vmatprep.subr.bf16.mxu0 0
  %1805 = vmatpush1.bf16.msra.mxu0 0
  %1806 = vmatprep.subr.bf16.mxu0 0
  %1807 = vmatpush1.bf16.msra.mxu0 0
  %1808 = vmatprep.subr.bf16.mxu0 0
  %1809 = vmatpush1.bf16.msra.mxu0 0
  %1810 = vmatprep.subr.bf16.mxu0 0
  %1811 = vmatpush1.bf16.msra.mxu0 0
  %1812 = vmatprep.mubr.bf16.mxu0 0
  %1813 = vmatmul.mubr.bf16.gmra.mrb[0].mxu0 %v1683
  %v1814 = vpop.f32.mrb[0].mxu0
  %v1815 = vadd.f32 %v1778, %v1814
  %v1816 = vpop.f32.mrb[0].mxu0
  %v1817 = vpop.f32.mrb[0].mxu0
  %v1818 = vadd.f32 %v1778, %v1817
  %v1819 = vpop.f32.mrb[0].mxu0
  %1820 = vmatprep.mubr.bf16.mxu0 0
  %1821 = vmatmul.mubr.bf16.gmra.mrb[0].mxu0 %v1686
  %v1822 = vpop.f32.mrb[0].mxu0
  %v1823 = vadd.f32 %v1778, %v1822
  %v1824 = vpop.f32.mrb[0].mxu0
  %v1825 = vpop.f32.mrb[0].mxu0
  %v1826 = vadd.f32 %v1778, %v1825
  %v1827 = vpop.f32.mrb[0].mxu0
  %1828 = vmatprep.mubr.bf16.mxu0 0
  %1829 = vmatmul.mubr.bf16.gmra.mrb[0].mxu0 %v1689
  %v1830 = vpop.f32.mrb[0].mxu0
  %v1831 = vadd.f32 %v1778, %v1830
  %v1832 = vpop.f32.mrb[0].mxu0
  %v1833 = vpop.f32.mrb[0].mxu0
  %v1834 = vadd.f32 %v1778, %v1833
  %v1835 = vpop.f32.mrb[0].mxu0
  %1836 = vmatprep.mubr.bf16.mxu0 0
  %1837 = vmatmul.mubr.bf16.gmra.mrb[0].mxu0 %v1692
  %v1838 = vpop.f32.mrb[0].mxu0
  %v1839 = vadd.f32 %v1778, %v1838
  %v1840 = vpop.f32.mrb[0].mxu0
  %v1841 = vpop.f32.mrb[0].mxu0
  %v1842 = vadd.f32 %v1778, %v1841
  %v1843 = vpop.f32.mrb[0].mxu0
  %1844 = vdwg.mxu0
  %1845 = vst [vmem:[%s393] sm:$0xff] %v1815
  %1846 = vst [vmem:[%s393 + $0x8] sm:$0xff] %v1818
  %1847 = vst [vmem:[%s393 + $0x10] sm:$0xff] %v1823
  %1848 = vst [vmem:[%s393 + $0x18] sm:$0xff] %v1826
  %1849 = vst [vmem:[%s393 + $0x20] sm:$0xff] %v1831
  %1850 = vst [vmem:[%s393 + $0x28] sm:$0xff] %v1834
  %1851 = vst [vmem:[%s393 + $0x30] sm:$0xff] %v1839
  %1852 = vst [vmem:[%s393 + $0x38] sm:$0xff] %v1842
  %v1853 = vld [vmem:[#allocation8] sm:$0xff]
  %s1854 = scalar_lea.vmem [#allocation5], 32
  %v1855 = vld [vmem:[%s1854] sm:$0xff]
  %v1856 = vld [vmem:[%s1854 + $0x8] sm:$0xff]
  %1857 = vmatprep.subr.bf16.mxu0 0
  %1858 = vmatpush1.bf16.msra.mxu0 %v1855
  %1859 = vmatprep.subr.bf16.mxu0 0
  %1860 = vmatpush1.bf16.msra.mxu0 %v1856
  %1861 = vmatprep.subr.bf16.mxu0 0
  %1862 = vmatpush1.bf16.msra.mxu0 0
  %1863 = vmatprep.subr.bf16.mxu0 0
  %1864 = vmatpush1.bf16.msra.mxu0 0
  %1865 = vmatprep.subr.bf16.mxu0 0
  %1866 = vmatpush1.bf16.msra.mxu0 0
  %1867 = vmatprep.subr.bf16.mxu0 0
  %1868 = vmatpush1.bf16.msra.mxu0 0
  %1869 = vmatprep.subr.bf16.mxu0 0
  %1870 = vmatpush1.bf16.msra.mxu0 0
  %1871 = vmatprep.subr.bf16.mxu0 0
  %1872 = vmatpush1.bf16.msra.mxu0 0
  %1873 = vmatprep.subr.bf16.mxu0 0
  %1874 = vmatpush1.bf16.msra.mxu0 0
  %1875 = vmatprep.subr.bf16.mxu0 0
  %1876 = vmatpush1.bf16.msra.mxu0 0
  %1877 = vmatprep.subr.bf16.mxu0 0
  %1878 = vmatpush1.bf16.msra.mxu0 0
  %1879 = vmatprep.subr.bf16.mxu0 0
  %1880 = vmatpush1.bf16.msra.mxu0 0
  %1881 = vmatprep.subr.bf16.mxu0 0
  %1882 = vmatpush1.bf16.msra.mxu0 0
  %1883 = vmatprep.subr.bf16.mxu0 0
  %1884 = vmatpush1.bf16.msra.mxu0 0
  %1885 = vmatprep.subr.bf16.mxu0 0
  %1886 = vmatpush1.bf16.msra.mxu0 0
  %1887 = vmatprep.subr.bf16.mxu0 0
  %1888 = vmatpush1.bf16.msra.mxu0 0
  %1889 = vmatprep.mubr.bf16.mxu0 0
  %1890 = vmatmul.mubr.bf16.gmra.mrb[0].mxu0 %v407
  %v1891 = vpop.f32.mrb[0].mxu0
  %v1892 = vadd.f32 0.0, %v1891
  %v1893 = vpop.f32.mrb[0].mxu0
  %v1894 = vpop.f32.mrb[0].mxu0
  %v1895 = vpop.f32.mrb[0].mxu0
  %1896 = vdwg.mxu0
  %v1897 = vadd.f32 %v1853, %v1892
  %v1898 = vxor.u32 %v1897, 2147483648
  %v1899 = vmul.f32 %v1898, 1.442695
  %v1900 = vpow.pop %v1899
  %v1901 = vadd.f32 %v1900, 1.0
  %v1902 = vrcp.pop %v1901
  %v1903 = vmul.f32 1.0, %v1902
  %v1904 = vtanh.pop %v1897
  %v1905 = vmul.f32 %v1903, 0.0
  %1907 = vrot.lane.b32.xlu0 %v1904, 64
  %v1908 = vpop.permute.xlu0 %1907
  %v1910 = vmul.f32 %v1903, %v1908
  %1912 = vrot.lane.b32.xlu0 %v1910, 32
  %v1913 = vpop.permute.xlu0 %1912
  %v1915 = vadd.f32 %v1905, %v1913
  %v1916 = vtanh.pop %v1915
  %1918 = vrot.lane.b32.xlu0 %v1916, 64
  %v1919 = vpop.permute.xlu0 %1918
  %v1921 = vmul.f32 %v1903, %v1919
  %v1922 = vld [vmem:[%s393 + $0x38] sm:$0xff]
  %s1923 = scalar_lea.vmem [#allocation5], 48
  %v1924 = vld [vmem:[%s1923] sm:$0xff]
  %v1925 = vld [vmem:[%s1923 + $0x8] sm:$0xff]
  %1926 = vmatprep.subr.bf16.mxu0 0
  %1927 = vmatpush1.bf16.msra.mxu0 %v1924
  %1928 = vmatprep.subr.bf16.mxu0 0
  %1929 = vmatpush1.bf16.msra.mxu0 %v1925
  %1930 = vmatprep.subr.bf16.mxu0 0
  %1931 = vmatpush1.bf16.msra.mxu0 0
  %1932 = vmatprep.subr.bf16.mxu0 0
  %1933 = vmatpush1.bf16.msra.mxu0 0
  %1934 = vmatprep.subr.bf16.mxu0 0
  %1935 = vmatpush1.bf16.msra.mxu0 0
  %1936 = vmatprep.subr.bf16.mxu0 0
  %1937 = vmatpush1.bf16.msra.mxu0 0
  %1938 = vmatprep.subr.bf16.mxu0 0
  %1939 = vmatpush1.bf16.msra.mxu0 0
  %1940 = vmatprep.subr.bf16.mxu0 0
  %1941 = vmatpush1.bf16.msra.mxu0 0
  %1942 = vmatprep.subr.bf16.mxu0 0
  %1943 = vmatpush1.bf16.msra.mxu0 0
  %1944 = vmatprep.subr.bf16.mxu0 0
  %1945 = vmatpush1.bf16.msra.mxu0 0
  %1946 = vmatprep.subr.bf16.mxu0 0
  %1947 = vmatpush1.bf16.msra.mxu0 0
  %1948 = vmatprep.subr.bf16.mxu0 0
  %1949 = vmatpush1.bf16.msra.mxu0 0
  %1950 = vmatprep.subr.bf16.mxu0 0
  %1951 = vmatpush1.bf16.msra.mxu0 0
  %1952 = vmatprep.subr.bf16.mxu0 0
  %1953 = vmatpush1.bf16.msra.mxu0 0
  %1954 = vmatprep.subr.bf16.mxu0 0
  %1955 = vmatpush1.bf16.msra.mxu0 0
  %1956 = vmatprep.subr.bf16.mxu0 0
  %1957 = vmatpush1.bf16.msra.mxu0 0
  %1958 = vmatprep.mubr.bf16.mxu0 0
  %1959 = vmatmul.mubr.bf16.gmra.mrb[0].mxu0 %v407
  %v1960 = vpop.f32.mrb[0].mxu0
  %v1961 = vadd.f32 0.0, %v1960
  %v1962 = vpop.f32.mrb[0].mxu0
  %v1963 = vpop.f32.mrb[0].mxu0
  %v1964 = vpop.f32.mrb[0].mxu0
  %1965 = vdwg.mxu0
  %v1966 = vadd.f32 %v1922, %v1961
  %v1967 = vxor.u32 %v1966, 2147483648
  %v1968 = vmul.f32 %v1967, 1.442695
  %v1969 = vpow.pop %v1968
  %v1970 = vadd.f32 %v1969, 1.0
  %v1971 = vrcp.pop %v1970
  %v1972 = vmul.f32 1.0, %v1971
  %v1973 = vtanh.pop %v1966
  %v1974 = vmul.f32 %v1972, 0.0
  %1976 = vrot.lane.b32.xlu0 %v1973, 64
  %v1977 = vpop.permute.xlu0 %1976
  %v1979 = vmul.f32 %v1972, %v1977
  %1981 = vrot.lane.b32.xlu0 %v1979, 32
  %v1982 = vpop.permute.xlu0 %1981
  %v1984 = vadd.f32 %v1974, %v1982
  %v1985 = vtanh.pop %v1984
  %1987 = vrot.lane.b32.xlu0 %v1985, 64
  %v1988 = vpop.permute.xlu0 %1987
  %v1990 = vmul.f32 %v1972, %v1988
  %v1991 = vld [vmem:[#allocation8 + $0x8] sm:$0xff]
  %v1992 = vpack.c.bf16 %v1921, %v1921
  %1994 = vrot.lane.b32.xlu0 %v1992, 32
  %v1995 = vpop.permute.xlu0 %1994
  %v1997 = vsel %vm405, %v1995, 0
  %1999 = vmatprep.subr.bf16.mxu0 0
  %2000 = vmatpush1.bf16.msra.mxu0 %v1855
  %2001 = vmatprep.subr.bf16.mxu0 0
  %2002 = vmatpush1.bf16.msra.mxu0 %v1856
  %2003 = vmatprep.subr.bf16.mxu0 0
  %2004 = vmatpush1.bf16.msra.mxu0 0
  %2005 = vmatprep.subr.bf16.mxu0 0
  %2006 = vmatpush1.bf16.msra.mxu0 0
  %2007 = vmatprep.subr.bf16.mxu0 0
  %2008 = vmatpush1.bf16.msra.mxu0 0
  %2009 = vmatprep.subr.bf16.mxu0 0
  %2010 = vmatpush1.bf16.msra.mxu0 0
  %2011 = vmatprep.subr.bf16.mxu0 0
  %2012 = vmatpush1.bf16.msra.mxu0 0
  %2013 = vmatprep.subr.bf16.mxu0 0
  %2014 = vmatpush1.bf16.msra.mxu0 0
  %2015 = vmatprep.subr.bf16.mxu0 0
  %2016 = vmatpush1.bf16.msra.mxu0 0
  %2017 = vmatprep.subr.bf16.mxu0 0
  %2018 = vmatpush1.bf16.msra.mxu0 0
  %2019 = vmatprep.subr.bf16.mxu0 0
  %2020 = vmatpush1.bf16.msra.mxu0 0
  %2021 = vmatprep.subr.bf16.mxu0 0
  %2022 = vmatpush1.bf16.msra.mxu0 0
  %2023 = vmatprep.subr.bf16.mxu0 0
  %2024 = vmatpush1.bf16.msra.mxu0 0
  %2025 = vmatprep.subr.bf16.mxu0 0
  %2026 = vmatpush1.bf16.msra.mxu0 0
  %2027 = vmatprep.subr.bf16.mxu0 0
  %2028 = vmatpush1.bf16.msra.mxu0 0
  %2029 = vmatprep.subr.bf16.mxu0 0
  %2030 = vmatpush1.bf16.msra.mxu0 0
  %2031 = vmatprep.mubr.bf16.mxu0 0
  %2032 = vmatmul.mubr.bf16.gmra.mrb[0].mxu0 %v1997
  %v2033 = vpop.f32.mrb[0].mxu0
  %v2034 = vadd.f32 0.0, %v2033
  %v2035 = vpop.f32.mrb[0].mxu0
  %v2036 = vpop.f32.mrb[0].mxu0
  %v2037 = vpop.f32.mrb[0].mxu0
  %2038 = vdwg.mxu0
  %v2039 = vadd.f32 %v1991, %v2034
  %v2040 = vxor.u32 %v2039, 2147483648
  %v2041 = vmul.f32 %v2040, 1.442695
  %v2042 = vpow.pop %v2041
  %v2043 = vadd.f32 %v2042, 1.0
  %v2044 = vrcp.pop %v2043
  %v2045 = vmul.f32 1.0, %v2044
  %v2046 = vtanh.pop %v2039
  %v2047 = vmul.f32 %v2045, %v1915
  %2049 = vrot.lane.b32.xlu0 %v2046, 64
  %v2050 = vpop.permute.xlu0 %2049
  %v2052 = vmul.f32 %v2045, %v2050
  %2054 = vrot.lane.b32.xlu0 %v2052, 32
  %v2055 = vpop.permute.xlu0 %2054
  %v2057 = vadd.f32 %v2047, %v2055
  %v2058 = vtanh.pop %v2057
  %2060 = vrot.lane.b32.xlu0 %v2058, 64
  %v2061 = vpop.permute.xlu0 %2060
  %v2063 = vmul.f32 %v2045, %v2061
  %v2064 = vld [vmem:[%s393 + $0x30] sm:$0xff]
  %v2065 = vpack.c.bf16 %v1990, %v1990
  %2067 = vrot.lane.b32.xlu0 %v2065, 32
  %v2068 = vpop.permute.xlu0 %2067
  %v2070 = vsel %vm405, %v2068, 0
  %2072 = vmatprep.subr.bf16.mxu0 0
  %2073 = vmatpush1.bf16.msra.mxu0 %v1924
  %2074 = vmatprep.subr.bf16.mxu0 0
  %2075 = vmatpush1.bf16.msra.mxu0 %v1925
  %2076 = vmatprep.subr.bf16.mxu0 0
  %2077 = vmatpush1.bf16.msra.mxu0 0
  %2078 = vmatprep.subr.bf16.mxu0 0
  %2079 = vmatpush1.bf16.msra.mxu0 0
  %2080 = vmatprep.subr.bf16.mxu0 0
  %2081 = vmatpush1.bf16.msra.mxu0 0
  %2082 = vmatprep.subr.bf16.mxu0 0
  %2083 = vmatpush1.bf16.msra.mxu0 0
  %2084 = vmatprep.subr.bf16.mxu0 0
  %2085 = vmatpush1.bf16.msra.mxu0 0
  %2086 = vmatprep.subr.bf16.mxu0 0
  %2087 = vmatpush1.bf16.msra.mxu0 0
  %2088 = vmatprep.subr.bf16.mxu0 0
  %2089 = vmatpush1.bf16.msra.mxu0 0
  %2090 = vmatprep.subr.bf16.mxu0 0
  %2091 = vmatpush1.bf16.msra.mxu0 0
  %2092 = vmatprep.subr.bf16.mxu0 0
  %2093 = vmatpush1.bf16.msra.mxu0 0
  %2094 = vmatprep.subr.bf16.mxu0 0
  %2095 = vmatpush1.bf16.msra.mxu0 0
  %2096 = vmatprep.subr.bf16.mxu0 0
  %2097 = vmatpush1.bf16.msra.mxu0 0
  %2098 = vmatprep.subr.bf16.mxu0 0
  %2099 = vmatpush1.bf16.msra.mxu0 0
  %2100 = vmatprep.subr.bf16.mxu0 0
  %2101 = vmatpush1.bf16.msra.mxu0 0
  %2102 = vmatprep.subr.bf16.mxu0 0
  %2103 = vmatpush1.bf16.msra.mxu0 0
  %2104 = vmatprep.mubr.bf16.mxu0 0
  %2105 = vmatmul.mubr.bf16.gmra.mrb[0].mxu0 %v2070
  %v2106 = vpop.f32.mrb[0].mxu0
  %v2107 = vadd.f32 0.0, %v2106
  %v2108 = vpop.f32.mrb[0].mxu0
  %v2109 = vpop.f32.mrb[0].mxu0
  %v2110 = vpop.f32.mrb[0].mxu0
  %2111 = vdwg.mxu0
  %v2112 = vadd.f32 %v2064, %v2107
  %v2113 = vxor.u32 %v2112, 2147483648
  %v2114 = vmul.f32 %v2113, 1.442695
  %v2115 = vpow.pop %v2114
  %v2116 = vadd.f32 %v2115, 1.0
  %v2117 = vrcp.pop %v2116
  %v2118 = vmul.f32 1.0, %v2117
  %v2119 = vtanh.pop %v2112
  %v2120 = vmul.f32 %v2118, %v1984
  %2122 = vrot.lane.b32.xlu0 %v2119, 64
  %v2123 = vpop.permute.xlu0 %2122
  %v2125 = vmul.f32 %v2118, %v2123
  %2127 = vrot.lane.b32.xlu0 %v2125, 32
  %v2128 = vpop.permute.xlu0 %2127
  %v2130 = vadd.f32 %v2120, %v2128
  %v2131 = vtanh.pop %v2130
  %2133 = vrot.lane.b32.xlu0 %v2131, 64
  %v2134 = vpop.permute.xlu0 %2133
  %v2136 = vmul.f32 %v2118, %v2134
  %v2137 = vld [vmem:[#allocation8 + $0x10] sm:$0xff]
  %v2138 = vpack.c.bf16 %v2063, %v2063
  %2140 = vrot.lane.b32.xlu0 %v2138, 32
  %v2141 = vpop.permute.xlu0 %2140
  %v2143 = vsel %vm405, %v2141, 0
  %2145 = vmatprep.subr.bf16.mxu0 0
  %2146 = vmatpush1.bf16.msra.mxu0 %v1855
  %2147 = vmatprep.subr.bf16.mxu0 0
  %2148 = vmatpush1.bf16.msra.mxu0 %v1856
  %2149 = vmatprep.subr.bf16.mxu0 0
  %2150 = vmatpush1.bf16.msra.mxu0 0
  %2151 = vmatprep.subr.bf16.mxu0 0
  %2152 = vmatpush1.bf16.msra.mxu0 0
  %2153 = vmatprep.subr.bf16.mxu0 0
  %2154 = vmatpush1.bf16.msra.mxu0 0
  %2155 = vmatprep.subr.bf16.mxu0 0
  %2156 = vmatpush1.bf16.msra.mxu0 0
  %2157 = vmatprep.subr.bf16.mxu0 0
  %2158 = vmatpush1.bf16.msra.mxu0 0
  %2159 = vmatprep.subr.bf16.mxu0 0
  %2160 = vmatpush1.bf16.msra.mxu0 0
  %2161 = vmatprep.subr.bf16.mxu0 0
  %2162 = vmatpush1.bf16.msra.mxu0 0
  %2163 = vmatprep.subr.bf16.mxu0 0
  %2164 = vmatpush1.bf16.msra.mxu0 0
  %2165 = vmatprep.subr.bf16.mxu0 0
  %2166 = vmatpush1.bf16.msra.mxu0 0
  %2167 = vmatprep.subr.bf16.mxu0 0
  %2168 = vmatpush1.bf16.msra.mxu0 0
  %2169 = vmatprep.subr.bf16.mxu0 0
  %2170 = vmatpush1.bf16.msra.mxu0 0
  %2171 = vmatprep.subr.bf16.mxu0 0
  %2172 = vmatpush1.bf16.msra.mxu0 0
  %2173 = vmatprep.subr.bf16.mxu0 0
  %2174 = vmatpush1.bf16.msra.mxu0 0
  %2175 = vmatprep.subr.bf16.mxu0 0
  %2176 = vmatpush1.bf16.msra.mxu0 0
  %2177 = vmatprep.mubr.bf16.mxu0 0
  %2178 = vmatmul.mubr.bf16.gmra.mrb[0].mxu0 %v2143
  %v2179 = vpop.f32.mrb[0].mxu0
  %v2180 = vadd.f32 0.0, %v2179
  %v2181 = vpop.f32.mrb[0].mxu0
  %v2182 = vpop.f32.mrb[0].mxu0
  %v2183 = vpop.f32.mrb[0].mxu0
  %2184 = vdwg.mxu0
  %v2185 = vadd.f32 %v2137, %v2180
  %v2186 = vxor.u32 %v2185, 2147483648
  %v2187 = vmul.f32 %v2186, 1.442695
  %v2188 = vpow.pop %v2187
  %v2189 = vadd.f32 %v2188, 1.0
  %v2190 = vrcp.pop %v2189
  %v2191 = vmul.f32 1.0, %v2190
  %v2192 = vtanh.pop %v2185
  %v2193 = vmul.f32 %v2191, %v2057
  %2195 = vrot.lane.b32.xlu0 %v2192, 64
  %v2196 = vpop.permute.xlu0 %2195
  %v2198 = vmul.f32 %v2191, %v2196
  %2200 = vrot.lane.b32.xlu0 %v2198, 32
  %v2201 = vpop.permute.xlu0 %2200
  %v2203 = vadd.f32 %v2193, %v2201
  %v2204 = vtanh.pop %v2203
  %2206 = vrot.lane.b32.xlu0 %v2204, 64
  %v2207 = vpop.permute.xlu0 %2206
  %v2209 = vmul.f32 %v2191, %v2207
  %v2210 = vld [vmem:[%s393 + $0x28] sm:$0xff]
  %v2211 = vpack.c.bf16 %v2136, %v2136
  %2213 = vrot.lane.b32.xlu0 %v2211, 32
  %v2214 = vpop.permute.xlu0 %2213
  %v2216 = vsel %vm405, %v2214, 0
  %2218 = vmatprep.subr.bf16.mxu0 0
  %2219 = vmatpush1.bf16.msra.mxu0 %v1924
  %2220 = vmatprep.subr.bf16.mxu0 0
  %2221 = vmatpush1.bf16.msra.mxu0 %v1925
  %2222 = vmatprep.subr.bf16.mxu0 0
  %2223 = vmatpush1.bf16.msra.mxu0 0
  %2224 = vmatprep.subr.bf16.mxu0 0
  %2225 = vmatpush1.bf16.msra.mxu0 0
  %2226 = vmatprep.subr.bf16.mxu0 0
  %2227 = vmatpush1.bf16.msra.mxu0 0
  %2228 = vmatprep.subr.bf16.mxu0 0
  %2229 = vmatpush1.bf16.msra.mxu0 0
  %2230 = vmatprep.subr.bf16.mxu0 0
  %2231 = vmatpush1.bf16.msra.mxu0 0
  %2232 = vmatprep.subr.bf16.mxu0 0
  %2233 = vmatpush1.bf16.msra.mxu0 0
  %2234 = vmatprep.subr.bf16.mxu0 0
  %2235 = vmatpush1.bf16.msra.mxu0 0
  %2236 = vmatprep.subr.bf16.mxu0 0
  %2237 = vmatpush1.bf16.msra.mxu0 0
  %2238 = vmatprep.subr.bf16.mxu0 0
  %2239 = vmatpush1.bf16.msra.mxu0 0
  %2240 = vmatprep.subr.bf16.mxu0 0
  %2241 = vmatpush1.bf16.msra.mxu0 0
  %2242 = vmatprep.subr.bf16.mxu0 0
  %2243 = vmatpush1.bf16.msra.mxu0 0
  %2244 = vmatprep.subr.bf16.mxu0 0
  %2245 = vmatpush1.bf16.msra.mxu0 0
  %2246 = vmatprep.subr.bf16.mxu0 0
  %2247 = vmatpush1.bf16.msra.mxu0 0
  %2248 = vmatprep.subr.bf16.mxu0 0
  %2249 = vmatpush1.bf16.msra.mxu0 0
  %2250 = vmatprep.mubr.bf16.mxu0 0
  %2251 = vmatmul.mubr.bf16.gmra.mrb[0].mxu0 %v2216
  %v2252 = vpop.f32.mrb[0].mxu0
  %v2253 = vadd.f32 0.0, %v2252
  %v2254 = vpop.f32.mrb[0].mxu0
  %v2255 = vpop.f32.mrb[0].mxu0
  %v2256 = vpop.f32.mrb[0].mxu0
  %2257 = vdwg.mxu0
  %v2258 = vadd.f32 %v2210, %v2253
  %v2259 = vxor.u32 %v2258, 2147483648
  %v2260 = vmul.f32 %v2259, 1.442695
  %v2261 = vpow.pop %v2260
  %v2262 = vadd.f32 %v2261, 1.0
  %v2263 = vrcp.pop %v2262
  %v2264 = vmul.f32 1.0, %v2263
  %v2265 = vtanh.pop %v2258
  %v2266 = vmul.f32 %v2264, %v2130
  %2268 = vrot.lane.b32.xlu0 %v2265, 64
  %v2269 = vpop.permute.xlu0 %2268
  %v2271 = vmul.f32 %v2264, %v2269
  %2273 = vrot.lane.b32.xlu0 %v2271, 32
  %v2274 = vpop.permute.xlu0 %2273
  %v2276 = vadd.f32 %v2266, %v2274
  %v2277 = vtanh.pop %v2276
  %2279 = vrot.lane.b32.xlu0 %v2277, 64
  %v2280 = vpop.permute.xlu0 %2279
  %v2282 = vmul.f32 %v2264, %v2280
  %v2283 = vld [vmem:[#allocation8 + $0x18] sm:$0xff]
  %v2284 = vpack.c.bf16 %v2209, %v2209
  %2286 = vrot.lane.b32.xlu0 %v2284, 32
  %v2287 = vpop.permute.xlu0 %2286
  %v2289 = vsel %vm405, %v2287, 0
  %2291 = vmatprep.subr.bf16.mxu0 0
  %2292 = vmatpush1.bf16.msra.mxu0 %v1855
  %2293 = vmatprep.subr.bf16.mxu0 0
  %2294 = vmatpush1.bf16.msra.mxu0 %v1856
  %2295 = vmatprep.subr.bf16.mxu0 0
  %2296 = vmatpush1.bf16.msra.mxu0 0
  %2297 = vmatprep.subr.bf16.mxu0 0
  %2298 = vmatpush1.bf16.msra.mxu0 0
  %2299 = vmatprep.subr.bf16.mxu0 0
  %2300 = vmatpush1.bf16.msra.mxu0 0
  %2301 = vmatprep.subr.bf16.mxu0 0
  %2302 = vmatpush1.bf16.msra.mxu0 0
  %2303 = vmatprep.subr.bf16.mxu0 0
  %2304 = vmatpush1.bf16.msra.mxu0 0
  %2305 = vmatprep.subr.bf16.mxu0 0
  %2306 = vmatpush1.bf16.msra.mxu0 0
  %2307 = vmatprep.subr.bf16.mxu0 0
  %2308 = vmatpush1.bf16.msra.mxu0 0
  %2309 = vmatprep.subr.bf16.mxu0 0
  %2310 = vmatpush1.bf16.msra.mxu0 0
  %2311 = vmatprep.subr.bf16.mxu0 0
  %2312 = vmatpush1.bf16.msra.mxu0 0
  %2313 = vmatprep.subr.bf16.mxu0 0
  %2314 = vmatpush1.bf16.msra.mxu0 0
  %2315 = vmatprep.subr.bf16.mxu0 0
  %2316 = vmatpush1.bf16.msra.mxu0 0
  %2317 = vmatprep.subr.bf16.mxu0 0
  %2318 = vmatpush1.bf16.msra.mxu0 0
  %2319 = vmatprep.subr.bf16.mxu0 0
  %2320 = vmatpush1.bf16.msra.mxu0 0
  %2321 = vmatprep.subr.bf16.mxu0 0
  %2322 = vmatpush1.bf16.msra.mxu0 0
  %2323 = vmatprep.mubr.bf16.mxu0 0
  %2324 = vmatmul.mubr.bf16.gmra.mrb[0].mxu0 %v2289
  %v2325 = vpop.f32.mrb[0].mxu0
  %v2326 = vadd.f32 0.0, %v2325
  %v2327 = vpop.f32.mrb[0].mxu0
  %v2328 = vpop.f32.mrb[0].mxu0
  %v2329 = vpop.f32.mrb[0].mxu0
  %2330 = vdwg.mxu0
  %v2331 = vadd.f32 %v2283, %v2326
  %v2332 = vxor.u32 %v2331, 2147483648
  %v2333 = vmul.f32 %v2332, 1.442695
  %v2334 = vpow.pop %v2333
  %v2335 = vadd.f32 %v2334, 1.0
  %v2336 = vrcp.pop %v2335
  %v2337 = vmul.f32 1.0, %v2336
  %v2338 = vtanh.pop %v2331
  %v2339 = vmul.f32 %v2337, %v2203
  %2341 = vrot.lane.b32.xlu0 %v2338, 64
  %v2342 = vpop.permute.xlu0 %2341
  %v2344 = vmul.f32 %v2337, %v2342
  %2346 = vrot.lane.b32.xlu0 %v2344, 32
  %v2347 = vpop.permute.xlu0 %2346
  %v2349 = vadd.f32 %v2339, %v2347
  %v2350 = vtanh.pop %v2349
  %2352 = vrot.lane.b32.xlu0 %v2350, 64
  %v2353 = vpop.permute.xlu0 %2352
  %v2355 = vmul.f32 %v2337, %v2353
  %v2356 = vld [vmem:[%s393 + $0x20] sm:$0xff]
  %v2357 = vpack.c.bf16 %v2282, %v2282
  %2359 = vrot.lane.b32.xlu0 %v2357, 32
  %v2360 = vpop.permute.xlu0 %2359
  %v2362 = vsel %vm405, %v2360, 0
  %2364 = vmatprep.subr.bf16.mxu0 0
  %2365 = vmatpush1.bf16.msra.mxu0 %v1924
  %2366 = vmatprep.subr.bf16.mxu0 0
  %2367 = vmatpush1.bf16.msra.mxu0 %v1925
  %2368 = vmatprep.subr.bf16.mxu0 0
  %2369 = vmatpush1.bf16.msra.mxu0 0
  %2370 = vmatprep.subr.bf16.mxu0 0
  %2371 = vmatpush1.bf16.msra.mxu0 0
  %2372 = vmatprep.subr.bf16.mxu0 0
  %2373 = vmatpush1.bf16.msra.mxu0 0
  %2374 = vmatprep.subr.bf16.mxu0 0
  %2375 = vmatpush1.bf16.msra.mxu0 0
  %2376 = vmatprep.subr.bf16.mxu0 0
  %2377 = vmatpush1.bf16.msra.mxu0 0
  %2378 = vmatprep.subr.bf16.mxu0 0
  %2379 = vmatpush1.bf16.msra.mxu0 0
  %2380 = vmatprep.subr.bf16.mxu0 0
  %2381 = vmatpush1.bf16.msra.mxu0 0
  %2382 = vmatprep.subr.bf16.mxu0 0
  %2383 = vmatpush1.bf16.msra.mxu0 0
  %2384 = vmatprep.subr.bf16.mxu0 0
  %2385 = vmatpush1.bf16.msra.mxu0 0
  %2386 = vmatprep.subr.bf16.mxu0 0
  %2387 = vmatpush1.bf16.msra.mxu0 0
  %2388 = vmatprep.subr.bf16.mxu0 0
  %2389 = vmatpush1.bf16.msra.mxu0 0
  %2390 = vmatprep.subr.bf16.mxu0 0
  %2391 = vmatpush1.bf16.msra.mxu0 0
  %2392 = vmatprep.subr.bf16.mxu0 0
  %2393 = vmatpush1.bf16.msra.mxu0 0
  %2394 = vmatprep.subr.bf16.mxu0 0
  %2395 = vmatpush1.bf16.msra.mxu0 0
  %2396 = vmatprep.mubr.bf16.mxu0 0
  %2397 = vmatmul.mubr.bf16.gmra.mrb[0].mxu0 %v2362
  %v2398 = vpop.f32.mrb[0].mxu0
  %v2399 = vadd.f32 0.0, %v2398
  %v2400 = vpop.f32.mrb[0].mxu0
  %v2401 = vpop.f32.mrb[0].mxu0
  %v2402 = vpop.f32.mrb[0].mxu0
  %2403 = vdwg.mxu0
  %v2404 = vadd.f32 %v2356, %v2399
  %v2405 = vxor.u32 %v2404, 2147483648
  %v2406 = vmul.f32 %v2405, 1.442695
  %v2407 = vpow.pop %v2406
  %v2408 = vadd.f32 %v2407, 1.0
  %v2409 = vrcp.pop %v2408
  %v2410 = vmul.f32 1.0, %v2409
  %v2411 = vtanh.pop %v2404
  %v2412 = vmul.f32 %v2410, %v2276
  %2414 = vrot.lane.b32.xlu0 %v2411, 64
  %v2415 = vpop.permute.xlu0 %2414
  %v2417 = vmul.f32 %v2410, %v2415
  %2419 = vrot.lane.b32.xlu0 %v2417, 32
  %v2420 = vpop.permute.xlu0 %2419
  %v2422 = vadd.f32 %v2412, %v2420
  %v2423 = vtanh.pop %v2422
  %2425 = vrot.lane.b32.xlu0 %v2423, 64
  %v2426 = vpop.permute.xlu0 %2425
  %v2428 = vmul.f32 %v2410, %v2426
  %v2429 = vld [vmem:[#allocation8 + $0x20] sm:$0xff]
  %v2430 = vpack.c.bf16 %v2355, %v2355
  %2432 = vrot.lane.b32.xlu0 %v2430, 32
  %v2433 = vpop.permute.xlu0 %2432
  %v2435 = vsel %vm405, %v2433, 0
  %2437 = vmatprep.subr.bf16.mxu0 0
  %2438 = vmatpush1.bf16.msra.mxu0 %v1855
  %2439 = vmatprep.subr.bf16.mxu0 0
  %2440 = vmatpush1.bf16.msra.mxu0 %v1856
  %2441 = vmatprep.subr.bf16.mxu0 0
  %2442 = vmatpush1.bf16.msra.mxu0 0
  %2443 = vmatprep.subr.bf16.mxu0 0
  %2444 = vmatpush1.bf16.msra.mxu0 0
  %2445 = vmatprep.subr.bf16.mxu0 0
  %2446 = vmatpush1.bf16.msra.mxu0 0
  %2447 = vmatprep.subr.bf16.mxu0 0
  %2448 = vmatpush1.bf16.msra.mxu0 0
  %2449 = vmatprep.subr.bf16.mxu0 0
  %2450 = vmatpush1.bf16.msra.mxu0 0
  %2451 = vmatprep.subr.bf16.mxu0 0
  %2452 = vmatpush1.bf16.msra.mxu0 0
  %2453 = vmatprep.subr.bf16.mxu0 0
  %2454 = vmatpush1.bf16.msra.mxu0 0
  %2455 = vmatprep.subr.bf16.mxu0 0
  %2456 = vmatpush1.bf16.msra.mxu0 0
  %2457 = vmatprep.subr.bf16.mxu0 0
  %2458 = vmatpush1.bf16.msra.mxu0 0
  %2459 = vmatprep.subr.bf16.mxu0 0
  %2460 = vmatpush1.bf16.msra.mxu0 0
  %2461 = vmatprep.subr.bf16.mxu0 0
  %2462 = vmatpush1.bf16.msra.mxu0 0
  %2463 = vmatprep.subr.bf16.mxu0 0
  %2464 = vmatpush1.bf16.msra.mxu0 0
  %2465 = vmatprep.subr.bf16.mxu0 0
  %2466 = vmatpush1.bf16.msra.mxu0 0
  %2467 = vmatprep.subr.bf16.mxu0 0
  %2468 = vmatpush1.bf16.msra.mxu0 0
  %2469 = vmatprep.mubr.bf16.mxu0 0
  %2470 = vmatmul.mubr.bf16.gmra.mrb[0].mxu0 %v2435
  %v2471 = vpop.f32.mrb[0].mxu0
  %v2472 = vadd.f32 0.0, %v2471
  %v2473 = vpop.f32.mrb[0].mxu0
  %v2474 = vpop.f32.mrb[0].mxu0
  %v2475 = vpop.f32.mrb[0].mxu0
  %2476 = vdwg.mxu0
  %v2477 = vadd.f32 %v2429, %v2472
  %v2478 = vxor.u32 %v2477, 2147483648
  %v2479 = vmul.f32 %v2478, 1.442695
  %v2480 = vpow.pop %v2479
  %v2481 = vadd.f32 %v2480, 1.0
  %v2482 = vrcp.pop %v2481
  %v2483 = vmul.f32 1.0, %v2482
  %v2484 = vtanh.pop %v2477
  %v2485 = vmul.f32 %v2483, %v2349
  %2487 = vrot.lane.b32.xlu0 %v2484, 64
  %v2488 = vpop.permute.xlu0 %2487
  %v2490 = vmul.f32 %v2483, %v2488
  %2492 = vrot.lane.b32.xlu0 %v2490, 32
  %v2493 = vpop.permute.xlu0 %2492
  %v2495 = vadd.f32 %v2485, %v2493
  %v2496 = vtanh.pop %v2495
  %2498 = vrot.lane.b32.xlu0 %v2496, 64
  %v2499 = vpop.permute.xlu0 %2498
  %v2501 = vmul.f32 %v2483, %v2499
  %v2502 = vld [vmem:[%s393 + $0x18] sm:$0xff]
  %v2503 = vpack.c.bf16 %v2428, %v2428
  %2505 = vrot.lane.b32.xlu0 %v2503, 32
  %v2506 = vpop.permute.xlu0 %2505
  %v2508 = vsel %vm405, %v2506, 0
  %2510 = vmatprep.subr.bf16.mxu0 0
  %2511 = vmatpush1.bf16.msra.mxu0 %v1924
  %2512 = vmatprep.subr.bf16.mxu0 0
  %2513 = vmatpush1.bf16.msra.mxu0 %v1925
  %2514 = vmatprep.subr.bf16.mxu0 0
  %2515 = vmatpush1.bf16.msra.mxu0 0
  %2516 = vmatprep.subr.bf16.mxu0 0
  %2517 = vmatpush1.bf16.msra.mxu0 0
  %2518 = vmatprep.subr.bf16.mxu0 0
  %2519 = vmatpush1.bf16.msra.mxu0 0
  %2520 = vmatprep.subr.bf16.mxu0 0
  %2521 = vmatpush1.bf16.msra.mxu0 0
  %2522 = vmatprep.subr.bf16.mxu0 0
  %2523 = vmatpush1.bf16.msra.mxu0 0
  %2524 = vmatprep.subr.bf16.mxu0 0
  %2525 = vmatpush1.bf16.msra.mxu0 0
  %2526 = vmatprep.subr.bf16.mxu0 0
  %2527 = vmatpush1.bf16.msra.mxu0 0
  %2528 = vmatprep.subr.bf16.mxu0 0
  %2529 = vmatpush1.bf16.msra.mxu0 0
  %2530 = vmatprep.subr.bf16.mxu0 0
  %2531 = vmatpush1.bf16.msra.mxu0 0
  %2532 = vmatprep.subr.bf16.mxu0 0
  %2533 = vmatpush1.bf16.msra.mxu0 0
  %2534 = vmatprep.subr.bf16.mxu0 0
  %2535 = vmatpush1.bf16.msra.mxu0 0
  %2536 = vmatprep.subr.bf16.mxu0 0
  %2537 = vmatpush1.bf16.msra.mxu0 0
  %2538 = vmatprep.subr.bf16.mxu0 0
  %2539 = vmatpush1.bf16.msra.mxu0 0
  %2540 = vmatprep.subr.bf16.mxu0 0
  %2541 = vmatpush1.bf16.msra.mxu0 0
  %2542 = vmatprep.mubr.bf16.mxu0 0
  %2543 = vmatmul.mubr.bf16.gmra.mrb[0].mxu0 %v2508
  %v2544 = vpop.f32.mrb[0].mxu0
  %v2545 = vadd.f32 0.0, %v2544
  %v2546 = vpop.f32.mrb[0].mxu0
  %v2547 = vpop.f32.mrb[0].mxu0
  %v2548 = vpop.f32.mrb[0].mxu0
  %2549 = vdwg.mxu0
  %v2550 = vadd.f32 %v2502, %v2545
  %v2551 = vxor.u32 %v2550, 2147483648
  %v2552 = vmul.f32 %v2551, 1.442695
  %v2553 = vpow.pop %v2552
  %v2554 = vadd.f32 %v2553, 1.0
  %v2555 = vrcp.pop %v2554
  %v2556 = vmul.f32 1.0, %v2555
  %v2557 = vtanh.pop %v2550
  %v2558 = vmul.f32 %v2556, %v2422
  %2560 = vrot.lane.b32.xlu0 %v2557, 64
  %v2561 = vpop.permute.xlu0 %2560
  %v2563 = vmul.f32 %v2556, %v2561
  %2565 = vrot.lane.b32.xlu0 %v2563, 32
  %v2566 = vpop.permute.xlu0 %2565
  %v2568 = vadd.f32 %v2558, %v2566
  %v2569 = vtanh.pop %v2568
  %2571 = vrot.lane.b32.xlu0 %v2569, 64
  %v2572 = vpop.permute.xlu0 %2571
  %v2574 = vmul.f32 %v2556, %v2572
  %v2575 = vld [vmem:[#allocation8 + $0x28] sm:$0xff]
  %v2576 = vpack.c.bf16 %v2501, %v2501
  %2578 = vrot.lane.b32.xlu0 %v2576, 32
  %v2579 = vpop.permute.xlu0 %2578
  %v2581 = vsel %vm405, %v2579, 0
  %2583 = vmatprep.subr.bf16.mxu0 0
  %2584 = vmatpush1.bf16.msra.mxu0 %v1855
  %2585 = vmatprep.subr.bf16.mxu0 0
  %2586 = vmatpush1.bf16.msra.mxu0 %v1856
  %2587 = vmatprep.subr.bf16.mxu0 0
  %2588 = vmatpush1.bf16.msra.mxu0 0
  %2589 = vmatprep.subr.bf16.mxu0 0
  %2590 = vmatpush1.bf16.msra.mxu0 0
  %2591 = vmatprep.subr.bf16.mxu0 0
  %2592 = vmatpush1.bf16.msra.mxu0 0
  %2593 = vmatprep.subr.bf16.mxu0 0
  %2594 = vmatpush1.bf16.msra.mxu0 0
  %2595 = vmatprep.subr.bf16.mxu0 0
  %2596 = vmatpush1.bf16.msra.mxu0 0
  %2597 = vmatprep.subr.bf16.mxu0 0
  %2598 = vmatpush1.bf16.msra.mxu0 0
  %2599 = vmatprep.subr.bf16.mxu0 0
  %2600 = vmatpush1.bf16.msra.mxu0 0
  %2601 = vmatprep.subr.bf16.mxu0 0
  %2602 = vmatpush1.bf16.msra.mxu0 0
  %2603 = vmatprep.subr.bf16.mxu0 0
  %2604 = vmatpush1.bf16.msra.mxu0 0
  %2605 = vmatprep.subr.bf16.mxu0 0
  %2606 = vmatpush1.bf16.msra.mxu0 0
  %2607 = vmatprep.subr.bf16.mxu0 0
  %2608 = vmatpush1.bf16.msra.mxu0 0
  %2609 = vmatprep.subr.bf16.mxu0 0
  %2610 = vmatpush1.bf16.msra.mxu0 0
  %2611 = vmatprep.subr.bf16.mxu0 0
  %2612 = vmatpush1.bf16.msra.mxu0 0
  %2613 = vmatprep.subr.bf16.mxu0 0
  %2614 = vmatpush1.bf16.msra.mxu0 0
  %2615 = vmatprep.mubr.bf16.mxu0 0
  %2616 = vmatmul.mubr.bf16.gmra.mrb[0].mxu0 %v2581
  %v2617 = vpop.f32.mrb[0].mxu0
  %v2618 = vadd.f32 0.0, %v2617
  %v2619 = vpop.f32.mrb[0].mxu0
  %v2620 = vpop.f32.mrb[0].mxu0
  %v2621 = vpop.f32.mrb[0].mxu0
  %2622 = vdwg.mxu0
  %v2623 = vadd.f32 %v2575, %v2618
  %v2624 = vxor.u32 %v2623, 2147483648
  %v2625 = vmul.f32 %v2624, 1.442695
  %v2626 = vpow.pop %v2625
  %v2627 = vadd.f32 %v2626, 1.0
  %v2628 = vrcp.pop %v2627
  %v2629 = vmul.f32 1.0, %v2628
  %v2630 = vtanh.pop %v2623
  %v2631 = vmul.f32 %v2629, %v2495
  %2633 = vrot.lane.b32.xlu0 %v2630, 64
  %v2634 = vpop.permute.xlu0 %2633
  %v2636 = vmul.f32 %v2629, %v2634
  %2638 = vrot.lane.b32.xlu0 %v2636, 32
  %v2639 = vpop.permute.xlu0 %2638
  %v2641 = vadd.f32 %v2631, %v2639
  %v2642 = vtanh.pop %v2641
  %2644 = vrot.lane.b32.xlu0 %v2642, 64
  %v2645 = vpop.permute.xlu0 %2644
  %v2647 = vmul.f32 %v2629, %v2645
  %v2648 = vld [vmem:[%s393 + $0x10] sm:$0xff]
  %v2649 = vpack.c.bf16 %v2574, %v2574
  %2651 = vrot.lane.b32.xlu0 %v2649, 32
  %v2652 = vpop.permute.xlu0 %2651
  %v2654 = vsel %vm405, %v2652, 0
  %2656 = vmatprep.subr.bf16.mxu0 0
  %2657 = vmatpush1.bf16.msra.mxu0 %v1924
  %2658 = vmatprep.subr.bf16.mxu0 0
  %2659 = vmatpush1.bf16.msra.mxu0 %v1925
  %2660 = vmatprep.subr.bf16.mxu0 0
  %2661 = vmatpush1.bf16.msra.mxu0 0
  %2662 = vmatprep.subr.bf16.mxu0 0
  %2663 = vmatpush1.bf16.msra.mxu0 0
  %2664 = vmatprep.subr.bf16.mxu0 0
  %2665 = vmatpush1.bf16.msra.mxu0 0
  %2666 = vmatprep.subr.bf16.mxu0 0
  %2667 = vmatpush1.bf16.msra.mxu0 0
  %2668 = vmatprep.subr.bf16.mxu0 0
  %2669 = vmatpush1.bf16.msra.mxu0 0
  %2670 = vmatprep.subr.bf16.mxu0 0
  %2671 = vmatpush1.bf16.msra.mxu0 0
  %2672 = vmatprep.subr.bf16.mxu0 0
  %2673 = vmatpush1.bf16.msra.mxu0 0
  %2674 = vmatprep.subr.bf16.mxu0 0
  %2675 = vmatpush1.bf16.msra.mxu0 0
  %2676 = vmatprep.subr.bf16.mxu0 0
  %2677 = vmatpush1.bf16.msra.mxu0 0
  %2678 = vmatprep.subr.bf16.mxu0 0
  %2679 = vmatpush1.bf16.msra.mxu0 0
  %2680 = vmatprep.subr.bf16.mxu0 0
  %2681 = vmatpush1.bf16.msra.mxu0 0
  %2682 = vmatprep.subr.bf16.mxu0 0
  %2683 = vmatpush1.bf16.msra.mxu0 0
  %2684 = vmatprep.subr.bf16.mxu0 0
  %2685 = vmatpush1.bf16.msra.mxu0 0
  %2686 = vmatprep.subr.bf16.mxu0 0
  %2687 = vmatpush1.bf16.msra.mxu0 0
  %2688 = vmatprep.mubr.bf16.mxu0 0
  %2689 = vmatmul.mubr.bf16.gmra.mrb[0].mxu0 %v2654
  %v2690 = vpop.f32.mrb[0].mxu0
  %v2691 = vadd.f32 0.0, %v2690
  %v2692 = vpop.f32.mrb[0].mxu0
  %v2693 = vpop.f32.mrb[0].mxu0
  %v2694 = vpop.f32.mrb[0].mxu0
  %2695 = vdwg.mxu0
  %v2696 = vadd.f32 %v2648, %v2691
  %v2697 = vxor.u32 %v2696, 2147483648
  %v2698 = vmul.f32 %v2697, 1.442695
  %v2699 = vpow.pop %v2698
  %v2700 = vadd.f32 %v2699, 1.0
  %v2701 = vrcp.pop %v2700
  %v2702 = vmul.f32 1.0, %v2701
  %v2703 = vtanh.pop %v2696
  %v2704 = vmul.f32 %v2702, %v2568
  %2706 = vrot.lane.b32.xlu0 %v2703, 64
  %v2707 = vpop.permute.xlu0 %2706
  %v2709 = vmul.f32 %v2702, %v2707
  %2711 = vrot.lane.b32.xlu0 %v2709, 32
  %v2712 = vpop.permute.xlu0 %2711
  %v2714 = vadd.f32 %v2704, %v2712
  %v2715 = vtanh.pop %v2714
  %2717 = vrot.lane.b32.xlu0 %v2715, 64
  %v2718 = vpop.permute.xlu0 %2717
  %v2720 = vmul.f32 %v2702, %v2718
  %v2721 = vld [vmem:[#allocation8 + $0x30] sm:$0xff]
  %v2722 = vpack.c.bf16 %v2647, %v2647
  %2724 = vrot.lane.b32.xlu0 %v2722, 32
  %v2725 = vpop.permute.xlu0 %2724
  %v2727 = vsel %vm405, %v2725, 0
  %2729 = vmatprep.subr.bf16.mxu0 0
  %2730 = vmatpush1.bf16.msra.mxu0 %v1855
  %2731 = vmatprep.subr.bf16.mxu0 0
  %2732 = vmatpush1.bf16.msra.mxu0 %v1856
  %2733 = vmatprep.subr.bf16.mxu0 0
  %2734 = vmatpush1.bf16.msra.mxu0 0
  %2735 = vmatprep.subr.bf16.mxu0 0
  %2736 = vmatpush1.bf16.msra.mxu0 0
  %2737 = vmatprep.subr.bf16.mxu0 0
  %2738 = vmatpush1.bf16.msra.mxu0 0
  %2739 = vmatprep.subr.bf16.mxu0 0
  %2740 = vmatpush1.bf16.msra.mxu0 0
  %2741 = vmatprep.subr.bf16.mxu0 0
  %2742 = vmatpush1.bf16.msra.mxu0 0
  %2743 = vmatprep.subr.bf16.mxu0 0
  %2744 = vmatpush1.bf16.msra.mxu0 0
  %2745 = vmatprep.subr.bf16.mxu0 0
  %2746 = vmatpush1.bf16.msra.mxu0 0
  %2747 = vmatprep.subr.bf16.mxu0 0
  %2748 = vmatpush1.bf16.msra.mxu0 0
  %2749 = vmatprep.subr.bf16.mxu0 0
  %2750 = vmatpush1.bf16.msra.mxu0 0
  %2751 = vmatprep.subr.bf16.mxu0 0
  %2752 = vmatpush1.bf16.msra.mxu0 0
  %2753 = vmatprep.subr.bf16.mxu0 0
  %2754 = vmatpush1.bf16.msra.mxu0 0
  %2755 = vmatprep.subr.bf16.mxu0 0
  %2756 = vmatpush1.bf16.msra.mxu0 0
  %2757 = vmatprep.subr.bf16.mxu0 0
  %2758 = vmatpush1.bf16.msra.mxu0 0
  %2759 = vmatprep.subr.bf16.mxu0 0
  %2760 = vmatpush1.bf16.msra.mxu0 0
  %2761 = vmatprep.mubr.bf16.mxu0 0
  %2762 = vmatmul.mubr.bf16.gmra.mrb[0].mxu0 %v2727
  %v2763 = vpop.f32.mrb[0].mxu0
  %v2764 = vadd.f32 0.0, %v2763
  %v2765 = vpop.f32.mrb[0].mxu0
  %v2766 = vpop.f32.mrb[0].mxu0
  %v2767 = vpop.f32.mrb[0].mxu0
  %2768 = vdwg.mxu0
  %v2769 = vadd.f32 %v2721, %v2764
  %v2770 = vxor.u32 %v2769, 2147483648
  %v2771 = vmul.f32 %v2770, 1.442695
  %v2772 = vpow.pop %v2771
  %v2773 = vadd.f32 %v2772, 1.0
  %v2774 = vrcp.pop %v2773
  %v2775 = vmul.f32 1.0, %v2774
  %v2776 = vtanh.pop %v2769
  %v2777 = vmul.f32 %v2775, %v2641
  %2779 = vrot.lane.b32.xlu0 %v2776, 64
  %v2780 = vpop.permute.xlu0 %2779
  %v2782 = vmul.f32 %v2775, %v2780
  %2784 = vrot.lane.b32.xlu0 %v2782, 32
  %v2785 = vpop.permute.xlu0 %2784
  %v2787 = vadd.f32 %v2777, %v2785
  %v2788 = vtanh.pop %v2787
  %2790 = vrot.lane.b32.xlu0 %v2788, 64
  %v2791 = vpop.permute.xlu0 %2790
  %v2793 = vmul.f32 %v2775, %v2791
  %v2794 = vld [vmem:[%s393 + $0x8] sm:$0xff]
  %v2795 = vpack.c.bf16 %v2720, %v2720
  %2797 = vrot.lane.b32.xlu0 %v2795, 32
  %v2798 = vpop.permute.xlu0 %2797
  %v2800 = vsel %vm405, %v2798, 0
  %2802 = vmatprep.subr.bf16.mxu0 0
  %2803 = vmatpush1.bf16.msra.mxu0 %v1924
  %2804 = vmatprep.subr.bf16.mxu0 0
  %2805 = vmatpush1.bf16.msra.mxu0 %v1925
  %2806 = vmatprep.subr.bf16.mxu0 0
  %2807 = vmatpush1.bf16.msra.mxu0 0
  %2808 = vmatprep.subr.bf16.mxu0 0
  %2809 = vmatpush1.bf16.msra.mxu0 0
  %2810 = vmatprep.subr.bf16.mxu0 0
  %2811 = vmatpush1.bf16.msra.mxu0 0
  %2812 = vmatprep.subr.bf16.mxu0 0
  %2813 = vmatpush1.bf16.msra.mxu0 0
  %2814 = vmatprep.subr.bf16.mxu0 0
  %2815 = vmatpush1.bf16.msra.mxu0 0
  %2816 = vmatprep.subr.bf16.mxu0 0
  %2817 = vmatpush1.bf16.msra.mxu0 0
  %2818 = vmatprep.subr.bf16.mxu0 0
  %2819 = vmatpush1.bf16.msra.mxu0 0
  %2820 = vmatprep.subr.bf16.mxu0 0
  %2821 = vmatpush1.bf16.msra.mxu0 0
  %2822 = vmatprep.subr.bf16.mxu0 0
  %2823 = vmatpush1.bf16.msra.mxu0 0
  %2824 = vmatprep.subr.bf16.mxu0 0
  %2825 = vmatpush1.bf16.msra.mxu0 0
  %2826 = vmatprep.subr.bf16.mxu0 0
  %2827 = vmatpush1.bf16.msra.mxu0 0
  %2828 = vmatprep.subr.bf16.mxu0 0
  %2829 = vmatpush1.bf16.msra.mxu0 0
  %2830 = vmatprep.subr.bf16.mxu0 0
  %2831 = vmatpush1.bf16.msra.mxu0 0
  %2832 = vmatprep.subr.bf16.mxu0 0
  %2833 = vmatpush1.bf16.msra.mxu0 0
  %2834 = vmatprep.mubr.bf16.mxu0 0
  %2835 = vmatmul.mubr.bf16.gmra.mrb[0].mxu0 %v2800
  %v2836 = vpop.f32.mrb[0].mxu0
  %v2837 = vadd.f32 0.0, %v2836
  %v2838 = vpop.f32.mrb[0].mxu0
  %v2839 = vpop.f32.mrb[0].mxu0
  %v2840 = vpop.f32.mrb[0].mxu0
  %2841 = vdwg.mxu0
  %v2842 = vadd.f32 %v2794, %v2837
  %v2843 = vxor.u32 %v2842, 2147483648
  %v2844 = vmul.f32 %v2843, 1.442695
  %v2845 = vpow.pop %v2844
  %v2846 = vadd.f32 %v2845, 1.0
  %v2847 = vrcp.pop %v2846
  %v2848 = vmul.f32 1.0, %v2847
  %v2849 = vtanh.pop %v2842
  %v2850 = vmul.f32 %v2848, %v2714
  %2852 = vrot.lane.b32.xlu0 %v2849, 64
  %v2853 = vpop.permute.xlu0 %2852
  %v2855 = vmul.f32 %v2848, %v2853
  %2857 = vrot.lane.b32.xlu0 %v2855, 32
  %v2858 = vpop.permute.xlu0 %2857
  %v2860 = vadd.f32 %v2850, %v2858
  %v2861 = vtanh.pop %v2860
  %2863 = vrot.lane.b32.xlu0 %v2861, 64
  %v2864 = vpop.permute.xlu0 %2863
  %v2866 = vmul.f32 %v2848, %v2864
  %v2867 = vld [vmem:[#allocation8 + $0x38] sm:$0xff]
  %v2868 = vpack.c.bf16 %v2793, %v2793
  %2870 = vrot.lane.b32.xlu0 %v2868, 32
  %v2871 = vpop.permute.xlu0 %2870
  %v2873 = vsel %vm405, %v2871, 0
  %2875 = vmatprep.subr.bf16.mxu0 0
  %2876 = vmatpush1.bf16.msra.mxu0 %v1855
  %2877 = vmatprep.subr.bf16.mxu0 0
  %2878 = vmatpush1.bf16.msra.mxu0 %v1856
  %2879 = vmatprep.subr.bf16.mxu0 0
  %2880 = vmatpush1.bf16.msra.mxu0 0
  %2881 = vmatprep.subr.bf16.mxu0 0
  %2882 = vmatpush1.bf16.msra.mxu0 0
  %2883 = vmatprep.subr.bf16.mxu0 0
  %2884 = vmatpush1.bf16.msra.mxu0 0
  %2885 = vmatprep.subr.bf16.mxu0 0
  %2886 = vmatpush1.bf16.msra.mxu0 0
  %2887 = vmatprep.subr.bf16.mxu0 0
  %2888 = vmatpush1.bf16.msra.mxu0 0
  %2889 = vmatprep.subr.bf16.mxu0 0
  %2890 = vmatpush1.bf16.msra.mxu0 0
  %2891 = vmatprep.subr.bf16.mxu0 0
  %2892 = vmatpush1.bf16.msra.mxu0 0
  %2893 = vmatprep.subr.bf16.mxu0 0
  %2894 = vmatpush1.bf16.msra.mxu0 0
  %2895 = vmatprep.subr.bf16.mxu0 0
  %2896 = vmatpush1.bf16.msra.mxu0 0
  %2897 = vmatprep.subr.bf16.mxu0 0
  %2898 = vmatpush1.bf16.msra.mxu0 0
  %2899 = vmatprep.subr.bf16.mxu0 0
  %2900 = vmatpush1.bf16.msra.mxu0 0
  %2901 = vmatprep.subr.bf16.mxu0 0
  %2902 = vmatpush1.bf16.msra.mxu0 0
  %2903 = vmatprep.subr.bf16.mxu0 0
  %2904 = vmatpush1.bf16.msra.mxu0 0
  %2905 = vmatprep.subr.bf16.mxu0 0
  %2906 = vmatpush1.bf16.msra.mxu0 0
  %2907 = vmatprep.mubr.bf16.mxu0 0
  %2908 = vmatmul.mubr.bf16.gmra.mrb[0].mxu0 %v2873
  %v2909 = vpop.f32.mrb[0].mxu0
  %v2910 = vadd.f32 0.0, %v2909
  %v2911 = vpop.f32.mrb[0].mxu0
  %v2912 = vpop.f32.mrb[0].mxu0
  %v2913 = vpop.f32.mrb[0].mxu0
  %2914 = vdwg.mxu0
  %v2915 = vadd.f32 %v2867, %v2910
  %v2916 = vxor.u32 %v2915, 2147483648
  %v2917 = vmul.f32 %v2916, 1.442695
  %v2918 = vpow.pop %v2917
  %v2919 = vadd.f32 %v2918, 1.0
  %v2920 = vrcp.pop %v2919
  %v2921 = vmul.f32 1.0, %v2920
  %v2922 = vtanh.pop %v2915
  %v2923 = vmul.f32 %v2921, %v2787
  %2925 = vrot.lane.b32.xlu0 %v2922, 64
  %v2926 = vpop.permute.xlu0 %2925
  %v2928 = vmul.f32 %v2921, %v2926
  %2930 = vrot.lane.b32.xlu0 %v2928, 32
  %v2931 = vpop.permute.xlu0 %2930
  %v2933 = vadd.f32 %v2923, %v2931
  %v2934 = vtanh.pop %v2933
  %2936 = vrot.lane.b32.xlu0 %v2934, 64
  %v2937 = vpop.permute.xlu0 %2936
  %v2939 = vmul.f32 %v2921, %v2937
  %v2940 = vld [vmem:[%s393] sm:$0xff]
  %v2941 = vpack.c.bf16 %v2866, %v2866
  %2943 = vrot.lane.b32.xlu0 %v2941, 32
  %v2944 = vpop.permute.xlu0 %2943
  %v2946 = vsel %vm405, %v2944, 0
  %2948 = vmatprep.subr.bf16.mxu0 0
  %2949 = vmatpush1.bf16.msra.mxu0 %v1924
  %2950 = vmatprep.subr.bf16.mxu0 0
  %2951 = vmatpush1.bf16.msra.mxu0 %v1925
  %2952 = vmatprep.subr.bf16.mxu0 0
  %2953 = vmatpush1.bf16.msra.mxu0 0
  %2954 = vmatprep.subr.bf16.mxu0 0
  %2955 = vmatpush1.bf16.msra.mxu0 0
  %2956 = vmatprep.subr.bf16.mxu0 0
  %2957 = vmatpush1.bf16.msra.mxu0 0
  %2958 = vmatprep.subr.bf16.mxu0 0
  %2959 = vmatpush1.bf16.msra.mxu0 0
  %2960 = vmatprep.subr.bf16.mxu0 0
  %2961 = vmatpush1.bf16.msra.mxu0 0
  %2962 = vmatprep.subr.bf16.mxu0 0
  %2963 = vmatpush1.bf16.msra.mxu0 0
  %2964 = vmatprep.subr.bf16.mxu0 0
  %2965 = vmatpush1.bf16.msra.mxu0 0
  %2966 = vmatprep.subr.bf16.mxu0 0
  %2967 = vmatpush1.bf16.msra.mxu0 0
  %2968 = vmatprep.subr.bf16.mxu0 0
  %2969 = vmatpush1.bf16.msra.mxu0 0
  %2970 = vmatprep.subr.bf16.mxu0 0
  %2971 = vmatpush1.bf16.msra.mxu0 0
  %2972 = vmatprep.subr.bf16.mxu0 0
  %2973 = vmatpush1.bf16.msra.mxu0 0
  %2974 = vmatprep.subr.bf16.mxu0 0
  %2975 = vmatpush1.bf16.msra.mxu0 0
  %2976 = vmatprep.subr.bf16.mxu0 0
  %2977 = vmatpush1.bf16.msra.mxu0 0
  %2978 = vmatprep.subr.bf16.mxu0 0
  %2979 = vmatpush1.bf16.msra.mxu0 0
  %2980 = vmatprep.mubr.bf16.mxu0 0
  %2981 = vmatmul.mubr.bf16.gmra.mrb[0].mxu0 %v2946
  %v2982 = vpop.f32.mrb[0].mxu0
  %v2983 = vadd.f32 0.0, %v2982
  %v2984 = vpop.f32.mrb[0].mxu0
  %v2985 = vpop.f32.mrb[0].mxu0
  %v2986 = vpop.f32.mrb[0].mxu0
  %2987 = vdwg.mxu0
  %v2988 = vadd.f32 %v2940, %v2983
  %v2989 = vxor.u32 %v2988, 2147483648
  %v2990 = vmul.f32 %v2989, 1.442695
  %v2991 = vpow.pop %v2990
  %v2992 = vadd.f32 %v2991, 1.0
  %v2993 = vrcp.pop %v2992
  %v2994 = vmul.f32 1.0, %v2993
  %v2995 = vtanh.pop %v2988
  %v2996 = vmul.f32 %v2994, %v2860
  %2998 = vrot.lane.b32.xlu0 %v2995, 64
  %v2999 = vpop.permute.xlu0 %2998
  %v3001 = vmul.f32 %v2994, %v2999
  %3003 = vrot.lane.b32.xlu0 %v3001, 32
  %v3004 = vpop.permute.xlu0 %3003
  %v3006 = vadd.f32 %v2996, %v3004
  %v3007 = vtanh.pop %v3006
  %3009 = vrot.lane.b32.xlu0 %v3007, 64
  %v3010 = vpop.permute.xlu0 %3009
  %v3012 = vmul.f32 %v2994, %v3010
  %v3013 = vpack.c.bf16 %v3012, %v3012
  %v3014 = vld [vmem:[#allocation6] sm:$0xff]
  %v3015 = vld [vmem:[#allocation6 + $0x8] sm:$0xff]
  %v3016 = vpack.c.bf16 %v2939, %v2939
  %s3017 = scalar_lea.vmem [#allocation6], 16
  %v3018 = vld [vmem:[%s3017] sm:$0xff]
  %v3019 = vld [vmem:[%s3017 + $0x8] sm:$0xff]
  %3021 = vrot.lane.b32.xlu0 %v3016, 32
  %v3022 = vpop.permute.xlu0 %3021
  %v3024 = vsel %vm405, %v3022, 0
  %3026 = vmatprep.subr.bf16.mxu0 0
  %3027 = vmatpush1.bf16.msra.mxu0 %v3018
  %3028 = vmatprep.subr.bf16.mxu0 0
  %3029 = vmatpush1.bf16.msra.mxu0 %v3019
  %3030 = vmatprep.subr.bf16.mxu0 0
  %3031 = vmatpush1.bf16.msra.mxu0 0
  %3032 = vmatprep.subr.bf16.mxu0 0
  %3033 = vmatpush1.bf16.msra.mxu0 0
  %3034 = vmatprep.subr.bf16.mxu0 0
  %3035 = vmatpush1.bf16.msra.mxu0 0
  %3036 = vmatprep.subr.bf16.mxu0 0
  %3037 = vmatpush1.bf16.msra.mxu0 0
  %3038 = vmatprep.subr.bf16.mxu0 0
  %3039 = vmatpush1.bf16.msra.mxu0 0
  %3040 = vmatprep.subr.bf16.mxu0 0
  %3041 = vmatpush1.bf16.msra.mxu0 0
  %3042 = vmatprep.subr.bf16.mxu0 0
  %3043 = vmatpush1.bf16.msra.mxu0 0
  %3044 = vmatprep.subr.bf16.mxu0 0
  %3045 = vmatpush1.bf16.msra.mxu0 0
  %3046 = vmatprep.subr.bf16.mxu0 0
  %3047 = vmatpush1.bf16.msra.mxu0 0
  %3048 = vmatprep.subr.bf16.mxu0 0
  %3049 = vmatpush1.bf16.msra.mxu0 0
  %3050 = vmatprep.subr.bf16.mxu0 0
  %3051 = vmatpush1.bf16.msra.mxu0 0
  %3052 = vmatprep.subr.bf16.mxu0 0
  %3053 = vmatpush1.bf16.msra.mxu0 0
  %3054 = vmatprep.subr.bf16.mxu0 0
  %3055 = vmatpush1.bf16.msra.mxu0 0
  %3056 = vmatprep.subr.bf16.mxu0 0
  %3057 = vmatpush1.bf16.msra.mxu0 0
  %3058 = vmatprep.mubr.bf16.mxu0 0
  %3059 = vmatmul.mubr.bf16.gmra.mrb[0].mxu0 %v3024
  %v3060 = vpop.f32.mrb[0].mxu0
  %v3061 = vadd.f32 0.0, %v3060
  %v3062 = vpop.f32.mrb[0].mxu0
  %v3063 = vpop.f32.mrb[0].mxu0
  %v3064 = vpop.f32.mrb[0].mxu0
  %3065 = vdwg.mxu0
  %3067 = vrot.lane.b32.xlu0 %v3013, 32
  %v3068 = vpop.permute.xlu0 %3067
  %v3070 = vsel %vm405, %v3068, 0
  %3072 = vmatprep.subr.bf16.mxu0 0
  %3073 = vmatpush1.bf16.msra.mxu0 %v3014
  %3074 = vmatprep.subr.bf16.mxu0 0
  %3075 = vmatpush1.bf16.msra.mxu0 %v3015
  %3076 = vmatprep.subr.bf16.mxu0 0
  %3077 = vmatpush1.bf16.msra.mxu0 0
  %3078 = vmatprep.subr.bf16.mxu0 0
  %3079 = vmatpush1.bf16.msra.mxu0 0
  %3080 = vmatprep.subr.bf16.mxu0 0
  %3081 = vmatpush1.bf16.msra.mxu0 0
  %3082 = vmatprep.subr.bf16.mxu0 0
  %3083 = vmatpush1.bf16.msra.mxu0 0
  %3084 = vmatprep.subr.bf16.mxu0 0
  %3085 = vmatpush1.bf16.msra.mxu0 0
  %3086 = vmatprep.subr.bf16.mxu0 0
  %3087 = vmatpush1.bf16.msra.mxu0 0
  %3088 = vmatprep.subr.bf16.mxu0 0
  %3089 = vmatpush1.bf16.msra.mxu0 0
  %3090 = vmatprep.subr.bf16.mxu0 0
  %3091 = vmatpush1.bf16.msra.mxu0 0
  %3092 = vmatprep.subr.bf16.mxu0 0
  %3093 = vmatpush1.bf16.msra.mxu0 0
  %3094 = vmatprep.subr.bf16.mxu0 0
  %3095 = vmatpush1.bf16.msra.mxu0 0
  %3096 = vmatprep.subr.bf16.mxu0 0
  %3097 = vmatpush1.bf16.msra.mxu0 0
  %3098 = vmatprep.subr.bf16.mxu0 0
  %3099 = vmatpush1.bf16.msra.mxu0 0
  %3100 = vmatprep.subr.bf16.mxu0 0
  %3101 = vmatpush1.bf16.msra.mxu0 0
  %3102 = vmatprep.subr.bf16.mxu0 0
  %3103 = vmatpush1.bf16.msra.mxu0 0
  %3104 = vmatprep.mubr.bf16.mxu0 0
  %3105 = vmatmul.mubr.bf16.gmra.mrb[0].mxu0 %v3070
  %v3106 = vpop.f32.mrb[0].mxu0
  %v3107 = vadd.f32 %v3061, %v3106
  %v3108 = vpop.f32.mrb[0].mxu0
  %v3109 = vpop.f32.mrb[0].mxu0
  %v3110 = vpop.f32.mrb[0].mxu0
  %3111 = vdwg.mxu0
  %v3112 = vld [vmem:[%s6] sm:$0x1]
  %v3114 = vlaneseq
  %v3115 = vshrl.u32 %v3114, 7
  %v3116 = vsub.s32 0, %v3115
  %v3117 = vrot.slane %v3112, %v3116
  %v3119 = vadd.f32 %v3107, %v3117
  %3120 = vst [vmem:[%s7] sm:$0xff] %v3119
  // Predicated region
  $region120: #{lstm_model_forward.1} parent=0 // pred_check
    _
  $region121: #{lstm_model_forward.1} parent=0 // pred_check_branch
    %3122 = sbr.rel (0) target = $region123
  $region122: #{lstm_model_forward.1} parent=0 // pred_region
    _
  $region123: #{lstm_model_forward.1} parent=0 // pred_fallthru
    _
  // Predicated region
  $region124: #{lstm_model_forward.1} parent=0 // pred_check
    _
  $region125: #{lstm_model_forward.1} parent=0 // pred_check_branch
    %3124 = sbr.rel (0) target = $region127
  $region126: #{lstm_model_forward.1} parent=0 // pred_region
    _
  $region127: #{lstm_model_forward.1} parent=0 // pred_fallthru
    _
  %3125 = vsyncmov [#allocation9]
  %s3126 = vpop.sfrf %3125
  %p3127 = scmp.eq.s32.totalorder %s3126, 0
  %p3128 = pneg %p3127
  %3130 = shalt.err (%p3128)
  %s3131 = scalar_lea.sflag [#allocation9], 1
  %3132 = vsyncmov %s3131
  %s3133 = vpop.sfrf %3132
  %p3134 = scmp.eq.s32.totalorder %s3133, 0
  %p3135 = pneg %p3134
  %3137 = shalt.err (%p3135)
  %s3138 = scalar_lea.sflag [#allocation9], 2
  %3139 = vsyncmov %s3138
  %s3140 = vpop.sfrf %3139
  %p3141 = scmp.eq.s32.totalorder %s3140, 0
  %p3142 = pneg %p3141
  %3144 = shalt.err (%p3142)
  %s3145 = scalar_lea.sflag [#allocation9], 3
  %3146 = vsyncmov %s3145
  %s3147 = vpop.sfrf %3146
  %p3148 = scmp.eq.s32.totalorder %s3147, 0
  %p3149 = pneg %p3148
  %3151 = shalt.err (%p3149)
  %s3152 = scalar_lea.sflag [#allocation9], 4
  %3153 = vsyncmov %s3152
  %s3154 = vpop.sfrf %3153
  %p3155 = scmp.eq.s32.totalorder %s3154, 0
  %p3156 = pneg %p3155
  %3158 = shalt.err (%p3156)

</llo_original>
